<compile_context>
chip_gen: v5e
topology: v5e:2x2
jax: 0.10.0
libtpu: 0.0.40
codegen_flags: <defaults>
</compile_context>

<pallas_src>
import functools

import jax
import jax.numpy as jnp
from jax.experimental import pallas as pl
from jax.experimental.pallas import tpu as pltpu

EPS = 1e-5
_VMEM_LIMIT = 32 * 1024 * 1024      # fits v5e/v6e (128 MiB) and v7x (64 MiB) comfortably
_TILE_TARGET_ROWS = 256             # production: 512-1024 rows; 256 so toy shapes exercise
                                    # the multi-tile stats-accumulation path


def _pick_tile(m, target=_TILE_TARGET_ROWS):
    """Largest divisor of m that is <= target and a multiple of 16 (bf16 sublane packing);
    falls back to the full extent (always legal: block == full array dim)."""
    for t in range(min(m, target), 15, -1):
        if m % t == 0 and t % 16 == 0:
            return t
    return m


# ---------------------------------------------------------------------------
# Pallas kernels
# ---------------------------------------------------------------------------
def _matmul_stats_kernel(x_ref, w_ref, y_ref, sum_ref, sq_ref, acc_ref):
    """Pass A: conv tile = sum over taps of bf16 matmuls (f32 acc) + per-channel
    sum / sum-of-squares accumulated into resident (1, Cout) outputs.

    grid = (m_tiles, taps);  x_ref (1, tm, Cin) bf16;  w_ref (1, Cin, Cout) bf16;
    y_ref (tm, Cout) f32;  sum_ref / sq_ref (1, Cout) f32 (constant block index);
    acc_ref (tm, Cout) f32 VMEM scratch.
    """
    i = pl.program_id(0)
    t = pl.program_id(1)
    nt = pl.num_programs(1)

    @pl.when(t == 0)
    def _():
        acc_ref[...] = jnp.zeros_like(acc_ref)

    @pl.when(jnp.logical_and(i == 0, t == 0))
    def _():
        sum_ref[...] = jnp.zeros_like(sum_ref)
        sq_ref[...] = jnp.zeros_like(sq_ref)

    acc_ref[...] += jnp.dot(x_ref[0], w_ref[0], preferred_element_type=jnp.float32)

    @pl.when(t == nt - 1)
    def _():
        y = acc_ref[...]
        y_ref[...] = y
        sum_ref[...] += jnp.sum(y, axis=0, keepdims=True)
        sq_ref[...] += jnp.sum(jnp.square(y), axis=0, keepdims=True)


def _bn_relu_kernel(y_ref, s_ref, b_ref, o_ref):
    """Pass B: per-channel affine + ReLU; output cast to o_ref.dtype (bf16 activation)."""
    y = y_ref[...] * s_ref[...] + b_ref[...]
    o_ref[...] = jnp.maximum(y, 0.0).astype(o_ref.dtype)


def _add_bn_bn_relu_kernel(ya_ref, yb_ref, sa_ref, ba_ref, sb_ref, bb_ref, o_ref):
    """Final fused epilogue: relu(BN(cb_3) + BN(cb_residual)), f32 output."""
    y = (ya_ref[...] * sa_ref[...] + ba_ref[...]
         + yb_ref[...] * sb_ref[...] + bb_ref[...])
    o_ref[...] = jnp.maximum(y, 0.0)


# ---------------------------------------------------------------------------
# pallas_call wrappers
# ---------------------------------------------------------------------------
def _conv_bn_stats(taps_bf16, w_bf16):
    """taps (T, M, Cin) bf16, w (T, Cin, Cout) bf16 ->
       (conv y (M, Cout) f32, channel sum (1, Cout) f32, channel sumsq (1, Cout) f32)."""
    T, M, Cin = taps_bf16.shape
    Cout = w_bf16.shape[-1]
    tile_m = _pick_tile(M)
    y, ysum, ysq = pl.pallas_call(
        _matmul_stats_kernel,
        out_shape=(
            jax.ShapeDtypeStruct((M, Cout), jnp.float32),
            jax.ShapeDtypeStruct((1, Cout), jnp.float32),
            jax.ShapeDtypeStruct((1, Cout), jnp.float32),
        ),
        grid_spec=pltpu.PrefetchScalarGridSpec(
            num_scalar_prefetch=0,
            grid=(M // tile_m, T),
            in_specs=[
                pl.BlockSpec((1, tile_m, Cin), lambda i, t: (t, i, 0)),
                pl.BlockSpec((1, Cin, Cout), lambda i, t: (t, 0, 0)),
            ],
            out_specs=[
                pl.BlockSpec((tile_m, Cout), lambda i, t: (i, 0)),
                pl.BlockSpec((1, Cout), lambda i, t: (0, 0)),
                pl.BlockSpec((1, Cout), lambda i, t: (0, 0)),
            ],
            scratch_shapes=[pltpu.VMEM((tile_m, Cout), jnp.float32)],
        ),
        compiler_params=pltpu.CompilerParams(
            # stats accumulate across M tiles and acc across taps -> both "arbitrary"
            dimension_semantics=("arbitrary", "arbitrary"),
            vmem_limit_bytes=_VMEM_LIMIT,
        ),
    )(taps_bf16, w_bf16)
    return y, ysum, ysq


def _bn_relu(y, scale, shift, out_dtype=jnp.bfloat16):
    M, C = y.shape
    tile_m = _pick_tile(M)
    return pl.pallas_call(
        _bn_relu_kernel,
        out_shape=jax.ShapeDtypeStruct((M, C), out_dtype),
        grid_spec=pltpu.PrefetchScalarGridSpec(
            num_scalar_prefetch=0,
            grid=(M // tile_m,),
            in_specs=[
                pl.BlockSpec((tile_m, C), lambda i: (i, 0)),
                pl.BlockSpec((1, C), lambda i: (0, 0)),   # resident, not re-DMA'd per tile
                pl.BlockSpec((1, C), lambda i: (0, 0)),
            ],
            out_specs=pl.BlockSpec((tile_m, C), lambda i: (i, 0)),
        ),
        compiler_params=pltpu.CompilerParams(
            dimension_semantics=("parallel",),
            vmem_limit_bytes=_VMEM_LIMIT,
        ),
    )(y, scale, shift)


def _add_bn_bn_relu(ya, yb, sa, ba, sb, bb):
    M, C = ya.shape
    tile_m = _pick_tile(M)
    return pl.pallas_call(
        _add_bn_bn_relu_kernel,
        out_shape=jax.ShapeDtypeStruct((M, C), jnp.float32),
        grid_spec=pltpu.PrefetchScalarGridSpec(
            num_scalar_prefetch=0,
            grid=(M // tile_m,),
            in_specs=[
                pl.BlockSpec((tile_m, C), lambda i: (i, 0)),
                pl.BlockSpec((tile_m, C), lambda i: (i, 0)),
                pl.BlockSpec((1, C), lambda i: (0, 0)),
                pl.BlockSpec((1, C), lambda i: (0, 0)),
                pl.BlockSpec((1, C), lambda i: (0, 0)),
                pl.BlockSpec((1, C), lambda i: (0, 0)),
            ],
            out_specs=pl.BlockSpec((tile_m, C), lambda i: (i, 0)),
        ),
        compiler_params=pltpu.CompilerParams(
            dimension_semantics=("parallel",),
            vmem_limit_bytes=_VMEM_LIMIT,
        ),
    )(ya, yb, sa, ba, sb, bb)


# ---------------------------------------------------------------------------
# Glue (layout / tap extraction / weight repack / BN coefficient math)
# ---------------------------------------------------------------------------
def _prep_weight(w_oihw):
    """(Cout, Cin, KH, KW) torch conv weight -> (KH*KW, Cin, Cout) bf16, tap-major (ky, kx)."""
    Cout, Cin, KH, KW = w_oihw.shape
    return jnp.transpose(w_oihw, (2, 3, 1, 0)).reshape(KH * KW, Cin, Cout).astype(jnp.bfloat16)


def _extract_taps(x_nhwc, ksize, stride, pad, dilation):
    """Zero-pad then slice one (N*Ho*Wo, C) tap per (ky, kx); stacked -> (K*K, M, C)."""
    N, H, W, C = x_nhwc.shape
    eff = dilation * (ksize - 1) + 1
    Ho = (H + 2 * pad - eff) // stride + 1
    Wo = (W + 2 * pad - eff) // stride + 1
    xp = jnp.pad(x_nhwc, ((0, 0), (pad, pad), (pad, pad), (0, 0)))
    taps = []
    for ky in range(ksize):
        for kx in range(ksize):
            t = jax.lax.slice(
                xp,
                (0, ky * dilation, kx * dilation, 0),
                (N, ky * dilation + (Ho - 1) * stride + 1,
                 kx * dilation + (Wo - 1) * stride + 1, C),
                (1, stride, stride, 1))
            taps.append(t.reshape(N * Ho * Wo, C))
    return jnp.stack(taps, axis=0), Ho, Wo


def _bn_scale_shift(chan_sum, chan_sq, count, gamma, beta):
    """Per-channel BN affine from accumulated sums: y*scale + shift == (y-mean)/std*g + b."""
    mean = chan_sum / float(count)
    var = jnp.maximum(chan_sq / float(count) - jnp.square(mean), 0.0)  # clamp (review)
    inv = jax.lax.rsqrt(var + EPS)
    scale = gamma.reshape(1, -1).astype(jnp.float32) * inv
    shift = beta.reshape(1, -1).astype(jnp.float32) - mean * scale
    return scale, shift


# ---------------------------------------------------------------------------
# BottleNeckPSP forward
# ---------------------------------------------------------------------------
def bottleneck_psp(x_nchw, params, *, stride, dilation):
    x = jnp.transpose(x_nchw, (0, 2, 3, 1)).astype(jnp.float32)      # NHWC
    N, H, W, Cin = x.shape
    x_bf = x.astype(jnp.bfloat16)
    mid = params["w1"].shape[0]
    cout = params["w3"].shape[0]

    # --- cbr_1 : 1x1 conv -> BN -> ReLU --------------------------------------
    M1 = N * H * W
    y1, s1, q1 = _conv_bn_stats(x_bf.reshape(1, M1, Cin), _prep_weight(params["w1"]))
    sc1, sh1 = _bn_scale_shift(s1, q1, M1, params["g1"], params["b1"])
    a1 = _bn_relu(y1, sc1, sh1).reshape(N, H, W, mid)                # bf16 activation

    # --- cbr_2 : 3x3 conv (stride, dilation) -> BN -> ReLU -------------------
    taps2, Ho, Wo = _extract_taps(a1, 3, stride, dilation, dilation)
    M2 = N * Ho * Wo
    y2, s2, q2 = _conv_bn_stats(taps2, _prep_weight(params["w2"]))
    sc2, sh2 = _bn_scale_shift(s2, q2, M2, params["g2"], params["b2"])
    a2 = _bn_relu(y2, sc2, sh2)                                      # (M2, mid) bf16

    # --- cb_3 : 1x1 conv -> BN (ReLU-less; fused into final kernel) ----------
    y3, s3, q3 = _conv_bn_stats(a2.reshape(1, M2, mid), _prep_weight(params["w3"]))
    sc3, sh3 = _bn_scale_shift(s3, q3, M2, params["g3"], params["b3"])

    # --- cb_residual : 1x1 conv (stride) -> BN (ReLU-less) -------------------
    xr = x_bf[:, ::stride, ::stride, :]
    assert xr.shape[1] == Ho and xr.shape[2] == Wo
    yr, sr, qr = _conv_bn_stats(xr.reshape(1, M2, Cin), _prep_weight(params["wr"]))
    scr, shr = _bn_scale_shift(sr, qr, M2, params["gr"], params["br"])

    # --- relu(cb_3 + cb_residual) --------------------------------------------
    out = _add_bn_bn_relu(y3, yr, sc3, sh3, scr, shr)                # (M2, cout) f32
    out = out.reshape(N, Ho, Wo, cout)
    return jnp.transpose(out, (0, 3, 1, 2))                          # back to NCHW


# ---------------------------------------------------------------------------
# Pure-JAX reference (PyTorch semantics) for correctness checking
# ---------------------------------------------------------------------------
def _ref_conv_bn(x, w, gamma, beta, stride, padding, dilation, relu):
    y = jax.lax.conv_general_dilated(
        x, w, window_strides=(stride, stride),
        padding=[(padding, padding), (padding, padding)],
        rhs_dilation=(dilation, dilation),
        dimension_numbers=("NCHW", "OIHW", "NCHW"))
    mean = jnp.mean(y, axis=(0, 2, 3), keepdims=True)
    var = jnp.mean(jnp.square(y - mean), axis=(0, 2, 3), keepdims=True)
    y = (y - mean) * jax.lax.rsqrt(var + EPS)
    y = y * gamma.reshape(1, -1, 1, 1) + beta.reshape(1, -1, 1, 1)
    return jnp.maximum(y, 0.0) if relu else y


def bottleneck_psp_ref(x, p, *, stride, dilation):
    h = _ref_conv_bn(x, p["w1"], p["g1"], p["b1"], 1, 0, 1, True)
    h = _ref_conv_bn(h, p["w2"], p["g2"], p["b2"], stride, dilation, dilation, True)
    h = _ref_conv_bn(h, p["w3"], p["g3"], p["b3"], 1, 0, 1, False)
    r = _ref_conv_bn(x, p["wr"], p["gr"], p["br"], stride, 0, 1, False)
    return jnp.maximum(h + r, 0.0)


# ---------------------------------------------------------------------------
if __name__ == "__main__":
    key = jax.random.PRNGKey(0)
    ks = jax.random.split(key, 13)

    N, CIN, H, W = 2, 128, 16, 16
    MID, COUT = 128, 256           # lane-dense Cout (multiples of 128) per the review
    STRIDE, DILATION = 2, 1

    x = jax.random.normal(ks[0], (N, CIN, H, W), jnp.float32)
    params = {
        "w1": jax.random.normal(ks[1], (MID, CIN, 1, 1), jnp.float32) * 0.10,
        "g1": 1.0 + 0.1 * jax.random.normal(ks[2], (MID,), jnp.float32),
        "b1": 0.1 * jax.random.normal(ks[3], (MID,), jnp.float32),
        "w2": jax.random.normal(ks[4], (MID, MID, 3, 3), jnp.float32) * 0.05,
        "g2": 1.0 + 0.1 * jax.random.normal(ks[5], (MID,), jnp.float32),
        "b2": 0.1 * jax.random.normal(ks[6], (MID,), jnp.float32),
        "w3": jax.random.normal(ks[7], (COUT, MID, 1, 1), jnp.float32) * 0.10,
        "g3": 1.0 + 0.1 * jax.random.normal(ks[8], (COUT,), jnp.float32),
        "b3": 0.1 * jax.random.normal(ks[9], (COUT,), jnp.float32),
        "wr": jax.random.normal(ks[10], (COUT, CIN, 1, 1), jnp.float32) * 0.10,
        "gr": 1.0 + 0.1 * jax.random.normal(ks[11], (COUT,), jnp.float32),
        "br": 0.1 * jax.random.normal(ks[12], (COUT,), jnp.float32),
    }

    fwd = jax.jit(functools.partial(bottleneck_psp, stride=STRIDE, dilation=DILATION))
    out = jax.block_until_ready(fwd(x, params))

    ref_fn = jax.jit(functools.partial(bottleneck_psp_ref, stride=STRIDE, dilation=DILATION))
    ref = jax.block_until_ready(ref_fn(x, params))

    # (2,128,16,16) -> bottleneck (stride 2) -> (2,256,8,8)
    assert out.shape == (N, COUT, H // STRIDE, W // STRIDE), out.shape
    assert out.dtype == jnp.float32
    assert bool(jnp.all(out >= 0.0))                 # final ReLU
    max_err = float(jnp.max(jnp.abs(out - ref)))     # bf16 matmul vs f32 reference
    assert max_err < 0.3, max_err

    print("KERNEL_OK")
</pallas_src>

<mosaic_0001>
module attributes {stable_mosaic.version = 11 : i64} {
  func.func @_matmul_stats_kernel(%arg0: i32, %arg1: i32, %arg2: memref<1x256x128xbf16, #tpu.memory_space<vmem>>, %arg3: memref<1x128x128xbf16, #tpu.memory_space<vmem>>, %arg4: memref<256x128xf32, #tpu.memory_space<vmem>>, %arg5: memref<1x128xf32, #tpu.memory_space<vmem>>, %arg6: memref<1x128xf32, #tpu.memory_space<vmem>>, %arg7: memref<256x128xf32, #tpu.memory_space<vmem>>) attributes {dimension_semantics = [#tpu.dimension_semantics<arbitrary>, #tpu.dimension_semantics<arbitrary>], iteration_bounds = array<i64: 2, 1>, scalar_prefetch = 0 : i64, scratch_operands = 1 : i64, tpu.core_type = #tpu.core_type<tc>, window_params = [{transform_indices = @transform_0, window_bounds = array<i64: 1, 256, 128>}, {transform_indices = @transform_1, window_bounds = array<i64: 1, 128, 128>}, {transform_indices = @transform_2, window_bounds = array<i64: 256, 128>}, {pipeline_mode = #tpu.pipeline_mode<synchronous>, transform_indices = @transform_3, window_bounds = array<i64: 1, 128>}, {pipeline_mode = #tpu.pipeline_mode<synchronous>, transform_indices = @transform_4, window_bounds = array<i64: 1, 128>}]} {
    %c0_i32 = arith.constant 0 : i32
    %0 = arith.cmpi eq, %arg1, %c0_i32 : i32
    %1 = arith.extui %0 : i1 to i32
    %c0_i32_0 = arith.constant 0 : i32
    %2 = arith.cmpi ne, %1, %c0_i32_0 : i32
    scf.if %2 {
      %cst_15 = arith.constant 0.000000e+00 : f32
      %19 = vector.broadcast %cst_15 : f32 to vector<256x128xf32>
      %c0_16 = arith.constant 0 : index
      %c0_17 = arith.constant 0 : index
      %20 = vector.load %arg7[%c0_16, %c0_17] : memref<256x128xf32, #tpu.memory_space<vmem>>, vector<256x128xf32>
      tpu.vector_store %arg7[%c0_16, %c0_17], %19 {strides = array<i32>} : memref<256x128xf32, #tpu.memory_space<vmem>>, vector<256x128xf32>,
    } else {
    }
    %c0_i32_1 = arith.constant 0 : i32
    %3 = arith.cmpi eq, %arg0, %c0_i32_1 : i32
    %c0_i32_2 = arith.constant 0 : i32
    %4 = arith.cmpi eq, %arg1, %c0_i32_2 : i32
    %5 = arith.andi %3, %4 : i1
    %6 = arith.extui %5 : i1 to i32
    %c0_i32_3 = arith.constant 0 : i32
    %7 = arith.cmpi ne, %6, %c0_i32_3 : i32
    scf.if %7 {
      %cst_15 = arith.constant 0.000000e+00 : f32
      %19 = vector.broadcast %cst_15 : f32 to vector<1x128xf32>
      %c0_16 = arith.constant 0 : index
      %c0_17 = arith.constant 0 : index
      %20 = vector.load %arg5[%c0_16, %c0_17] : memref<1x128xf32, #tpu.memory_space<vmem>>, vector<1x128xf32>
      tpu.vector_store %arg5[%c0_16, %c0_17], %19 {strides = array<i32>} : memref<1x128xf32, #tpu.memory_space<vmem>>, vector<1x128xf32>,
      %cst_18 = arith.constant 0.000000e+00 : f32
      %21 = vector.broadcast %cst_18 : f32 to vector<1x128xf32>
      %c0_19 = arith.constant 0 : index
      %c0_20 = arith.constant 0 : index
      %22 = vector.load %arg6[%c0_19, %c0_20] : memref<1x128xf32, #tpu.memory_space<vmem>>, vector<1x128xf32>
      tpu.vector_store %arg6[%c0_19, %c0_20], %21 {strides = array<i32>} : memref<1x128xf32, #tpu.memory_space<vmem>>, vector<1x128xf32>,
    } else {
    }
    %c0 = arith.constant 0 : index
    %c0_4 = arith.constant 0 : index
    %8 = vector.load %arg7[%c0, %c0_4] : memref<256x128xf32, #tpu.memory_space<vmem>>, vector<256x128xf32>
    %c0_5 = arith.constant 0 : index
    %c0_6 = arith.constant 0 : index
    %c0_7 = arith.constant 0 : index
    %9 = vector.load %arg2[%c0_5, %c0_6, %c0_7] : memref<1x256x128xbf16, #tpu.memory_space<vmem>>, vector<1x256x128xbf16>
    %10 = vector.shape_cast %9 : vector<1x256x128xbf16> to vector<256x128xbf16>
    %c0_8 = arith.constant 0 : index
    %c0_9 = arith.constant 0 : index
    %c0_10 = arith.constant 0 : index
    %11 = vector.load %arg3[%c0_8, %c0_9, %c0_10] : memref<1x128x128xbf16, #tpu.memory_space<vmem>>, vector<1x128x128xbf16>
    %12 = vector.shape_cast %11 : vector<1x128x128xbf16> to vector<128x128xbf16>
    %cst = arith.constant dense<0.000000e+00> : vector<256x128xf32>
    %13 = tpu.matmul %10, %12, %cst {dimension_numbers = #tpu.dot_dimension_numbers<[1], [0], [0], [1], [0, 0, 1, 1], [], []>} : vector<256x128xbf16>, vector<128x128xbf16>, vector<256x128xf32> -> vector<256x128xf32>
    %14 = arith.addf %8, %13 : vector<256x128xf32>
    %c0_11 = arith.constant 0 : index
    %c0_12 = arith.constant 0 : index
    %15 = vector.load %arg7[%c0_11, %c0_12] : memref<256x128xf32, #tpu.memory_space<vmem>>, vector<256x128xf32>
    tpu.vector_store %arg7[%c0_11, %c0_12], %14 {strides = array<i32>} : memref<256x128xf32, #tpu.memory_space<vmem>>, vector<256x128xf32>,
    %c0_i32_13 = arith.constant 0 : i32
    %16 = arith.cmpi eq, %arg1, %c0_i32_13 : i32
    %17 = arith.extui %16 : i1 to i32
    %c0_i32_14 = arith.constant 0 : i32
    %18 = arith.cmpi ne, %17, %c0_i32_14 : i32
    scf.if %18 {
      %c0_15 = arith.constant 0 : index
      %c0_16 = arith.constant 0 : index
      %19 = vector.load %arg7[%c0_15, %c0_16] : memref<256x128xf32, #tpu.memory_space<vmem>>, vector<256x128xf32>
      %c0_17 = arith.constant 0 : index
      %c0_18 = arith.constant 0 : index
      %20 = vector.load %arg4[%c0_17, %c0_18] : memref<256x128xf32, #tpu.memory_space<vmem>>, vector<256x128xf32>
      tpu.vector_store %arg4[%c0_17, %c0_18], %19 {strides = array<i32>} : memref<256x128xf32, #tpu.memory_space<vmem>>, vector<256x128xf32>,
      %c0_19 = arith.constant 0 : index
      %c0_20 = arith.constant 0 : index
      %21 = vector.load %arg5[%c0_19, %c0_20] : memref<1x128xf32, #tpu.memory_space<vmem>>, vector<1x128xf32>
      %cst_21 = arith.constant dense<0.000000e+00> : vector<128xf32>
      %22 = vector.multi_reduction <add>, %19, %cst_21 [0] : vector<256x128xf32> to vector<128xf32>
      %23 = vector.shape_cast %22 : vector<128xf32> to vector<1x128xf32>
      %24 = arith.addf %21, %23 : vector<1x128xf32>
      %c0_22 = arith.constant 0 : index
      %c0_23 = arith.constant 0 : index
      %25 = vector.load %arg5[%c0_22, %c0_23] : memref<1x128xf32, #tpu.memory_space<vmem>>, vector<1x128xf32>
      tpu.vector_store %arg5[%c0_22, %c0_23], %24 {strides = array<i32>} : memref<1x128xf32, #tpu.memory_space<vmem>>, vector<1x128xf32>,
      %c0_24 = arith.constant 0 : index
      %c0_25 = arith.constant 0 : index
      %26 = vector.load %arg6[%c0_24, %c0_25] : memref<1x128xf32, #tpu.memory_space<vmem>>, vector<1x128xf32>
      %27 = arith.mulf %19, %19 : vector<256x128xf32>
      %cst_26 = arith.constant dense<0.000000e+00> : vector<128xf32>
      %28 = vector.multi_reduction <add>, %27, %cst_26 [0] : vector<256x128xf32> to vector<128xf32>
      %29 = vector.shape_cast %28 : vector<128xf32> to vector<1x128xf32>
      %30 = arith.addf %26, %29 : vector<1x128xf32>
      %c0_27 = arith.constant 0 : index
      %c0_28 = arith.constant 0 : index
      %31 = vector.load %arg6[%c0_27, %c0_28] : memref<1x128xf32, #tpu.memory_space<vmem>>, vector<1x128xf32>
      tpu.vector_store %arg6[%c0_27, %c0_28], %30 {strides = array<i32>} : memref<1x128xf32, #tpu.memory_space<vmem>>, vector<1x128xf32>,
    } else {
    }
    return
  }
  func.func @transform_0(%arg0: i32, %arg1: i32) -> (i32, i32, i32) {
    %c0_i32 = arith.constant 0 : i32
    %c0_i32_0 = arith.constant 0 : i32
    return %arg1, %arg0, %c0_i32 : i32, i32, i32
  }
  func.func @transform_1(%arg0: i32, %arg1: i32) -> (i32, i32, i32) {
    %c0_i32 = arith.constant 0 : i32
    %c0_i32_0 = arith.constant 0 : i32
    %c0_i32_1 = arith.constant 0 : i32
    return %arg1, %c0_i32, %c0_i32_0 : i32, i32, i32
  }
  func.func @transform_2(%arg0: i32, %arg1: i32) -> (i32, i32) {
    %c0_i32 = arith.constant 0 : i32
    %c0_i32_0 = arith.constant 0 : i32
    return %arg0, %c0_i32 : i32, i32
  }
  func.func @transform_3(%arg0: i32, %arg1: i32) -> (i32, i32) {
    %c0_i32 = arith.constant 0 : i32
    %c0_i32_0 = arith.constant 0 : i32
    %c0_i32_1 = arith.constant 0 : i32
    return %c0_i32, %c0_i32_0 : i32, i32
  }
  func.func @transform_4(%arg0: i32, %arg1: i32) -> (i32, i32) {
    %c0_i32 = arith.constant 0 : i32
    %c0_i32_0 = arith.constant 0 : i32
    %c0_i32_1 = arith.constant 0 : i32
    return %c0_i32, %c0_i32_0 : i32, i32
  }
}

module attributes {stable_mosaic.version = 11 : i64} {
  func.func @_bn_relu_kernel(%arg0: i32, %arg1: memref<256x128xf32, #tpu.memory_space<vmem>>, %arg2: memref<1x128xf32, #tpu.memory_space<vmem>>, %arg3: memref<1x128xf32, #tpu.memory_space<vmem>>, %arg4: memref<256x128xbf16, #tpu.memory_space<vmem>>) attributes {dimension_semantics = [#tpu.dimension_semantics<parallel>], iteration_bounds = array<i64: 2>, scalar_prefetch = 0 : i64, scratch_operands = 0 : i64, tpu.core_type = #tpu.core_type<tc>, window_params = [{transform_indices = @transform_0, window_bounds = array<i64: 256, 128>}, {pipeline_mode = #tpu.pipeline_mode<synchronous>, transform_indices = @transform_1, window_bounds = array<i64: 1, 128>}, {pipeline_mode = #tpu.pipeline_mode<synchronous>, transform_indices = @transform_2, window_bounds = array<i64: 1, 128>}, {transform_indices = @transform_3, window_bounds = array<i64: 256, 128>}]} {
    %c0 = arith.constant 0 : index
    %c0_0 = arith.constant 0 : index
    %0 = vector.load %arg1[%c0, %c0_0] : memref<256x128xf32, #tpu.memory_space<vmem>>, vector<256x128xf32>
    %c0_1 = arith.constant 0 : index
    %c0_2 = arith.constant 0 : index
    %1 = vector.load %arg2[%c0_1, %c0_2] : memref<1x128xf32, #tpu.memory_space<vmem>>, vector<1x128xf32>
    %2 = vector.broadcast %1 : vector<1x128xf32> to vector<256x128xf32>
    %3 = arith.mulf %0, %2 : vector<256x128xf32>
    %c0_3 = arith.constant 0 : index
    %c0_4 = arith.constant 0 : index
    %4 = vector.load %arg3[%c0_3, %c0_4] : memref<1x128xf32, #tpu.memory_space<vmem>>, vector<1x128xf32>
    %5 = vector.broadcast %4 : vector<1x128xf32> to vector<256x128xf32>
    %6 = arith.addf %3, %5 : vector<256x128xf32>
    %cst = arith.constant 0.000000e+00 : f32
    %7 = vector.broadcast %cst : f32 to vector<256x128xf32>
    %8 = arith.maximumf %6, %7 : vector<256x128xf32>
    %9 = arith.truncf %8 : vector<256x128xf32> to vector<256x128xbf16>
    %c0_5 = arith.constant 0 : index
    %c0_6 = arith.constant 0 : index
    %10 = vector.load %arg4[%c0_5, %c0_6] : memref<256x128xbf16, #tpu.memory_space<vmem>>, vector<256x128xbf16>
    tpu.vector_store %arg4[%c0_5, %c0_6], %9 {strides = array<i32>} : memref<256x128xbf16, #tpu.memory_space<vmem>>, vector<256x128xbf16>,
    return
  }
  func.func @transform_0(%arg0: i32) -> (i32, i32) {
    %c0_i32 = arith.constant 0 : i32
    %c0_i32_0 = arith.constant 0 : i32
    return %arg0, %c0_i32 : i32, i32
  }
  func.func @transform_1(%arg0: i32) -> (i32, i32) {
    %c0_i32 = arith.constant 0 : i32
    %c0_i32_0 = arith.constant 0 : i32
    %c0_i32_1 = arith.constant 0 : i32
    return %c0_i32, %c0_i32_0 : i32, i32
  }
  func.func @transform_2(%arg0: i32) -> (i32, i32) {
    %c0_i32 = arith.constant 0 : i32
    %c0_i32_0 = arith.constant 0 : i32
    %c0_i32_1 = arith.constant 0 : i32
    return %c0_i32, %c0_i32_0 : i32, i32
  }
  func.func @transform_3(%arg0: i32) -> (i32, i32) {
    %c0_i32 = arith.constant 0 : i32
    %c0_i32_0 = arith.constant 0 : i32
    return %arg0, %c0_i32 : i32, i32
  }
}

module attributes {stable_mosaic.version = 11 : i64} {
  func.func @_matmul_stats_kernel(%arg0: i32, %arg1: i32, %arg2: memref<1x128x128xbf16, #tpu.memory_space<vmem>>, %arg3: memref<1x128x128xbf16, #tpu.memory_space<vmem>>, %arg4: memref<128x128xf32, #tpu.memory_space<vmem>>, %arg5: memref<1x128xf32, #tpu.memory_space<vmem>>, %arg6: memref<1x128xf32, #tpu.memory_space<vmem>>, %arg7: memref<128x128xf32, #tpu.memory_space<vmem>>) attributes {dimension_semantics = [#tpu.dimension_semantics<arbitrary>, #tpu.dimension_semantics<arbitrary>], iteration_bounds = array<i64: 1, 9>, scalar_prefetch = 0 : i64, scratch_operands = 1 : i64, tpu.core_type = #tpu.core_type<tc>, window_params = [{transform_indices = @transform_0, window_bounds = array<i64: 1, 128, 128>}, {transform_indices = @transform_1, window_bounds = array<i64: 1, 128, 128>}, {transform_indices = @transform_2, window_bounds = array<i64: 128, 128>}, {pipeline_mode = #tpu.pipeline_mode<synchronous>, transform_indices = @transform_3, window_bounds = array<i64: 1, 128>}, {pipeline_mode = #tpu.pipeline_mode<synchronous>, transform_indices = @transform_4, window_bounds = array<i64: 1, 128>}]} {
    %c0_i32 = arith.constant 0 : i32
    %0 = arith.cmpi eq, %arg1, %c0_i32 : i32
    %1 = arith.extui %0 : i1 to i32
    %c0_i32_0 = arith.constant 0 : i32
    %2 = arith.cmpi ne, %1, %c0_i32_0 : i32
    scf.if %2 {
      %cst_14 = arith.constant 0.000000e+00 : f32
      %19 = vector.broadcast %cst_14 : f32 to vector<128x128xf32>
      %c0_15 = arith.constant 0 : index
      %c0_16 = arith.constant 0 : index
      %20 = vector.load %arg7[%c0_15, %c0_16] : memref<128x128xf32, #tpu.memory_space<vmem>>, vector<128x128xf32>
      tpu.vector_store %arg7[%c0_15, %c0_16], %19 {strides = array<i32>} : memref<128x128xf32, #tpu.memory_space<vmem>>, vector<128x128xf32>,
    } else {
    }
    %c0_i32_1 = arith.constant 0 : i32
    %3 = arith.cmpi eq, %arg0, %c0_i32_1 : i32
    %c0_i32_2 = arith.constant 0 : i32
    %4 = arith.cmpi eq, %arg1, %c0_i32_2 : i32
    %5 = arith.andi %3, %4 : i1
    %6 = arith.extui %5 : i1 to i32
    %c0_i32_3 = arith.constant 0 : i32
    %7 = arith.cmpi ne, %6, %c0_i32_3 : i32
    scf.if %7 {
      %cst_14 = arith.constant 0.000000e+00 : f32
      %19 = vector.broadcast %cst_14 : f32 to vector<1x128xf32>
      %c0_15 = arith.constant 0 : index
      %c0_16 = arith.constant 0 : index
      %20 = vector.load %arg5[%c0_15, %c0_16] : memref<1x128xf32, #tpu.memory_space<vmem>>, vector<1x128xf32>
      tpu.vector_store %arg5[%c0_15, %c0_16], %19 {strides = array<i32>} : memref<1x128xf32, #tpu.memory_space<vmem>>, vector<1x128xf32>,
      %cst_17 = arith.constant 0.000000e+00 : f32
      %21 = vector.broadcast %cst_17 : f32 to vector<1x128xf32>
      %c0_18 = arith.constant 0 : index
      %c0_19 = arith.constant 0 : index
      %22 = vector.load %arg6[%c0_18, %c0_19] : memref<1x128xf32, #tpu.memory_space<vmem>>, vector<1x128xf32>
      tpu.vector_store %arg6[%c0_18, %c0_19], %21 {strides = array<i32>} : memref<1x128xf32, #tpu.memory_space<vmem>>, vector<1x128xf32>,
    } else {
    }
    %c0 = arith.constant 0 : index
    %c0_4 = arith.constant 0 : index
    %8 = vector.load %arg7[%c0, %c0_4] : memref<128x128xf32, #tpu.memory_space<vmem>>, vector<128x128xf32>
    %c0_5 = arith.constant 0 : index
    %c0_6 = arith.constant 0 : index
    %c0_7 = arith.constant 0 : index
    %9 = vector.load %arg2[%c0_5, %c0_6, %c0_7] : memref<1x128x128xbf16, #tpu.memory_space<vmem>>, vector<1x128x128xbf16>
    %10 = vector.shape_cast %9 : vector<1x128x128xbf16> to vector<128x128xbf16>
    %c0_8 = arith.constant 0 : index
    %c0_9 = arith.constant 0 : index
    %c0_10 = arith.constant 0 : index
    %11 = vector.load %arg3[%c0_8, %c0_9, %c0_10] : memref<1x128x128xbf16, #tpu.memory_space<vmem>>, vector<1x128x128xbf16>
    %12 = vector.shape_cast %11 : vector<1x128x128xbf16> to vector<128x128xbf16>
    %cst = arith.constant dense<0.000000e+00> : vector<128x128xf32>
    %13 = tpu.matmul %10, %12, %cst {dimension_numbers = #tpu.dot_dimension_numbers<[1], [0], [0], [1], [0, 0, 1, 1], [], []>} : vector<128x128xbf16>, vector<128x128xbf16>, vector<128x128xf32> -> vector<128x128xf32>
    %14 = arith.addf %8, %13 : vector<128x128xf32>
    %c0_11 = arith.constant 0 : index
    %c0_12 = arith.constant 0 : index
    %15 = vector.load %arg7[%c0_11, %c0_12] : memref<128x128xf32, #tpu.memory_space<vmem>>, vector<128x128xf32>
    tpu.vector_store %arg7[%c0_11, %c0_12], %14 {strides = array<i32>} : memref<128x128xf32, #tpu.memory_space<vmem>>, vector<128x128xf32>,
    %c8_i32 = arith.constant 8 : i32
    %16 = arith.cmpi eq, %arg1, %c8_i32 : i32
    %17 = arith.extui %16 : i1 to i32
    %c0_i32_13 = arith.constant 0 : i32
    %18 = arith.cmpi ne, %17, %c0_i32_13 : i32
    scf.if %18 {
      %c0_14 = arith.constant 0 : index
      %c0_15 = arith.constant 0 : index
      %19 = vector.load %arg7[%c0_14, %c0_15] : memref<128x128xf32, #tpu.memory_space<vmem>>, vector<128x128xf32>
      %c0_16 = arith.constant 0 : index
      %c0_17 = arith.constant 0 : index
      %20 = vector.load %arg4[%c0_16, %c0_17] : memref<128x128xf32, #tpu.memory_space<vmem>>, vector<128x128xf32>
      tpu.vector_store %arg4[%c0_16, %c0_17], %19 {strides = array<i32>} : memref<128x128xf32, #tpu.memory_space<vmem>>, vector<128x128xf32>,
      %c0_18 = arith.constant 0 : index
      %c0_19 = arith.constant 0 : index
      %21 = vector.load %arg5[%c0_18, %c0_19] : memref<1x128xf32, #tpu.memory_space<vmem>>, vector<1x128xf32>
      %cst_20 = arith.constant dense<0.000000e+00> : vector<128xf32>
      %22 = vector.multi_reduction <add>, %19, %cst_20 [0] : vector<128x128xf32> to vector<128xf32>
      %23 = vector.shape_cast %22 : vector<128xf32> to vector<1x128xf32>
      %24 = arith.addf %21, %23 : vector<1x128xf32>
      %c0_21 = arith.constant 0 : index
      %c0_22 = arith.constant 0 : index
      %25 = vector.load %arg5[%c0_21, %c0_22] : memref<1x128xf32, #tpu.memory_space<vmem>>, vector<1x128xf32>
      tpu.vector_store %arg5[%c0_21, %c0_22], %24 {strides = array<i32>} : memref<1x128xf32, #tpu.memory_space<vmem>>, vector<1x128xf32>,
      %c0_23 = arith.constant 0 : index
      %c0_24 = arith.constant 0 : index
      %26 = vector.load %arg6[%c0_23, %c0_24] : memref<1x128xf32, #tpu.memory_space<vmem>>, vector<1x128xf32>
      %27 = arith.mulf %19, %19 : vector<128x128xf32>
      %cst_25 = arith.constant dense<0.000000e+00> : vector<128xf32>
      %28 = vector.multi_reduction <add>, %27, %cst_25 [0] : vector<128x128xf32> to vector<128xf32>
      %29 = vector.shape_cast %28 : vector<128xf32> to vector<1x128xf32>
      %30 = arith.addf %26, %29 : vector<1x128xf32>
      %c0_26 = arith.constant 0 : index
      %c0_27 = arith.constant 0 : index
      %31 = vector.load %arg6[%c0_26, %c0_27] : memref<1x128xf32, #tpu.memory_space<vmem>>, vector<1x128xf32>
      tpu.vector_store %arg6[%c0_26, %c0_27], %30 {strides = array<i32>} : memref<1x128xf32, #tpu.memory_space<vmem>>, vector<1x128xf32>,
    } else {
    }
    return
  }
  func.func @transform_0(%arg0: i32, %arg1: i32) -> (i32, i32, i32) {
    %c0_i32 = arith.constant 0 : i32
    %c0_i32_0 = arith.constant 0 : i32
    return %arg1, %arg0, %c0_i32 : i32, i32, i32
  }
  func.func @transform_1(%arg0: i32, %arg1: i32) -> (i32, i32, i32) {
    %c0_i32 = arith.constant 0 : i32
    %c0_i32_0 = arith.constant 0 : i32
    %c0_i32_1 = arith.constant 0 : i32
    return %arg1, %c0_i32, %c0_i32_0 : i32, i32, i32
  }
  func.func @transform_2(%arg0: i32, %arg1: i32) -> (i32, i32) {
    %c0_i32 = arith.constant 0 : i32
    %c0_i32_0 = arith.constant 0 : i32
    return %arg0, %c0_i32 : i32, i32
  }
  func.func @transform_3(%arg0: i32, %arg1: i32) -> (i32, i32) {
    %c0_i32 = arith.constant 0 : i32
    %c0_i32_0 = arith.constant 0 : i32
    %c0_i32_1 = arith.constant 0 : i32
    return %c0_i32, %c0_i32_0 : i32, i32
  }
  func.func @transform_4(%arg0: i32, %arg1: i32) -> (i32, i32) {
    %c0_i32 = arith.constant 0 : i32
    %c0_i32_0 = arith.constant 0 : i32
    %c0_i32_1 = arith.constant 0 : i32
    return %c0_i32, %c0_i32_0 : i32, i32
  }
}

module attributes {stable_mosaic.version = 11 : i64} {
  func.func @_bn_relu_kernel(%arg0: i32, %arg1: memref<128x128xf32, #tpu.memory_space<vmem>>, %arg2: memref<1x128xf32, #tpu.memory_space<vmem>>, %arg3: memref<1x128xf32, #tpu.memory_space<vmem>>, %arg4: memref<128x128xbf16, #tpu.memory_space<vmem>>) attributes {dimension_semantics = [#tpu.dimension_semantics<parallel>], iteration_bounds = array<i64: 1>, scalar_prefetch = 0 : i64, scratch_operands = 0 : i64, tpu.core_type = #tpu.core_type<tc>, window_params = [{transform_indices = @transform_0, window_bounds = array<i64: 128, 128>}, {pipeline_mode = #tpu.pipeline_mode<synchronous>, transform_indices = @transform_1, window_bounds = array<i64: 1, 128>}, {pipeline_mode = #tpu.pipeline_mode<synchronous>, transform_indices = @transform_2, window_bounds = array<i64: 1, 128>}, {transform_indices = @transform_3, window_bounds = array<i64: 128, 128>}]} {
    %c0 = arith.constant 0 : index
    %c0_0 = arith.constant 0 : index
    %0 = vector.load %arg1[%c0, %c0_0] : memref<128x128xf32, #tpu.memory_space<vmem>>, vector<128x128xf32>
    %c0_1 = arith.constant 0 : index
    %c0_2 = arith.constant 0 : index
    %1 = vector.load %arg2[%c0_1, %c0_2] : memref<1x128xf32, #tpu.memory_space<vmem>>, vector<1x128xf32>
    %2 = vector.broadcast %1 : vector<1x128xf32> to vector<128x128xf32>
    %3 = arith.mulf %0, %2 : vector<128x128xf32>
    %c0_3 = arith.constant 0 : index
    %c0_4 = arith.constant 0 : index
    %4 = vector.load %arg3[%c0_3, %c0_4] : memref<1x128xf32, #tpu.memory_space<vmem>>, vector<1x128xf32>
    %5 = vector.broadcast %4 : vector<1x128xf32> to vector<128x128xf32>
    %6 = arith.addf %3, %5 : vector<128x128xf32>
    %cst = arith.constant 0.000000e+00 : f32
    %7 = vector.broadcast %cst : f32 to vector<128x128xf32>
    %8 = arith.maximumf %6, %7 : vector<128x128xf32>
    %9 = arith.truncf %8 : vector<128x128xf32> to vector<128x128xbf16>
    %c0_5 = arith.constant 0 : index
    %c0_6 = arith.constant 0 : index
    %10 = vector.load %arg4[%c0_5, %c0_6] : memref<128x128xbf16, #tpu.memory_space<vmem>>, vector<128x128xbf16>
    tpu.vector_store %arg4[%c0_5, %c0_6], %9 {strides = array<i32>} : memref<128x128xbf16, #tpu.memory_space<vmem>>, vector<128x128xbf16>,
    return
  }
  func.func @transform_0(%arg0: i32) -> (i32, i32) {
    %c0_i32 = arith.constant 0 : i32
    %c0_i32_0 = arith.constant 0 : i32
    return %arg0, %c0_i32 : i32, i32
  }
  func.func @transform_1(%arg0: i32) -> (i32, i32) {
    %c0_i32 = arith.constant 0 : i32
    %c0_i32_0 = arith.constant 0 : i32
    %c0_i32_1 = arith.constant 0 : i32
    return %c0_i32, %c0_i32_0 : i32, i32
  }
  func.func @transform_2(%arg0: i32) -> (i32, i32) {
    %c0_i32 = arith.constant 0 : i32
    %c0_i32_0 = arith.constant 0 : i32
    %c0_i32_1 = arith.constant 0 : i32
    return %c0_i32, %c0_i32_0 : i32, i32
  }
  func.func @transform_3(%arg0: i32) -> (i32, i32) {
    %c0_i32 = arith.constant 0 : i32
    %c0_i32_0 = arith.constant 0 : i32
    return %arg0, %c0_i32 : i32, i32
  }
}

module attributes {stable_mosaic.version = 11 : i64} {
  func.func @_matmul_stats_kernel(%arg0: i32, %arg1: i32, %arg2: memref<1x128x128xbf16, #tpu.memory_space<vmem>>, %arg3: memref<1x128x256xbf16, #tpu.memory_space<vmem>>, %arg4: memref<128x256xf32, #tpu.memory_space<vmem>>, %arg5: memref<1x256xf32, #tpu.memory_space<vmem>>, %arg6: memref<1x256xf32, #tpu.memory_space<vmem>>, %arg7: memref<128x256xf32, #tpu.memory_space<vmem>>) attributes {dimension_semantics = [#tpu.dimension_semantics<arbitrary>, #tpu.dimension_semantics<arbitrary>], iteration_bounds = array<i64: 1, 1>, scalar_prefetch = 0 : i64, scratch_operands = 1 : i64, tpu.core_type = #tpu.core_type<tc>, window_params = [{transform_indices = @transform_0, window_bounds = array<i64: 1, 128, 128>}, {transform_indices = @transform_1, window_bounds = array<i64: 1, 128, 256>}, {transform_indices = @transform_2, window_bounds = array<i64: 128, 256>}, {pipeline_mode = #tpu.pipeline_mode<synchronous>, transform_indices = @transform_3, window_bounds = array<i64: 1, 256>}, {pipeline_mode = #tpu.pipeline_mode<synchronous>, transform_indices = @transform_4, window_bounds = array<i64: 1, 256>}]} {
    %c0_i32 = arith.constant 0 : i32
    %0 = arith.cmpi eq, %arg1, %c0_i32 : i32
    %1 = arith.extui %0 : i1 to i32
    %c0_i32_0 = arith.constant 0 : i32
    %2 = arith.cmpi ne, %1, %c0_i32_0 : i32
    scf.if %2 {
      %cst_15 = arith.constant 0.000000e+00 : f32
      %19 = vector.broadcast %cst_15 : f32 to vector<128x256xf32>
      %c0_16 = arith.constant 0 : index
      %c0_17 = arith.constant 0 : index
      %20 = vector.load %arg7[%c0_16, %c0_17] : memref<128x256xf32, #tpu.memory_space<vmem>>, vector<128x256xf32>
      tpu.vector_store %arg7[%c0_16, %c0_17], %19 {strides = array<i32>} : memref<128x256xf32, #tpu.memory_space<vmem>>, vector<128x256xf32>,
    } else {
    }
    %c0_i32_1 = arith.constant 0 : i32
    %3 = arith.cmpi eq, %arg0, %c0_i32_1 : i32
    %c0_i32_2 = arith.constant 0 : i32
    %4 = arith.cmpi eq, %arg1, %c0_i32_2 : i32
    %5 = arith.andi %3, %4 : i1
    %6 = arith.extui %5 : i1 to i32
    %c0_i32_3 = arith.constant 0 : i32
    %7 = arith.cmpi ne, %6, %c0_i32_3 : i32
    scf.if %7 {
      %cst_15 = arith.constant 0.000000e+00 : f32
      %19 = vector.broadcast %cst_15 : f32 to vector<1x256xf32>
      %c0_16 = arith.constant 0 : index
      %c0_17 = arith.constant 0 : index
      %20 = vector.load %arg5[%c0_16, %c0_17] : memref<1x256xf32, #tpu.memory_space<vmem>>, vector<1x256xf32>
      tpu.vector_store %arg5[%c0_16, %c0_17], %19 {strides = array<i32>} : memref<1x256xf32, #tpu.memory_space<vmem>>, vector<1x256xf32>,
      %cst_18 = arith.constant 0.000000e+00 : f32
      %21 = vector.broadcast %cst_18 : f32 to vector<1x256xf32>
      %c0_19 = arith.constant 0 : index
      %c0_20 = arith.constant 0 : index
      %22 = vector.load %arg6[%c0_19, %c0_20] : memref<1x256xf32, #tpu.memory_space<vmem>>, vector<1x256xf32>
      tpu.vector_store %arg6[%c0_19, %c0_20], %21 {strides = array<i32>} : memref<1x256xf32, #tpu.memory_space<vmem>>, vector<1x256xf32>,
    } else {
    }
    %c0 = arith.constant 0 : index
    %c0_4 = arith.constant 0 : index
    %8 = vector.load %arg7[%c0, %c0_4] : memref<128x256xf32, #tpu.memory_space<vmem>>, vector<128x256xf32>
    %c0_5 = arith.constant 0 : index
    %c0_6 = arith.constant 0 : index
    %c0_7 = arith.constant 0 : index
    %9 = vector.load %arg2[%c0_5, %c0_6, %c0_7] : memref<1x128x128xbf16, #tpu.memory_space<vmem>>, vector<1x128x128xbf16>
    %10 = vector.shape_cast %9 : vector<1x128x128xbf16> to vector<128x128xbf16>
    %c0_8 = arith.constant 0 : index
    %c0_9 = arith.constant 0 : index
    %c0_10 = arith.constant 0 : index
    %11 = vector.load %arg3[%c0_8, %c0_9, %c0_10] : memref<1x128x256xbf16, #tpu.memory_space<vmem>>, vector<1x128x256xbf16>
    %12 = vector.shape_cast %11 : vector<1x128x256xbf16> to vector<128x256xbf16>
    %cst = arith.constant dense<0.000000e+00> : vector<128x256xf32>
    %13 = tpu.matmul %10, %12, %cst {dimension_numbers = #tpu.dot_dimension_numbers<[1], [0], [0], [1], [0, 0, 1, 1], [], []>} : vector<128x128xbf16>, vector<128x256xbf16>, vector<128x256xf32> -> vector<128x256xf32>
    %14 = arith.addf %8, %13 : vector<128x256xf32>
    %c0_11 = arith.constant 0 : index
    %c0_12 = arith.constant 0 : index
    %15 = vector.load %arg7[%c0_11, %c0_12] : memref<128x256xf32, #tpu.memory_space<vmem>>, vector<128x256xf32>
    tpu.vector_store %arg7[%c0_11, %c0_12], %14 {strides = array<i32>} : memref<128x256xf32, #tpu.memory_space<vmem>>, vector<128x256xf32>,
    %c0_i32_13 = arith.constant 0 : i32
    %16 = arith.cmpi eq, %arg1, %c0_i32_13 : i32
    %17 = arith.extui %16 : i1 to i32
    %c0_i32_14 = arith.constant 0 : i32
    %18 = arith.cmpi ne, %17, %c0_i32_14 : i32
    scf.if %18 {
      %c0_15 = arith.constant 0 : index
      %c0_16 = arith.constant 0 : index
      %19 = vector.load %arg7[%c0_15, %c0_16] : memref<128x256xf32, #tpu.memory_space<vmem>>, vector<128x256xf32>
      %c0_17 = arith.constant 0 : index
      %c0_18 = arith.constant 0 : index
      %20 = vector.load %arg4[%c0_17, %c0_18] : memref<128x256xf32, #tpu.memory_space<vmem>>, vector<128x256xf32>
      tpu.vector_store %arg4[%c0_17, %c0_18], %19 {strides = array<i32>} : memref<128x256xf32, #tpu.memory_space<vmem>>, vector<128x256xf32>,
      %c0_19 = arith.constant 0 : index
      %c0_20 = arith.constant 0 : index
      %21 = vector.load %arg5[%c0_19, %c0_20] : memref<1x256xf32, #tpu.memory_space<vmem>>, vector<1x256xf32>
      %cst_21 = arith.constant dense<0.000000e+00> : vector<256xf32>
      %22 = vector.multi_reduction <add>, %19, %cst_21 [0] : vector<128x256xf32> to vector<256xf32>
      %23 = vector.shape_cast %22 : vector<256xf32> to vector<1x256xf32>
      %24 = arith.addf %21, %23 : vector<1x256xf32>
      %c0_22 = arith.constant 0 : index
      %c0_23 = arith.constant 0 : index
      %25 = vector.load %arg5[%c0_22, %c0_23] : memref<1x256xf32, #tpu.memory_space<vmem>>, vector<1x256xf32>
      tpu.vector_store %arg5[%c0_22, %c0_23], %24 {strides = array<i32>} : memref<1x256xf32, #tpu.memory_space<vmem>>, vector<1x256xf32>,
      %c0_24 = arith.constant 0 : index
      %c0_25 = arith.constant 0 : index
      %26 = vector.load %arg6[%c0_24, %c0_25] : memref<1x256xf32, #tpu.memory_space<vmem>>, vector<1x256xf32>
      %27 = arith.mulf %19, %19 : vector<128x256xf32>
      %cst_26 = arith.constant dense<0.000000e+00> : vector<256xf32>
      %28 = vector.multi_reduction <add>, %27, %cst_26 [0] : vector<128x256xf32> to vector<256xf32>
      %29 = vector.shape_cast %28 : vector<256xf32> to vector<1x256xf32>
      %30 = arith.addf %26, %29 : vector<1x256xf32>
      %c0_27 = arith.constant 0 : index
      %c0_28 = arith.constant 0 : index
      %31 = vector.load %arg6[%c0_27, %c0_28] : memref<1x256xf32, #tpu.memory_space<vmem>>, vector<1x256xf32>
      tpu.vector_store %arg6[%c0_27, %c0_28], %30 {strides = array<i32>} : memref<1x256xf32, #tpu.memory_space<vmem>>, vector<1x256xf32>,
    } else {
    }
    return
  }
  func.func @transform_0(%arg0: i32, %arg1: i32) -> (i32, i32, i32) {
    %c0_i32 = arith.constant 0 : i32
    %c0_i32_0 = arith.constant 0 : i32
    return %arg1, %arg0, %c0_i32 : i32, i32, i32
  }
  func.func @transform_1(%arg0: i32, %arg1: i32) -> (i32, i32, i32) {
    %c0_i32 = arith.constant 0 : i32
    %c0_i32_0 = arith.constant 0 : i32
    %c0_i32_1 = arith.constant 0 : i32
    return %arg1, %c0_i32, %c0_i32_0 : i32, i32, i32
  }
  func.func @transform_2(%arg0: i32, %arg1: i32) -> (i32, i32) {
    %c0_i32 = arith.constant 0 : i32
    %c0_i32_0 = arith.constant 0 : i32
    return %arg0, %c0_i32 : i32, i32
  }
  func.func @transform_3(%arg0: i32, %arg1: i32) -> (i32, i32) {
    %c0_i32 = arith.constant 0 : i32
    %c0_i32_0 = arith.constant 0 : i32
    %c0_i32_1 = arith.constant 0 : i32
    return %c0_i32, %c0_i32_0 : i32, i32
  }
  func.func @transform_4(%arg0: i32, %arg1: i32) -> (i32, i32) {
    %c0_i32 = arith.constant 0 : i32
    %c0_i32_0 = arith.constant 0 : i32
    %c0_i32_1 = arith.constant 0 : i32
    return %c0_i32, %c0_i32_0 : i32, i32
  }
}

module attributes {stable_mosaic.version = 11 : i64} {
  func.func @_add_bn_bn_relu_kernel(%arg0: i32, %arg1: memref<128x256xf32, #tpu.memory_space<vmem>>, %arg2: memref<128x256xf32, #tpu.memory_space<vmem>>, %arg3: memref<1x256xf32, #tpu.memory_space<vmem>>, %arg4: memref<1x256xf32, #tpu.memory_space<vmem>>, %arg5: memref<1x256xf32, #tpu.memory_space<vmem>>, %arg6: memref<1x256xf32, #tpu.memory_space<vmem>>, %arg7: memref<128x256xf32, #tpu.memory_space<vmem>>) attributes {dimension_semantics = [#tpu.dimension_semantics<parallel>], iteration_bounds = array<i64: 1>, scalar_prefetch = 0 : i64, scratch_operands = 0 : i64, tpu.core_type = #tpu.core_type<tc>, window_params = [{transform_indices = @transform_0, window_bounds = array<i64: 128, 256>}, {transform_indices = @transform_1, window_bounds = array<i64: 128, 256>}, {pipeline_mode = #tpu.pipeline_mode<synchronous>, transform_indices = @transform_2, window_bounds = array<i64: 1, 256>}, {pipeline_mode = #tpu.pipeline_mode<synchronous>, transform_indices = @transform_3, window_bounds = array<i64: 1, 256>}, {pipeline_mode = #tpu.pipeline_mode<synchronous>, transform_indices = @transform_4, window_bounds = array<i64: 1, 256>}, {pipeline_mode = #tpu.pipeline_mode<synchronous>, transform_indices = @transform_5, window_bounds = array<i64: 1, 256>}, {transform_indices = @transform_6, window_bounds = array<i64: 128, 256>}]} {
    %c0 = arith.constant 0 : index
    %c0_0 = arith.constant 0 : index
    %0 = vector.load %arg1[%c0, %c0_0] : memref<128x256xf32, #tpu.memory_space<vmem>>, vector<128x256xf32>
    %c0_1 = arith.constant 0 : index
    %c0_2 = arith.constant 0 : index
    %1 = vector.load %arg3[%c0_1, %c0_2] : memref<1x256xf32, #tpu.memory_space<vmem>>, vector<1x256xf32>
    %2 = vector.broadcast %1 : vector<1x256xf32> to vector<128x256xf32>
    %3 = arith.mulf %0, %2 : vector<128x256xf32>
    %c0_3 = arith.constant 0 : index
    %c0_4 = arith.constant 0 : index
    %4 = vector.load %arg4[%c0_3, %c0_4] : memref<1x256xf32, #tpu.memory_space<vmem>>, vector<1x256xf32>
    %5 = vector.broadcast %4 : vector<1x256xf32> to vector<128x256xf32>
    %6 = arith.addf %3, %5 : vector<128x256xf32>
    %c0_5 = arith.constant 0 : index
    %c0_6 = arith.constant 0 : index
    %7 = vector.load %arg2[%c0_5, %c0_6] : memref<128x256xf32, #tpu.memory_space<vmem>>, vector<128x256xf32>
    %c0_7 = arith.constant 0 : index
    %c0_8 = arith.constant 0 : index
    %8 = vector.load %arg5[%c0_7, %c0_8] : memref<1x256xf32, #tpu.memory_space<vmem>>, vector<1x256xf32>
    %9 = vector.broadcast %8 : vector<1x256xf32> to vector<128x256xf32>
    %10 = arith.mulf %7, %9 : vector<128x256xf32>
    %11 = arith.addf %6, %10 : vector<128x256xf32>
    %c0_9 = arith.constant 0 : index
    %c0_10 = arith.constant 0 : index
    %12 = vector.load %arg6[%c0_9, %c0_10] : memref<1x256xf32, #tpu.memory_space<vmem>>, vector<1x256xf32>
    %13 = vector.broadcast %12 : vector<1x256xf32> to vector<128x256xf32>
    %14 = arith.addf %11, %13 : vector<128x256xf32>
    %cst = arith.constant 0.000000e+00 : f32
    %15 = vector.broadcast %cst : f32 to vector<128x256xf32>
    %16 = arith.maximumf %14, %15 : vector<128x256xf32>
    %c0_11 = arith.constant 0 : index
    %c0_12 = arith.constant 0 : index
    %17 = vector.load %arg7[%c0_11, %c0_12] : memref<128x256xf32, #tpu.memory_space<vmem>>, vector<128x256xf32>
    tpu.vector_store %arg7[%c0_11, %c0_12], %16 {strides = array<i32>} : memref<128x256xf32, #tpu.memory_space<vmem>>, vector<128x256xf32>,
    return
  }
  func.func @transform_0(%arg0: i32) -> (i32, i32) {
    %c0_i32 = arith.constant 0 : i32
    %c0_i32_0 = arith.constant 0 : i32
    return %arg0, %c0_i32 : i32, i32
  }
  func.func @transform_1(%arg0: i32) -> (i32, i32) {
    %c0_i32 = arith.constant 0 : i32
    %c0_i32_0 = arith.constant 0 : i32
    return %arg0, %c0_i32 : i32, i32
  }
  func.func @transform_2(%arg0: i32) -> (i32, i32) {
    %c0_i32 = arith.constant 0 : i32
    %c0_i32_0 = arith.constant 0 : i32
    %c0_i32_1 = arith.constant 0 : i32
    return %c0_i32, %c0_i32_0 : i32, i32
  }
  func.func @transform_3(%arg0: i32) -> (i32, i32) {
    %c0_i32 = arith.constant 0 : i32
    %c0_i32_0 = arith.constant 0 : i32
    %c0_i32_1 = arith.constant 0 : i32
    return %c0_i32, %c0_i32_0 : i32, i32
  }
  func.func @transform_4(%arg0: i32) -> (i32, i32) {
    %c0_i32 = arith.constant 0 : i32
    %c0_i32_0 = arith.constant 0 : i32
    %c0_i32_1 = arith.constant 0 : i32
    return %c0_i32, %c0_i32_0 : i32, i32
  }
  func.func @transform_5(%arg0: i32) -> (i32, i32) {
    %c0_i32 = arith.constant 0 : i32
    %c0_i32_0 = arith.constant 0 : i32
    %c0_i32_1 = arith.constant 0 : i32
    return %c0_i32, %c0_i32_0 : i32, i32
  }
  func.func @transform_6(%arg0: i32) -> (i32, i32) {
    %c0_i32 = arith.constant 0 : i32
    %c0_i32_0 = arith.constant 0 : i32
    return %arg0, %c0_i32 : i32, i32
  }
}

</mosaic_0001>

<llo_original>
// kernel: bottleneck_psp.8
$region0: #{bottleneck_psp.8}
  #allocation0 [shape = 'u32[]', space=smem, size = 0x4, offset = 0x4, fixed_abs, tag = 'smem constant byte address 0x4 - core index']
  #allocation1 [shape = 'u32[72,128]{1,0:T(1,128)}', space=vmem, size = 0x9000, scoped, tag = 'internal scratch']
  %s0 = inlined_call_operand.vmem [shape: f32[512,128], index: 0, kind: input, shape index: {}]
  %s1 = inlined_call_operand.vmem [shape: f32[1,128], index: 1, kind: input, shape index: {}]
  %s2 = inlined_call_operand.vmem [shape: f32[1,128], index: 2, kind: input, shape index: {}]
  %s3 = inlined_call_operand.vmem [shape: bf16[512,128], index: 3, kind: output, shape index: {}]
  %s4 = sld [smem:[#allocation0]]
  $region45: #{bottleneck_psp.8} parent=0
    _
  %s6 = ssub.s32 1, %s4
  %s7 = scalar_select 0, %s6, %s4
  loop: start=0, step=1, limit=4
  $region2: #{bottleneck_psp.8} parent=0 // loop_pre_header
    _
  $region3: #{bottleneck_psp.8} parent=0 // loop_header
    %s9 = sphi 0, %s13
    %p10 = scmp.ge.s32.totalorder %s9, 4
    %s19 = sphi 0, %s21
    %s22 = sphi 0, %s19
    %s23 = sphi 0, %s22
    %s39 = sphi 0, %s23
    %s43 = sphi 0, %s43
    %s45 = sphi 0, %s43
    %s46 = sphi 0, %s45
    %s60 = sphi 0, %s46
    %s64 = sphi 0, %s64
    %s66 = sphi 0, %s64
    %s67 = sphi 0, %s66
    %s81 = sphi 0, %s67
    %s87 = sphi 0, %s89
    %s90 = sphi 0, %s87
    %s91 = sphi 0, %s90
    %s107 = sphi 0, %s91
  $region4: #{bottleneck_psp.8} parent=0 // loop_header_branch
    %12 = sbr.rel (%p10) target = $region8
  $region5: #{bottleneck_psp.8} parent=0 // loop_body
    %s14 = ssub.s32 %s9, 1
    %s15 = ssub.s32 %s9, 2
    %s16 = sadd.s32 %s9, 1
    %s17 = ssub.s32 %s9, %s16
    %p18 = scmp.eq.s32.totalorder %s17, 0
    %s20 = sadd.s32 %s19, 1
    %s21 = scalar_select %p18, %s19, %s20
    %p24 = pneg %p18
    %p25 = scmp.eq.s32.totalorder %s9, 1
    %p26 = por %p24, %p25
    %p27 = scmp.ne.s32.totalorder %s19, %s22
    %p28 = scmp.eq.s32.totalorder %s9, 0
    %p29 = por %p27, %p28
    %p30 = scmp.ne.s32.totalorder %s19, %s22
    %p31 = scmp.eq.s32.totalorder %s14, 1
    %p32 = por %p30, %p31
    %p33 = scmp.ne.s32.totalorder %s22, %s23
    %p34 = scmp.eq.s32.totalorder %s14, 0
    %p35 = por %p33, %p34
    %p36 = scmp.ne.s32.totalorder %s22, %s23
    %p37 = scmp.eq.s32.totalorder %s15, 1
    %p38 = por %p36, %p37
    %p40 = scmp.ne.s32.totalorder %s23, %s39
    %p41 = scmp.eq.s32.totalorder %s15, 0
    %p42 = por %p40, %p41
    %s44 = sadd.s32 %s43, 1
    %p47 = scmp.eq.s32.totalorder %s9, 1
    %p48 = scmp.ne.s32.totalorder %s43, %s45
    %p49 = scmp.eq.s32.totalorder %s9, 0
    %p50 = por %p48, %p49
    %p51 = scmp.ne.s32.totalorder %s43, %s45
    %p52 = scmp.eq.s32.totalorder %s14, 1
    %p53 = por %p51, %p52
    %p54 = scmp.ne.s32.totalorder %s45, %s46
    %p55 = scmp.eq.s32.totalorder %s14, 0
    %p56 = por %p54, %p55
    %p57 = scmp.ne.s32.totalorder %s45, %s46
    %p58 = scmp.eq.s32.totalorder %s15, 1
    %p59 = por %p57, %p58
    %p61 = scmp.ne.s32.totalorder %s46, %s60
    %p62 = scmp.eq.s32.totalorder %s15, 0
    %p63 = por %p61, %p62
    %s65 = sadd.s32 %s64, 1
    %p68 = scmp.eq.s32.totalorder %s9, 1
    %p69 = scmp.ne.s32.totalorder %s64, %s66
    %p70 = scmp.eq.s32.totalorder %s9, 0
    %p71 = por %p69, %p70
    %p72 = scmp.ne.s32.totalorder %s64, %s66
    %p73 = scmp.eq.s32.totalorder %s14, 1
    %p74 = por %p72, %p73
    %p75 = scmp.ne.s32.totalorder %s66, %s67
    %p76 = scmp.eq.s32.totalorder %s14, 0
    %p77 = por %p75, %p76
    %p78 = scmp.ne.s32.totalorder %s66, %s67
    %p79 = scmp.eq.s32.totalorder %s15, 1
    %p80 = por %p78, %p79
    %p82 = scmp.ne.s32.totalorder %s67, %s81
    %p83 = scmp.eq.s32.totalorder %s15, 0
    %p84 = por %p82, %p83
    %s85 = ssub.s32 %s9, %s16
    %p86 = scmp.eq.s32.totalorder %s85, 0
    %s88 = sadd.s32 %s87, 1
    %s89 = scalar_select %p86, %s87, %s88
    %p92 = pneg %p86
    %p93 = scmp.eq.s32.totalorder %s9, 1
    %p94 = por %p92, %p93
    %p95 = scmp.ne.s32.totalorder %s87, %s90
    %p96 = scmp.eq.s32.totalorder %s9, 0
    %p97 = por %p95, %p96
    %p98 = scmp.ne.s32.totalorder %s87, %s90
    %p99 = scmp.eq.s32.totalorder %s14, 1
    %p100 = por %p98, %p99
    %p101 = scmp.ne.s32.totalorder %s90, %s91
    %p102 = scmp.eq.s32.totalorder %s14, 0
    %p103 = por %p101, %p102
    %p104 = scmp.ne.s32.totalorder %s90, %s91
    %p105 = scmp.eq.s32.totalorder %s15, 1
    %p106 = por %p104, %p105
    %p108 = scmp.ne.s32.totalorder %s91, %s107
    %p109 = scmp.eq.s32.totalorder %s15, 0
    %p110 = por %p108, %p109
    %p111 = scmp.le.s32.totalorder 1, %s9
    %p112 = scmp.lt.s32.totalorder %s9, 3
    %p113 = pnand %p111, %p112
    %p114 = pneg %p113
    // Predicated region
    $region9: #{bottleneck_psp.8} parent=5 // pred_check
      _
    $region10: #{bottleneck_psp.8} parent=5 // pred_check_branch
      %116 = sbr.rel (%p113) target = $region12
    $region11: #{bottleneck_psp.8} parent=5 // pred_region
      %s117 = ssub.s32 %s9, 1
      // Predicated region
      $region13: #{bottleneck_psp.8} parent=11 // pred_check
        %p118 = pneg %p56
      $region14: #{bottleneck_psp.8} parent=11 // pred_check_branch
        %120 = sbr.rel (%p118) target = $region16
      $region15: #{bottleneck_psp.8} parent=11 // pred_region
        _
      $region16: #{bottleneck_psp.8} parent=11 // pred_fallthru
        _
      // Predicated region
      $region17: #{bottleneck_psp.8} parent=11 // pred_check
        %p121 = pneg %p77
      $region18: #{bottleneck_psp.8} parent=11 // pred_check_branch
        %123 = sbr.rel (%p121) target = $region20
      $region19: #{bottleneck_psp.8} parent=11 // pred_region
        _
      $region20: #{bottleneck_psp.8} parent=11 // pred_fallthru
        _
    $region12: #{bottleneck_psp.8} parent=5 // pred_fallthru
      _
    %p124 = scmp.lt.s32.totalorder %s9, 2
    // Predicated region
    $region21: #{bottleneck_psp.8} parent=5 // pred_check
      %p125 = pneg %p124
    $region22: #{bottleneck_psp.8} parent=5 // pred_check_branch
      %127 = sbr.rel (%p125) target = $region24
    $region23: #{bottleneck_psp.8} parent=5 // pred_region
      // Predicated region
      $region25: #{bottleneck_psp.8} parent=23 // pred_check
        %p128 = pneg %p29
      $region26: #{bottleneck_psp.8} parent=23 // pred_check_branch
        %130 = sbr.rel (%p128) target = $region28
      $region27: #{bottleneck_psp.8} parent=23 // pred_region
        %s131 = smul.u32 32, %s9
        %p132 = scmp.lt.s32.totalorder %s131, 63
        %s133 = scalar_select %p132, %s131, 63
        %s134 = smul.addr %s133, 8
        %s135 = scalar_lea.vmem %s0, %s134
        %s136 = smul.u32 32, %s9
      $region28: #{bottleneck_psp.8} parent=23 // pred_fallthru
        _
    $region24: #{bottleneck_psp.8} parent=5 // pred_fallthru
      _
    %p137 = scmp.le.s32.totalorder 1, %s9
    %p138 = scmp.lt.s32.totalorder %s9, 3
    %p139 = pnand %p137, %p138
    %p140 = pneg %p139
    // Predicated region
    $region29: #{bottleneck_psp.8} parent=5 // pred_check
      _
    $region30: #{bottleneck_psp.8} parent=5 // pred_check_branch
      %142 = sbr.rel (%p139) target = $region32
    $region31: #{bottleneck_psp.8} parent=5 // pred_region
      %s143 = ssub.s32 %s9, 1
      %s144 = smul.u32 32, %s14
      %p145 = scmp.lt.s32.totalorder %s144, 63
      %s146 = scalar_select %p145, %s144, 63
      %s147 = smul.addr %s146, 8
      %s148 = scalar_lea.vmem %s0, %s147
      %p149 = pneg %p35
      %p150 = pneg %p32
      %p151 = pneg %p56
      %p152 = pneg %p53
      %p153 = pneg %p77
      %p154 = pneg %p74
      %p155 = pneg %p103
      %p156 = pneg %p100
      %s157 = smul.u32 32, %s14
      %p158 = scmp.lt.s32.totalorder %s157, 63
      %s159 = scalar_select %p158, %s157, 63
      %s160 = smul.addr %s159, 4
      %s161 = scalar_lea.vmem %s3, %s160
      %s162 = smul.u32 32, %s14
      %p163 = scmp.lt.s32.totalorder %s162, 63
      %s164 = scalar_select %p163, %s162, 63
      %s165 = smul.addr %s164, 8
      %s166 = scalar_lea.vmem %s0, %s165
      %s167 = smul.u32 32, %s14
      %s168 = smul.u32 32, %s14
      %p169 = scmp.lt.s32.totalorder %s168, 63
      %s170 = scalar_select %p169, %s168, 63
      %s171 = smul.addr %s170, 4
      %s172 = scalar_lea.vmem %s3, %s171
      %s173 = smul.u32 32, %s14
      %v174 = vld [vmem:[%s166] sm:$0xff]
      %v175 = vld [vmem:[%s166 + $0x8] sm:$0xff]
      %v176 = vld [vmem:[%s166 + $0x10] sm:$0xff]
      %v177 = vld [vmem:[%s166 + $0x18] sm:$0xff]
      %v178 = vld [vmem:[%s166 + $0x20] sm:$0xff]
      %v179 = vld [vmem:[%s166 + $0x28] sm:$0xff]
      %v180 = vld [vmem:[%s166 + $0x30] sm:$0xff]
      %v181 = vld [vmem:[%s166 + $0x38] sm:$0xff]
      %v182 = vld [vmem:[%s166 + $0x40] sm:$0xff]
      %v183 = vld [vmem:[%s166 + $0x48] sm:$0xff]
      %v184 = vld [vmem:[%s166 + $0x50] sm:$0xff]
      %v185 = vld [vmem:[%s166 + $0x58] sm:$0xff]
      %v186 = vld [vmem:[%s166 + $0x60] sm:$0xff]
      %v187 = vld [vmem:[%s166 + $0x68] sm:$0xff]
      %v188 = vld [vmem:[%s166 + $0x70] sm:$0xff]
      %v189 = vld [vmem:[%s166 + $0x78] sm:$0xff]
      %v190 = vld [vmem:[%s166 + $0x80] sm:$0xff]
      %v191 = vld [vmem:[%s166 + $0x88] sm:$0xff]
      %v192 = vld [vmem:[%s166 + $0x90] sm:$0xff]
      %v193 = vld [vmem:[%s166 + $0x98] sm:$0xff]
      %v194 = vld [vmem:[%s166 + $0xa0] sm:$0xff]
      %v195 = vld [vmem:[%s166 + $0xa8] sm:$0xff]
      %v196 = vld [vmem:[%s166 + $0xb0] sm:$0xff]
      %v197 = vld [vmem:[%s166 + $0xb8] sm:$0xff]
      %v198 = vld [vmem:[%s166 + $0xc0] sm:$0xff]
      %v199 = vld [vmem:[%s166 + $0xc8] sm:$0xff]
      %v200 = vld [vmem:[%s166 + $0xd0] sm:$0xff]
      %v201 = vld [vmem:[%s166 + $0xd8] sm:$0xff]
      %v202 = vld [vmem:[%s166 + $0xe0] sm:$0xff]
      %v203 = vld [vmem:[%s166 + $0xe8] sm:$0xff]
      %v204 = vld [vmem:[%s166 + $0xf0] sm:$0xff]
      %v205 = vld [vmem:[%s166 + $0xf8] sm:$0xff]
      %v206 = vld [vmem:[%s1] sm:$0x1]
      %v208 = vperm.slane %v206, 0
      %v210 = vmul.f32 %v174, %v208
      %v211 = vmul.f32 %v175, %v208
      %v212 = vmul.f32 %v176, %v208
      %v213 = vmul.f32 %v177, %v208
      %v214 = vmul.f32 %v178, %v208
      %v215 = vmul.f32 %v179, %v208
      %v216 = vmul.f32 %v180, %v208
      %v217 = vmul.f32 %v181, %v208
      %v218 = vmul.f32 %v182, %v208
      %v219 = vmul.f32 %v183, %v208
      %v220 = vmul.f32 %v184, %v208
      %v221 = vmul.f32 %v185, %v208
      %v222 = vmul.f32 %v186, %v208
      %v223 = vmul.f32 %v187, %v208
      %v224 = vmul.f32 %v188, %v208
      %v225 = vmul.f32 %v189, %v208
      %v226 = vmul.f32 %v190, %v208
      %v227 = vmul.f32 %v191, %v208
      %v228 = vmul.f32 %v192, %v208
      %v229 = vmul.f32 %v193, %v208
      %v230 = vmul.f32 %v194, %v208
      %v231 = vmul.f32 %v195, %v208
      %v232 = vmul.f32 %v196, %v208
      %v233 = vmul.f32 %v197, %v208
      %v234 = vmul.f32 %v198, %v208
      %v235 = vmul.f32 %v199, %v208
      %v236 = vmul.f32 %v200, %v208
      %v237 = vmul.f32 %v201, %v208
      %v238 = vmul.f32 %v202, %v208
      %v239 = vmul.f32 %v203, %v208
      %v240 = vmul.f32 %v204, %v208
      %v241 = vmul.f32 %v205, %v208
      %v242 = vld [vmem:[%s2] sm:$0x1]
      %v244 = vperm.slane %v242, 0
      %v246 = vadd.f32 %v210, %v244
      %v247 = vadd.f32 %v211, %v244
      %v248 = vadd.f32 %v212, %v244
      %v249 = vadd.f32 %v213, %v244
      %v250 = vadd.f32 %v214, %v244
      %v251 = vadd.f32 %v215, %v244
      %v252 = vadd.f32 %v216, %v244
      %v253 = vadd.f32 %v217, %v244
      %v254 = vadd.f32 %v218, %v244
      %v255 = vadd.f32 %v219, %v244
      %v256 = vadd.f32 %v220, %v244
      %v257 = vadd.f32 %v221, %v244
      %v258 = vadd.f32 %v222, %v244
      %v259 = vadd.f32 %v223, %v244
      %v260 = vadd.f32 %v224, %v244
      %v261 = vadd.f32 %v225, %v244
      %v262 = vadd.f32 %v226, %v244
      %v263 = vadd.f32 %v227, %v244
      %v264 = vadd.f32 %v228, %v244
      %v265 = vadd.f32 %v229, %v244
      %v266 = vadd.f32 %v230, %v244
      %v267 = vadd.f32 %v231, %v244
      %v268 = vadd.f32 %v232, %v244
      %v269 = vadd.f32 %v233, %v244
      %v270 = vadd.f32 %v234, %v244
      %v271 = vadd.f32 %v235, %v244
      %v272 = vadd.f32 %v236, %v244
      %v273 = vadd.f32 %v237, %v244
      %v274 = vadd.f32 %v238, %v244
      %v275 = vadd.f32 %v239, %v244
      %v276 = vadd.f32 %v240, %v244
      %v277 = vadd.f32 %v241, %v244
      %v278 = vmax.f32 %v246, 0.0
      %v279 = vmax.f32 %v247, 0.0
      %v280 = vmax.f32 %v248, 0.0
      %v281 = vmax.f32 %v249, 0.0
      %v282 = vmax.f32 %v250, 0.0
      %v283 = vmax.f32 %v251, 0.0
      %v284 = vmax.f32 %v252, 0.0
      %v285 = vmax.f32 %v253, 0.0
      %v286 = vmax.f32 %v254, 0.0
      %v287 = vmax.f32 %v255, 0.0
      %v288 = vmax.f32 %v256, 0.0
      %v289 = vmax.f32 %v257, 0.0
      %v290 = vmax.f32 %v258, 0.0
      %v291 = vmax.f32 %v259, 0.0
      %v292 = vmax.f32 %v260, 0.0
      %v293 = vmax.f32 %v261, 0.0
      %v294 = vmax.f32 %v262, 0.0
      %v295 = vmax.f32 %v263, 0.0
      %v296 = vmax.f32 %v264, 0.0
      %v297 = vmax.f32 %v265, 0.0
      %v298 = vmax.f32 %v266, 0.0
      %v299 = vmax.f32 %v267, 0.0
      %v300 = vmax.f32 %v268, 0.0
      %v301 = vmax.f32 %v269, 0.0
      %v302 = vmax.f32 %v270, 0.0
      %v303 = vmax.f32 %v271, 0.0
      %v304 = vmax.f32 %v272, 0.0
      %v305 = vmax.f32 %v273, 0.0
      %v306 = vmax.f32 %v274, 0.0
      %v307 = vmax.f32 %v275, 0.0
      %v308 = vmax.f32 %v276, 0.0
      %v309 = vmax.f32 %v277, 0.0
      %v310 = vpack.c.bf16 %v278, %v278
      %v311 = vpack.c.bf16 %v279, %v279
      %v312 = vpack.c.bf16 %v280, %v280
      %v313 = vpack.c.bf16 %v281, %v281
      %v314 = vpack.c.bf16 %v282, %v282
      %v315 = vpack.c.bf16 %v283, %v283
      %v316 = vpack.c.bf16 %v284, %v284
      %v317 = vpack.c.bf16 %v285, %v285
      %v318 = vpack.c.bf16 %v286, %v286
      %v319 = vpack.c.bf16 %v287, %v287
      %v320 = vpack.c.bf16 %v288, %v288
      %v321 = vpack.c.bf16 %v289, %v289
      %v322 = vpack.c.bf16 %v290, %v290
      %v323 = vpack.c.bf16 %v291, %v291
      %v324 = vpack.c.bf16 %v292, %v292
      %v325 = vpack.c.bf16 %v293, %v293
      %v326 = vpack.c.bf16 %v294, %v294
      %v327 = vpack.c.bf16 %v295, %v295
      %v328 = vpack.c.bf16 %v296, %v296
      %v329 = vpack.c.bf16 %v297, %v297
      %v330 = vpack.c.bf16 %v298, %v298
      %v331 = vpack.c.bf16 %v299, %v299
      %v332 = vpack.c.bf16 %v300, %v300
      %v333 = vpack.c.bf16 %v301, %v301
      %v334 = vpack.c.bf16 %v302, %v302
      %v335 = vpack.c.bf16 %v303, %v303
      %v336 = vpack.c.bf16 %v304, %v304
      %v337 = vpack.c.bf16 %v305, %v305
      %v338 = vpack.c.bf16 %v306, %v306
      %v339 = vpack.c.bf16 %v307, %v307
      %v340 = vpack.c.bf16 %v308, %v308
      %v341 = vpack.c.bf16 %v309, %v309
      %342 = vst [vmem:[%s172] sm:$0xf] %v310
      %343 = vst [vmem:[%s172 + $0x4] sm:$0xf] %v311
      %344 = vst [vmem:[%s172 + $0x8] sm:$0xf] %v312
      %345 = vst [vmem:[%s172 + $0xc] sm:$0xf] %v313
      %346 = vst [vmem:[%s172 + $0x10] sm:$0xf] %v314
      %347 = vst [vmem:[%s172 + $0x14] sm:$0xf] %v315
      %348 = vst [vmem:[%s172 + $0x18] sm:$0xf] %v316
      %349 = vst [vmem:[%s172 + $0x1c] sm:$0xf] %v317
      %350 = vst [vmem:[%s172 + $0x20] sm:$0xf] %v318
      %351 = vst [vmem:[%s172 + $0x24] sm:$0xf] %v319
      %352 = vst [vmem:[%s172 + $0x28] sm:$0xf] %v320
      %353 = vst [vmem:[%s172 + $0x2c] sm:$0xf] %v321
      %354 = vst [vmem:[%s172 + $0x30] sm:$0xf] %v322
      %355 = vst [vmem:[%s172 + $0x34] sm:$0xf] %v323
      %356 = vst [vmem:[%s172 + $0x38] sm:$0xf] %v324
      %357 = vst [vmem:[%s172 + $0x3c] sm:$0xf] %v325
      %358 = vst [vmem:[%s172 + $0x40] sm:$0xf] %v326
      %359 = vst [vmem:[%s172 + $0x44] sm:$0xf] %v327
      %360 = vst [vmem:[%s172 + $0x48] sm:$0xf] %v328
      %361 = vst [vmem:[%s172 + $0x4c] sm:$0xf] %v329
      %362 = vst [vmem:[%s172 + $0x50] sm:$0xf] %v330
      %363 = vst [vmem:[%s172 + $0x54] sm:$0xf] %v331
      %364 = vst [vmem:[%s172 + $0x58] sm:$0xf] %v332
      %365 = vst [vmem:[%s172 + $0x5c] sm:$0xf] %v333
      %366 = vst [vmem:[%s172 + $0x60] sm:$0xf] %v334
      %367 = vst [vmem:[%s172 + $0x64] sm:$0xf] %v335
      %368 = vst [vmem:[%s172 + $0x68] sm:$0xf] %v336
      %369 = vst [vmem:[%s172 + $0x6c] sm:$0xf] %v337
      %370 = vst [vmem:[%s172 + $0x70] sm:$0xf] %v338
      %371 = vst [vmem:[%s172 + $0x74] sm:$0xf] %v339
      %372 = vst [vmem:[%s172 + $0x78] sm:$0xf] %v340
      %373 = vst [vmem:[%s172 + $0x7c] sm:$0xf] %v341
      %s374 = smul.u32 32, %s14
      %p375 = scmp.lt.s32.totalorder %s374, 63
      %s376 = scalar_select %p375, %s374, 63
      %s377 = smul.addr %s376, 4
      %s378 = scalar_lea.vmem %s3, %s377
      // Predicated region
      $region33: #{bottleneck_psp.8} parent=31 // pred_check
        %p379 = pneg %p100
      $region34: #{bottleneck_psp.8} parent=31 // pred_check_branch
        %381 = sbr.rel (%p379) target = $region36
      $region35: #{bottleneck_psp.8} parent=31 // pred_region
        %s382 = smul.u32 32, %s14
      $region36: #{bottleneck_psp.8} parent=31 // pred_fallthru
        _
    $region32: #{bottleneck_psp.8} parent=5 // pred_fallthru
      _
    %p383 = scmp.le.s32.totalorder 2, %s9
    // Predicated region
    $region37: #{bottleneck_psp.8} parent=5 // pred_check
      %p384 = pneg %p383
    $region38: #{bottleneck_psp.8} parent=5 // pred_check_branch
      %386 = sbr.rel (%p384) target = $region40
    $region39: #{bottleneck_psp.8} parent=5 // pred_region
      %s387 = ssub.s32 %s9, 2
      // Predicated region
      $region41: #{bottleneck_psp.8} parent=39 // pred_check
        %p388 = pneg %p106
      $region42: #{bottleneck_psp.8} parent=39 // pred_check_branch
        %390 = sbr.rel (%p388) target = $region44
      $region43: #{bottleneck_psp.8} parent=39 // pred_region
        %s391 = smul.u32 32, %s15
        %p392 = scmp.lt.s32.totalorder %s391, 63
        %s393 = scalar_select %p392, %s391, 63
        %s394 = smul.addr %s393, 4
        %s395 = scalar_lea.vmem %s3, %s394
      $region44: #{bottleneck_psp.8} parent=39 // pred_fallthru
        _
    $region40: #{bottleneck_psp.8} parent=5 // pred_fallthru
      _
  $region6: #{bottleneck_psp.8} parent=0 // loop_footer
    %s13 = sadd.s32 1, %s9
  $region7: #{bottleneck_psp.8} parent=0 // loop_footer_branch
    %8 = sbr.rel target = $region3
  $region8: #{bottleneck_psp.8} parent=0 // loop_exit
    _

// kernel: bottleneck_psp.7
$region0: #{bottleneck_psp.7}
  #allocation0 [shape = 'u32[]', space=smem, size = 0x4, offset = 0x4, fixed_abs, tag = 'smem constant byte address 0x4 - core index']
  #allocation1 [shape = 'u32[72,128]{1,0:T(1,128)}', space=vmem, size = 0x9000, scoped, tag = 'internal scratch']
  #allocation2 [shape = 'f32[256,128]{1,0:T(8,128)}', space=vmem, size = 0x20000, scoped, tag = 'scratch operand']
  %s0 = inlined_call_operand.vmem [shape: bf16[1,512,128], index: 0, kind: input, shape index: {}]
  %s1 = inlined_call_operand.vmem [shape: bf16[1,128,128], index: 1, kind: input, shape index: {}]
  %s2 = inlined_call_operand.vmem [shape: f32[512,128], index: 2, kind: output, shape index: {0}]
  %s3 = inlined_call_operand.vmem [shape: f32[1,128], index: 3, kind: output, shape index: {1}]
  %s4 = inlined_call_operand.vmem [shape: f32[1,128], index: 4, kind: output, shape index: {2}]
  %5 = xla_tuple %s2, %s3, %s4
  %s6 = sld [smem:[#allocation0]]
  $region69: #{bottleneck_psp.7} parent=0
    _
  %s8 = ssub.s32 1, %s6
  %s9 = scalar_select 0, %s8, %s6
  loop: start=0, step=1, limit=4
  $region2: #{bottleneck_psp.7} parent=0 // loop_pre_header
    _
  $region3: #{bottleneck_psp.7} parent=0 // loop_header
    %s11 = sphi 0, %s15
    %p12 = scmp.ge.s32.totalorder %s11, 4
    %s18 = sphi 0, %s30
    %s19 = sphi 0, %s26
    %s20 = sphi 0, %s18
    %s21 = sphi 0, %s19
    %s22 = sphi 0, %s20
    %s23 = sphi 0, %s21
    %s35 = sphi 0, %s37
    %s38 = sphi 0, %s35
    %s39 = sphi 0, %s38
    %s55 = sphi 0, %s39
    %s61 = sphi 0, %s63
    %s64 = sphi 0, %s61
    %s65 = sphi 0, %s64
    %s81 = sphi 0, %s65
    %s87 = sphi 0, %s89
    %s90 = sphi 0, %s87
    %s91 = sphi 0, %s90
    %s107 = sphi 0, %s91
    %s111 = sphi 0, %s111
    %s113 = sphi 0, %s111
    %s114 = sphi 0, %s113
    %s128 = sphi 0, %s114
    %s132 = sphi 0, %s132
    %s134 = sphi 0, %s132
    %s135 = sphi 0, %s134
    %s149 = sphi 0, %s135
  $region4: #{bottleneck_psp.7} parent=0 // loop_header_branch
    %14 = sbr.rel (%p12) target = $region8
  $region5: #{bottleneck_psp.7} parent=0 // loop_body
    %s16 = ssub.s32 %s11, 1
    %s17 = ssub.s32 %s11, 2
    %s24 = sadd.s32 1, %s19
    %p25 = scmp.ge.s32.totalorder %s24, 1
    %s26 = scalar_select %p25, 0, %s24
    %s27 = sadd.s32 1, %s18
    %s28 = scalar_select %p25, %s27, %s18
    %p29 = scmp.ge.s32.totalorder %s28, 2
    %s30 = scalar_select %p29, 0, %s28
    %s31 = ssub.s32 %s19, %s26
    %s32 = ssub.s32 %s18, %s30
    %s33 = sor.u32 %s31, %s32
    %p34 = scmp.eq.s32.totalorder %s33, 0
    %s36 = sadd.s32 %s35, 1
    %s37 = scalar_select %p34, %s35, %s36
    %p40 = pneg %p34
    %p41 = scmp.eq.s32.totalorder %s11, 1
    %p42 = por %p40, %p41
    %p43 = scmp.ne.s32.totalorder %s35, %s38
    %p44 = scmp.eq.s32.totalorder %s11, 0
    %p45 = por %p43, %p44
    %p46 = scmp.ne.s32.totalorder %s35, %s38
    %p47 = scmp.eq.s32.totalorder %s16, 1
    %p48 = por %p46, %p47
    %p49 = scmp.ne.s32.totalorder %s38, %s39
    %p50 = scmp.eq.s32.totalorder %s16, 0
    %p51 = por %p49, %p50
    %p52 = scmp.ne.s32.totalorder %s38, %s39
    %p53 = scmp.eq.s32.totalorder %s17, 1
    %p54 = por %p52, %p53
    %p56 = scmp.ne.s32.totalorder %s39, %s55
    %p57 = scmp.eq.s32.totalorder %s17, 0
    %p58 = por %p56, %p57
    %s59 = ssub.s32 %s19, %s26
    %p60 = scmp.eq.s32.totalorder %s59, 0
    %s62 = sadd.s32 %s61, 1
    %s63 = scalar_select %p60, %s61, %s62
    %p66 = pneg %p60
    %p67 = scmp.eq.s32.totalorder %s11, 1
    %p68 = por %p66, %p67
    %p69 = scmp.ne.s32.totalorder %s61, %s64
    %p70 = scmp.eq.s32.totalorder %s11, 0
    %p71 = por %p69, %p70
    %p72 = scmp.ne.s32.totalorder %s61, %s64
    %p73 = scmp.eq.s32.totalorder %s16, 1
    %p74 = por %p72, %p73
    %p75 = scmp.ne.s32.totalorder %s64, %s65
    %p76 = scmp.eq.s32.totalorder %s16, 0
    %p77 = por %p75, %p76
    %p78 = scmp.ne.s32.totalorder %s64, %s65
    %p79 = scmp.eq.s32.totalorder %s17, 1
    %p80 = por %p78, %p79
    %p82 = scmp.ne.s32.totalorder %s65, %s81
    %p83 = scmp.eq.s32.totalorder %s17, 0
    %p84 = por %p82, %p83
    %s85 = ssub.s32 %s18, %s30
    %p86 = scmp.eq.s32.totalorder %s85, 0
    %s88 = sadd.s32 %s87, 1
    %s89 = scalar_select %p86, %s87, %s88
    %p92 = pneg %p86
    %p93 = scmp.eq.s32.totalorder %s11, 1
    %p94 = por %p92, %p93
    %p95 = scmp.ne.s32.totalorder %s87, %s90
    %p96 = scmp.eq.s32.totalorder %s11, 0
    %p97 = por %p95, %p96
    %p98 = scmp.ne.s32.totalorder %s87, %s90
    %p99 = scmp.eq.s32.totalorder %s16, 1
    %p100 = por %p98, %p99
    %p101 = scmp.ne.s32.totalorder %s90, %s91
    %p102 = scmp.eq.s32.totalorder %s16, 0
    %p103 = por %p101, %p102
    %p104 = scmp.ne.s32.totalorder %s90, %s91
    %p105 = scmp.eq.s32.totalorder %s17, 1
    %p106 = por %p104, %p105
    %p108 = scmp.ne.s32.totalorder %s91, %s107
    %p109 = scmp.eq.s32.totalorder %s17, 0
    %p110 = por %p108, %p109
    %s112 = sadd.s32 %s111, 1
    %p115 = scmp.eq.s32.totalorder %s11, 1
    %p116 = scmp.ne.s32.totalorder %s111, %s113
    %p117 = scmp.eq.s32.totalorder %s11, 0
    %p118 = por %p116, %p117
    %p119 = scmp.ne.s32.totalorder %s111, %s113
    %p120 = scmp.eq.s32.totalorder %s16, 1
    %p121 = por %p119, %p120
    %p122 = scmp.ne.s32.totalorder %s113, %s114
    %p123 = scmp.eq.s32.totalorder %s16, 0
    %p124 = por %p122, %p123
    %p125 = scmp.ne.s32.totalorder %s113, %s114
    %p126 = scmp.eq.s32.totalorder %s17, 1
    %p127 = por %p125, %p126
    %p129 = scmp.ne.s32.totalorder %s114, %s128
    %p130 = scmp.eq.s32.totalorder %s17, 0
    %p131 = por %p129, %p130
    %s133 = sadd.s32 %s132, 1
    %p136 = scmp.eq.s32.totalorder %s11, 1
    %p137 = scmp.ne.s32.totalorder %s132, %s134
    %p138 = scmp.eq.s32.totalorder %s11, 0
    %p139 = por %p137, %p138
    %p140 = scmp.ne.s32.totalorder %s132, %s134
    %p141 = scmp.eq.s32.totalorder %s16, 1
    %p142 = por %p140, %p141
    %p143 = scmp.ne.s32.totalorder %s134, %s135
    %p144 = scmp.eq.s32.totalorder %s16, 0
    %p145 = por %p143, %p144
    %p146 = scmp.ne.s32.totalorder %s134, %s135
    %p147 = scmp.eq.s32.totalorder %s17, 1
    %p148 = por %p146, %p147
    %p150 = scmp.ne.s32.totalorder %s135, %s149
    %p151 = scmp.eq.s32.totalorder %s17, 0
    %p152 = por %p150, %p151
    %p153 = scmp.le.s32.totalorder 1, %s11
    %p154 = scmp.lt.s32.totalorder %s11, 3
    %p155 = pnand %p153, %p154
    %p156 = pneg %p155
    // Predicated region
    $region9: #{bottleneck_psp.7} parent=5 // pred_check
      _
    $region10: #{bottleneck_psp.7} parent=5 // pred_check_branch
      %158 = sbr.rel (%p155) target = $region12
    $region11: #{bottleneck_psp.7} parent=5 // pred_region
      %s159 = ssub.s32 %s11, 1
      // Predicated region
      $region13: #{bottleneck_psp.7} parent=11 // pred_check
        %p160 = pneg %p77
      $region14: #{bottleneck_psp.7} parent=11 // pred_check_branch
        %162 = sbr.rel (%p160) target = $region16
      $region15: #{bottleneck_psp.7} parent=11 // pred_region
        %p163 = scmp.lt.s32.totalorder %s21, 0
        %s164 = scalar_select %p163, %s21, 0
        %s165 = smul.addr %s164, 16
        %s166 = smul.addr %s165, 4
        %s167 = scalar_lea.vmem %s1, %s166
      $region16: #{bottleneck_psp.7} parent=11 // pred_fallthru
        _
    $region12: #{bottleneck_psp.7} parent=5 // pred_fallthru
      _
    %p168 = scmp.lt.s32.totalorder %s11, 2
    // Predicated region
    $region17: #{bottleneck_psp.7} parent=5 // pred_check
      %p169 = pneg %p168
    $region18: #{bottleneck_psp.7} parent=5 // pred_check_branch
      %171 = sbr.rel (%p169) target = $region20
    $region19: #{bottleneck_psp.7} parent=5 // pred_region
      // Predicated region
      $region21: #{bottleneck_psp.7} parent=19 // pred_check
        %p172 = pneg %p45
      $region22: #{bottleneck_psp.7} parent=19 // pred_check_branch
        %174 = sbr.rel (%p172) target = $region24
      $region23: #{bottleneck_psp.7} parent=19 // pred_region
        %s175 = smul.u32 32, %s18
        %p176 = scmp.lt.s32.totalorder %s19, 0
        %s177 = scalar_select %p176, %s19, 0
        %p178 = scmp.lt.s32.totalorder %s175, 63
        %s179 = scalar_select %p178, %s175, 63
        %s180 = smul.addr %s177, 64
        %s181 = sadd.s32 %s179, %s180
        %s182 = smul.addr %s181, 4
        %s183 = scalar_lea.vmem %s0, %s182
        %s184 = smul.u32 32, %s18
      $region24: #{bottleneck_psp.7} parent=19 // pred_fallthru
        _
    $region20: #{bottleneck_psp.7} parent=5 // pred_fallthru
      _
    %p185 = scmp.le.s32.totalorder 1, %s11
    %p186 = scmp.lt.s32.totalorder %s11, 3
    %p187 = pnand %p185, %p186
    %p188 = pneg %p187
    // Predicated region
    $region25: #{bottleneck_psp.7} parent=5 // pred_check
      _
    $region26: #{bottleneck_psp.7} parent=5 // pred_check_branch
      %190 = sbr.rel (%p187) target = $region28
    $region27: #{bottleneck_psp.7} parent=5 // pred_region
      %s191 = ssub.s32 %s11, 1
      %s192 = smul.u32 32, %s20
      %p193 = scmp.lt.s32.totalorder %s21, 0
      %s194 = scalar_select %p193, %s21, 0
      %p195 = scmp.lt.s32.totalorder %s192, 63
      %s196 = scalar_select %p195, %s192, 63
      %s197 = smul.addr %s194, 64
      %s198 = sadd.s32 %s196, %s197
      %s199 = smul.addr %s198, 4
      %s200 = scalar_lea.vmem %s0, %s199
      %p201 = pneg %p51
      %p202 = pneg %p48
      %p203 = scmp.lt.s32.totalorder %s21, 0
      %s204 = scalar_select %p203, %s21, 0
      %s205 = smul.addr %s204, 16
      %s206 = smul.addr %s205, 4
      %s207 = scalar_lea.vmem %s1, %s206
      %p208 = pneg %p77
      %p209 = pneg %p74
      %p210 = pneg %p103
      %p211 = pneg %p100
      %s212 = smul.u32 32, %s20
      %p213 = scmp.lt.s32.totalorder %s212, 63
      %s214 = scalar_select %p213, %s212, 63
      %s215 = smul.addr %s214, 8
      %s216 = scalar_lea.vmem %s2, %s215
      %p217 = pneg %p124
      %p218 = pneg %p121
      %p219 = pneg %p145
      %p220 = pneg %p142
      %s221 = smul.u32 32, %s20
      %p222 = scmp.lt.s32.totalorder %s21, 0
      %s223 = scalar_select %p222, %s21, 0
      %p224 = scmp.lt.s32.totalorder %s221, 63
      %s225 = scalar_select %p224, %s221, 63
      %s226 = smul.addr %s223, 64
      %s227 = sadd.s32 %s225, %s226
      %s228 = smul.addr %s227, 4
      %s229 = scalar_lea.vmem %s0, %s228
      %s230 = smul.u32 32, %s20
      %p231 = scmp.lt.s32.totalorder %s21, 0
      %s232 = scalar_select %p231, %s21, 0
      %s233 = smul.addr %s232, 16
      %s234 = smul.addr %s233, 4
      %s235 = scalar_lea.vmem %s1, %s234
      %s236 = smul.u32 32, %s20
      %p237 = scmp.lt.s32.totalorder %s236, 63
      %s238 = scalar_select %p237, %s236, 63
      %s239 = smul.addr %s238, 8
      %s240 = scalar_lea.vmem %s2, %s239
      %s241 = smul.u32 32, %s20
      %p242 = scmp.eq.s32.totalorder %s21, 0
      // Predicated region
      $region29: #{bottleneck_psp.7} parent=27 // pred_check
        %p243 = pneg %p242
      $region30: #{bottleneck_psp.7} parent=27 // pred_check_branch
        %245 = sbr.rel (%p243) target = $region32
      $region31: #{bottleneck_psp.7} parent=27 // pred_region
        %246 = vst [vmem:[#allocation2] sm:$0xff] 0.0
        %247 = vst [vmem:[#allocation2 + $0x8] sm:$0xff] 0.0
        %248 = vst [vmem:[#allocation2 + $0x10] sm:$0xff] 0.0
        %249 = vst [vmem:[#allocation2 + $0x18] sm:$0xff] 0.0
        %250 = vst [vmem:[#allocation2 + $0x20] sm:$0xff] 0.0
        %251 = vst [vmem:[#allocation2 + $0x28] sm:$0xff] 0.0
        %252 = vst [vmem:[#allocation2 + $0x30] sm:$0xff] 0.0
        %253 = vst [vmem:[#allocation2 + $0x38] sm:$0xff] 0.0
        %254 = vst [vmem:[#allocation2 + $0x40] sm:$0xff] 0.0
        %255 = vst [vmem:[#allocation2 + $0x48] sm:$0xff] 0.0
        %256 = vst [vmem:[#allocation2 + $0x50] sm:$0xff] 0.0
        %257 = vst [vmem:[#allocation2 + $0x58] sm:$0xff] 0.0
        %258 = vst [vmem:[#allocation2 + $0x60] sm:$0xff] 0.0
        %259 = vst [vmem:[#allocation2 + $0x68] sm:$0xff] 0.0
        %260 = vst [vmem:[#allocation2 + $0x70] sm:$0xff] 0.0
        %261 = vst [vmem:[#allocation2 + $0x78] sm:$0xff] 0.0
        %262 = vst [vmem:[#allocation2 + $0x80] sm:$0xff] 0.0
        %263 = vst [vmem:[#allocation2 + $0x88] sm:$0xff] 0.0
        %264 = vst [vmem:[#allocation2 + $0x90] sm:$0xff] 0.0
        %265 = vst [vmem:[#allocation2 + $0x98] sm:$0xff] 0.0
        %266 = vst [vmem:[#allocation2 + $0xa0] sm:$0xff] 0.0
        %267 = vst [vmem:[#allocation2 + $0xa8] sm:$0xff] 0.0
        %268 = vst [vmem:[#allocation2 + $0xb0] sm:$0xff] 0.0
        %269 = vst [vmem:[#allocation2 + $0xb8] sm:$0xff] 0.0
        %270 = vst [vmem:[#allocation2 + $0xc0] sm:$0xff] 0.0
        %271 = vst [vmem:[#allocation2 + $0xc8] sm:$0xff] 0.0
        %272 = vst [vmem:[#allocation2 + $0xd0] sm:$0xff] 0.0
        %273 = vst [vmem:[#allocation2 + $0xd8] sm:$0xff] 0.0
        %274 = vst [vmem:[#allocation2 + $0xe0] sm:$0xff] 0.0
        %275 = vst [vmem:[#allocation2 + $0xe8] sm:$0xff] 0.0
        %276 = vst [vmem:[#allocation2 + $0xf0] sm:$0xff] 0.0
        %277 = vst [vmem:[#allocation2 + $0xf8] sm:$0xff] 0.0
      $region32: #{bottleneck_psp.7} parent=27 // pred_fallthru
        _
      %p278 = scmp.eq.s32.totalorder %s20, 0
      %p279 = pnand %p278, %p242
      %p280 = pneg %p279
      // Predicated region
      $region33: #{bottleneck_psp.7} parent=27 // pred_check
        _
      $region34: #{bottleneck_psp.7} parent=27 // pred_check_branch
        %282 = sbr.rel (%p279) target = $region36
      $region35: #{bottleneck_psp.7} parent=27 // pred_region
        %283 = vst [vmem:[%s3] sm:$0x1] 0.0
        %284 = vst [vmem:[%s4] sm:$0x1] 0.0
      $region36: #{bottleneck_psp.7} parent=27 // pred_fallthru
        _
      %v285 = vld [vmem:[#allocation2] sm:$0xff]
      %v286 = vld [vmem:[#allocation2 + $0x8] sm:$0xff]
      %v287 = vld [vmem:[#allocation2 + $0x10] sm:$0xff]
      %v288 = vld [vmem:[#allocation2 + $0x18] sm:$0xff]
      %v289 = vld [vmem:[#allocation2 + $0x20] sm:$0xff]
      %v290 = vld [vmem:[#allocation2 + $0x28] sm:$0xff]
      %v291 = vld [vmem:[#allocation2 + $0x30] sm:$0xff]
      %v292 = vld [vmem:[#allocation2 + $0x38] sm:$0xff]
      %v293 = vld [vmem:[#allocation2 + $0x40] sm:$0xff]
      %v294 = vld [vmem:[#allocation2 + $0x48] sm:$0xff]
      %v295 = vld [vmem:[#allocation2 + $0x50] sm:$0xff]
      %v296 = vld [vmem:[#allocation2 + $0x58] sm:$0xff]
      %v297 = vld [vmem:[#allocation2 + $0x60] sm:$0xff]
      %v298 = vld [vmem:[#allocation2 + $0x68] sm:$0xff]
      %v299 = vld [vmem:[#allocation2 + $0x70] sm:$0xff]
      %v300 = vld [vmem:[#allocation2 + $0x78] sm:$0xff]
      %v301 = vld [vmem:[#allocation2 + $0x80] sm:$0xff]
      %v302 = vld [vmem:[#allocation2 + $0x88] sm:$0xff]
      %v303 = vld [vmem:[#allocation2 + $0x90] sm:$0xff]
      %v304 = vld [vmem:[#allocation2 + $0x98] sm:$0xff]
      %v305 = vld [vmem:[#allocation2 + $0xa0] sm:$0xff]
      %v306 = vld [vmem:[#allocation2 + $0xa8] sm:$0xff]
      %v307 = vld [vmem:[#allocation2 + $0xb0] sm:$0xff]
      %v308 = vld [vmem:[#allocation2 + $0xb8] sm:$0xff]
      %v309 = vld [vmem:[#allocation2 + $0xc0] sm:$0xff]
      %v310 = vld [vmem:[#allocation2 + $0xc8] sm:$0xff]
      %v311 = vld [vmem:[#allocation2 + $0xd0] sm:$0xff]
      %v312 = vld [vmem:[#allocation2 + $0xd8] sm:$0xff]
      %v313 = vld [vmem:[#allocation2 + $0xe0] sm:$0xff]
      %v314 = vld [vmem:[#allocation2 + $0xe8] sm:$0xff]
      %v315 = vld [vmem:[#allocation2 + $0xf0] sm:$0xff]
      %v316 = vld [vmem:[#allocation2 + $0xf8] sm:$0xff]
      %v317 = vld [vmem:[%s229] sm:$0xf]
      %v318 = vld [vmem:[%s229 + $0x4] sm:$0xf]
      %v319 = vld [vmem:[%s229 + $0x8] sm:$0xf]
      %v320 = vld [vmem:[%s229 + $0xc] sm:$0xf]
      %v321 = vld [vmem:[%s229 + $0x10] sm:$0xf]
      %v322 = vld [vmem:[%s229 + $0x14] sm:$0xf]
      %v323 = vld [vmem:[%s229 + $0x18] sm:$0xf]
      %v324 = vld [vmem:[%s229 + $0x1c] sm:$0xf]
      %v325 = vld [vmem:[%s229 + $0x20] sm:$0xf]
      %v326 = vld [vmem:[%s229 + $0x24] sm:$0xf]
      %v327 = vld [vmem:[%s229 + $0x28] sm:$0xf]
      %v328 = vld [vmem:[%s229 + $0x2c] sm:$0xf]
      %v329 = vld [vmem:[%s229 + $0x30] sm:$0xf]
      %v330 = vld [vmem:[%s229 + $0x34] sm:$0xf]
      %v331 = vld [vmem:[%s229 + $0x38] sm:$0xf]
      %v332 = vld [vmem:[%s229 + $0x3c] sm:$0xf]
      %v333 = vld [vmem:[%s229 + $0x40] sm:$0xf]
      %v334 = vld [vmem:[%s229 + $0x44] sm:$0xf]
      %v335 = vld [vmem:[%s229 + $0x48] sm:$0xf]
      %v336 = vld [vmem:[%s229 + $0x4c] sm:$0xf]
      %v337 = vld [vmem:[%s229 + $0x50] sm:$0xf]
      %v338 = vld [vmem:[%s229 + $0x54] sm:$0xf]
      %v339 = vld [vmem:[%s229 + $0x58] sm:$0xf]
      %v340 = vld [vmem:[%s229 + $0x5c] sm:$0xf]
      %v341 = vld [vmem:[%s229 + $0x60] sm:$0xf]
      %v342 = vld [vmem:[%s229 + $0x64] sm:$0xf]
      %v343 = vld [vmem:[%s229 + $0x68] sm:$0xf]
      %v344 = vld [vmem:[%s229 + $0x6c] sm:$0xf]
      %v345 = vld [vmem:[%s229 + $0x70] sm:$0xf]
      %v346 = vld [vmem:[%s229 + $0x74] sm:$0xf]
      %v347 = vld [vmem:[%s229 + $0x78] sm:$0xf]
      %v348 = vld [vmem:[%s229 + $0x7c] sm:$0xf]
      %v349 = vld [vmem:[%s235] sm:$0xf]
      %v350 = vld [vmem:[%s235 + $0x4] sm:$0xf]
      %v351 = vld [vmem:[%s235 + $0x8] sm:$0xf]
      %v352 = vld [vmem:[%s235 + $0xc] sm:$0xf]
      %v353 = vld [vmem:[%s235 + $0x10] sm:$0xf]
      %v354 = vld [vmem:[%s235 + $0x14] sm:$0xf]
      %v355 = vld [vmem:[%s235 + $0x18] sm:$0xf]
      %v356 = vld [vmem:[%s235 + $0x1c] sm:$0xf]
      %v357 = vld [vmem:[%s235 + $0x20] sm:$0xf]
      %v358 = vld [vmem:[%s235 + $0x24] sm:$0xf]
      %v359 = vld [vmem:[%s235 + $0x28] sm:$0xf]
      %v360 = vld [vmem:[%s235 + $0x2c] sm:$0xf]
      %v361 = vld [vmem:[%s235 + $0x30] sm:$0xf]
      %v362 = vld [vmem:[%s235 + $0x34] sm:$0xf]
      %v363 = vld [vmem:[%s235 + $0x38] sm:$0xf]
      %v364 = vld [vmem:[%s235 + $0x3c] sm:$0xf]
      %v397 = vunpack.c.l.b16 %v317
      %v398 = vunpack.c.l.b16 %v318
      %v399 = vunpack.c.l.b16 %v319
      %v400 = vunpack.c.l.b16 %v320
      %v401 = vunpack.c.l.b16 %v321
      %v402 = vunpack.c.l.b16 %v322
      %v403 = vunpack.c.l.b16 %v323
      %v404 = vunpack.c.l.b16 %v324
      %v405 = vunpack.c.l.b16 %v325
      %v406 = vunpack.c.l.b16 %v326
      %v407 = vunpack.c.l.b16 %v327
      %v408 = vunpack.c.l.b16 %v328
      %v409 = vunpack.c.l.b16 %v329
      %v410 = vunpack.c.l.b16 %v330
      %v411 = vunpack.c.l.b16 %v331
      %v412 = vunpack.c.l.b16 %v332
      %v413 = vunpack.c.l.b16 %v333
      %v414 = vunpack.c.l.b16 %v334
      %v415 = vunpack.c.l.b16 %v335
      %v416 = vunpack.c.l.b16 %v336
      %v417 = vunpack.c.l.b16 %v337
      %v418 = vunpack.c.l.b16 %v338
      %v419 = vunpack.c.l.b16 %v339
      %v420 = vunpack.c.l.b16 %v340
      %v421 = vunpack.c.l.b16 %v341
      %v422 = vunpack.c.l.b16 %v342
      %v423 = vunpack.c.l.b16 %v343
      %v424 = vunpack.c.l.b16 %v344
      %v425 = vunpack.c.l.b16 %v345
      %v426 = vunpack.c.l.b16 %v346
      %v427 = vunpack.c.l.b16 %v347
      %v428 = vunpack.c.l.b16 %v348
      %v429 = vpack.c.b16 %v398, %v397
      %v430 = vpack.c.b16 %v400, %v399
      %v431 = vpack.c.b16 %v402, %v401
      %v432 = vpack.c.b16 %v404, %v403
      %v433 = vpack.c.b16 %v406, %v405
      %v434 = vpack.c.b16 %v408, %v407
      %v435 = vpack.c.b16 %v410, %v409
      %v436 = vpack.c.b16 %v412, %v411
      %v437 = vpack.c.b16 %v414, %v413
      %v438 = vpack.c.b16 %v416, %v415
      %v439 = vpack.c.b16 %v418, %v417
      %v440 = vpack.c.b16 %v420, %v419
      %v441 = vpack.c.b16 %v422, %v421
      %v442 = vpack.c.b16 %v424, %v423
      %v443 = vpack.c.b16 %v426, %v425
      %v444 = vpack.c.b16 %v428, %v427
      %v477 = vunpack.c.l.b16 %v349
      %v478 = vunpack.c.l.b16 %v350
      %v479 = vunpack.c.l.b16 %v351
      %v480 = vunpack.c.l.b16 %v352
      %v481 = vunpack.c.l.b16 %v353
      %v482 = vunpack.c.l.b16 %v354
      %v483 = vunpack.c.l.b16 %v355
      %v484 = vunpack.c.l.b16 %v356
      %v485 = vunpack.c.l.b16 %v357
      %v486 = vunpack.c.l.b16 %v358
      %v487 = vunpack.c.l.b16 %v359
      %v488 = vunpack.c.l.b16 %v360
      %v489 = vunpack.c.l.b16 %v361
      %v490 = vunpack.c.l.b16 %v362
      %v491 = vunpack.c.l.b16 %v363
      %v492 = vunpack.c.l.b16 %v364
      %v493 = vpack.c.b16 %v478, %v477
      %v494 = vpack.c.b16 %v480, %v479
      %v495 = vpack.c.b16 %v482, %v481
      %v496 = vpack.c.b16 %v484, %v483
      %v497 = vpack.c.b16 %v486, %v485
      %v498 = vpack.c.b16 %v488, %v487
      %v499 = vpack.c.b16 %v490, %v489
      %v500 = vpack.c.b16 %v492, %v491
      %509 = vmatpush.bf16.msra.mxu0 %v500
      %510 = vmatpush.bf16.msra.mxu0 %v499
      %511 = vmatpush.bf16.msra.mxu0 %v498
      %512 = vmatpush.bf16.msra.mxu0 %v497
      %513 = vmatpush.bf16.msra.mxu0 %v496
      %514 = vmatpush.bf16.msra.mxu0 %v495
      %515 = vmatpush.bf16.msra.mxu0 %v494
      %516 = vmatpush.bf16.msra.mxu0 %v493
      %517 = vmatmul.bf16.gmra.mxu0 %v429
      %v518 = vpop.f32.mrf.mxu0
      %v519 = vadd.f32 0.0, %v518
      %v520 = vpop.f32.mrf.mxu0
      %v521 = vadd.f32 0.0, %v520
      %522 = vmatmul.bf16.gmra.mxu0 %v430
      %v523 = vpop.f32.mrf.mxu0
      %v524 = vadd.f32 0.0, %v523
      %v525 = vpop.f32.mrf.mxu0
      %v526 = vadd.f32 0.0, %v525
      %527 = vmatmul.bf16.gmra.mxu0 %v431
      %v528 = vpop.f32.mrf.mxu0
      %v529 = vadd.f32 0.0, %v528
      %v530 = vpop.f32.mrf.mxu0
      %v531 = vadd.f32 0.0, %v530
      %532 = vmatmul.bf16.gmra.mxu0 %v432
      %v533 = vpop.f32.mrf.mxu0
      %v534 = vadd.f32 0.0, %v533
      %v535 = vpop.f32.mrf.mxu0
      %v536 = vadd.f32 0.0, %v535
      %537 = vmatmul.bf16.gmra.mxu0 %v433
      %v538 = vpop.f32.mrf.mxu0
      %v539 = vadd.f32 0.0, %v538
      %v540 = vpop.f32.mrf.mxu0
      %v541 = vadd.f32 0.0, %v540
      %542 = vmatmul.bf16.gmra.mxu0 %v434
      %v543 = vpop.f32.mrf.mxu0
      %v544 = vadd.f32 0.0, %v543
      %v545 = vpop.f32.mrf.mxu0
      %v546 = vadd.f32 0.0, %v545
      %547 = vmatmul.bf16.gmra.mxu0 %v435
      %v548 = vpop.f32.mrf.mxu0
      %v549 = vadd.f32 0.0, %v548
      %v550 = vpop.f32.mrf.mxu0
      %v551 = vadd.f32 0.0, %v550
      %552 = vmatmul.bf16.gmra.mxu0 %v436
      %v553 = vpop.f32.mrf.mxu0
      %v554 = vadd.f32 0.0, %v553
      %v555 = vpop.f32.mrf.mxu0
      %v556 = vadd.f32 0.0, %v555
      %557 = vmatmul.bf16.gmra.mxu0 %v437
      %v558 = vpop.f32.mrf.mxu0
      %v559 = vadd.f32 0.0, %v558
      %v560 = vpop.f32.mrf.mxu0
      %v561 = vadd.f32 0.0, %v560
      %562 = vmatmul.bf16.gmra.mxu0 %v438
      %v563 = vpop.f32.mrf.mxu0
      %v564 = vadd.f32 0.0, %v563
      %v565 = vpop.f32.mrf.mxu0
      %v566 = vadd.f32 0.0, %v565
      %567 = vmatmul.bf16.gmra.mxu0 %v439
      %v568 = vpop.f32.mrf.mxu0
      %v569 = vadd.f32 0.0, %v568
      %v570 = vpop.f32.mrf.mxu0
      %v571 = vadd.f32 0.0, %v570
      %572 = vmatmul.bf16.gmra.mxu0 %v440
      %v573 = vpop.f32.mrf.mxu0
      %v574 = vadd.f32 0.0, %v573
      %v575 = vpop.f32.mrf.mxu0
      %v576 = vadd.f32 0.0, %v575
      %577 = vmatmul.bf16.gmra.mxu0 %v441
      %v578 = vpop.f32.mrf.mxu0
      %v579 = vadd.f32 0.0, %v578
      %v580 = vpop.f32.mrf.mxu0
      %v581 = vadd.f32 0.0, %v580
      %582 = vmatmul.bf16.gmra.mxu0 %v442
      %v583 = vpop.f32.mrf.mxu0
      %v584 = vadd.f32 0.0, %v583
      %v585 = vpop.f32.mrf.mxu0
      %v586 = vadd.f32 0.0, %v585
      %587 = vmatmul.bf16.gmra.mxu0 %v443
      %v588 = vpop.f32.mrf.mxu0
      %v589 = vadd.f32 0.0, %v588
      %v590 = vpop.f32.mrf.mxu0
      %v591 = vadd.f32 0.0, %v590
      %592 = vmatmul.bf16.gmra.mxu0 %v444
      %v593 = vpop.f32.mrf.mxu0
      %v594 = vadd.f32 0.0, %v593
      %v595 = vpop.f32.mrf.mxu0
      %v596 = vadd.f32 0.0, %v595
      %597 = vdwg.mxu0
      %v598 = vadd.f32 %v285, %v519
      %v599 = vadd.f32 %v286, %v521
      %v600 = vadd.f32 %v287, %v524
      %v601 = vadd.f32 %v288, %v526
      %v602 = vadd.f32 %v289, %v529
      %v603 = vadd.f32 %v290, %v531
      %v604 = vadd.f32 %v291, %v534
      %v605 = vadd.f32 %v292, %v536
      %v606 = vadd.f32 %v293, %v539
      %v607 = vadd.f32 %v294, %v541
      %v608 = vadd.f32 %v295, %v544
      %v609 = vadd.f32 %v296, %v546
      %v610 = vadd.f32 %v297, %v549
      %v611 = vadd.f32 %v298, %v551
      %v612 = vadd.f32 %v299, %v554
      %v613 = vadd.f32 %v300, %v556
      %v614 = vadd.f32 %v301, %v559
      %v615 = vadd.f32 %v302, %v561
      %v616 = vadd.f32 %v303, %v564
      %v617 = vadd.f32 %v304, %v566
      %v618 = vadd.f32 %v305, %v569
      %v619 = vadd.f32 %v306, %v571
      %v620 = vadd.f32 %v307, %v574
      %v621 = vadd.f32 %v308, %v576
      %v622 = vadd.f32 %v309, %v579
      %v623 = vadd.f32 %v310, %v581
      %v624 = vadd.f32 %v311, %v584
      %v625 = vadd.f32 %v312, %v586
      %v626 = vadd.f32 %v313, %v589
      %v627 = vadd.f32 %v314, %v591
      %v628 = vadd.f32 %v315, %v594
      %v629 = vadd.f32 %v316, %v596
      %630 = vst [vmem:[#allocation2] sm:$0xff] %v598
      %631 = vst [vmem:[#allocation2 + $0x8] sm:$0xff] %v599
      %632 = vst [vmem:[#allocation2 + $0x10] sm:$0xff] %v600
      %633 = vst [vmem:[#allocation2 + $0x18] sm:$0xff] %v601
      %634 = vst [vmem:[#allocation2 + $0x20] sm:$0xff] %v602
      %635 = vst [vmem:[#allocation2 + $0x28] sm:$0xff] %v603
      %636 = vst [vmem:[#allocation2 + $0x30] sm:$0xff] %v604
      %637 = vst [vmem:[#allocation2 + $0x38] sm:$0xff] %v605
      %638 = vst [vmem:[#allocation2 + $0x40] sm:$0xff] %v606
      %639 = vst [vmem:[#allocation2 + $0x48] sm:$0xff] %v607
      %640 = vst [vmem:[#allocation2 + $0x50] sm:$0xff] %v608
      %641 = vst [vmem:[#allocation2 + $0x58] sm:$0xff] %v609
      %642 = vst [vmem:[#allocation2 + $0x60] sm:$0xff] %v610
      %643 = vst [vmem:[#allocation2 + $0x68] sm:$0xff] %v611
      %644 = vst [vmem:[#allocation2 + $0x70] sm:$0xff] %v612
      %645 = vst [vmem:[#allocation2 + $0x78] sm:$0xff] %v613
      %646 = vst [vmem:[#allocation2 + $0x80] sm:$0xff] %v614
      %647 = vst [vmem:[#allocation2 + $0x88] sm:$0xff] %v615
      %648 = vst [vmem:[#allocation2 + $0x90] sm:$0xff] %v616
      %649 = vst [vmem:[#allocation2 + $0x98] sm:$0xff] %v617
      %650 = vst [vmem:[#allocation2 + $0xa0] sm:$0xff] %v618
      %651 = vst [vmem:[#allocation2 + $0xa8] sm:$0xff] %v619
      %652 = vst [vmem:[#allocation2 + $0xb0] sm:$0xff] %v620
      %653 = vst [vmem:[#allocation2 + $0xb8] sm:$0xff] %v621
      %654 = vst [vmem:[#allocation2 + $0xc0] sm:$0xff] %v622
      %655 = vst [vmem:[#allocation2 + $0xc8] sm:$0xff] %v623
      %656 = vst [vmem:[#allocation2 + $0xd0] sm:$0xff] %v624
      %657 = vst [vmem:[#allocation2 + $0xd8] sm:$0xff] %v625
      %658 = vst [vmem:[#allocation2 + $0xe0] sm:$0xff] %v626
      %659 = vst [vmem:[#allocation2 + $0xe8] sm:$0xff] %v627
      %660 = vst [vmem:[#allocation2 + $0xf0] sm:$0xff] %v628
      %661 = vst [vmem:[#allocation2 + $0xf8] sm:$0xff] %v629
      // Predicated region
      $region37: #{bottleneck_psp.7} parent=27 // pred_check
        %p662 = pneg %p242
      $region38: #{bottleneck_psp.7} parent=27 // pred_check_branch
        %664 = sbr.rel (%p662) target = $region40
      $region39: #{bottleneck_psp.7} parent=27 // pred_region
        %v665 = vld [vmem:[#allocation2] sm:$0xff]
        %v666 = vld [vmem:[#allocation2 + $0x8] sm:$0xff]
        %v667 = vld [vmem:[#allocation2 + $0x10] sm:$0xff]
        %v668 = vld [vmem:[#allocation2 + $0x18] sm:$0xff]
        %v669 = vld [vmem:[#allocation2 + $0x20] sm:$0xff]
        %v670 = vld [vmem:[#allocation2 + $0x28] sm:$0xff]
        %v671 = vld [vmem:[#allocation2 + $0x30] sm:$0xff]
        %v672 = vld [vmem:[#allocation2 + $0x38] sm:$0xff]
        %v673 = vld [vmem:[#allocation2 + $0x40] sm:$0xff]
        %v674 = vld [vmem:[#allocation2 + $0x48] sm:$0xff]
        %v675 = vld [vmem:[#allocation2 + $0x50] sm:$0xff]
        %v676 = vld [vmem:[#allocation2 + $0x58] sm:$0xff]
        %v677 = vld [vmem:[#allocation2 + $0x60] sm:$0xff]
        %v678 = vld [vmem:[#allocation2 + $0x68] sm:$0xff]
        %v679 = vld [vmem:[#allocation2 + $0x70] sm:$0xff]
        %v680 = vld [vmem:[#allocation2 + $0x78] sm:$0xff]
        %v681 = vld [vmem:[#allocation2 + $0x80] sm:$0xff]
        %v682 = vld [vmem:[#allocation2 + $0x88] sm:$0xff]
        %v683 = vld [vmem:[#allocation2 + $0x90] sm:$0xff]
        %v684 = vld [vmem:[#allocation2 + $0x98] sm:$0xff]
        %v685 = vld [vmem:[#allocation2 + $0xa0] sm:$0xff]
        %v686 = vld [vmem:[#allocation2 + $0xa8] sm:$0xff]
        %v687 = vld [vmem:[#allocation2 + $0xb0] sm:$0xff]
        %v688 = vld [vmem:[#allocation2 + $0xb8] sm:$0xff]
        %v689 = vld [vmem:[#allocation2 + $0xc0] sm:$0xff]
        %v690 = vld [vmem:[#allocation2 + $0xc8] sm:$0xff]
        %v691 = vld [vmem:[#allocation2 + $0xd0] sm:$0xff]
        %v692 = vld [vmem:[#allocation2 + $0xd8] sm:$0xff]
        %v693 = vld [vmem:[#allocation2 + $0xe0] sm:$0xff]
        %v694 = vld [vmem:[#allocation2 + $0xe8] sm:$0xff]
        %v695 = vld [vmem:[#allocation2 + $0xf0] sm:$0xff]
        %v696 = vld [vmem:[#allocation2 + $0xf8] sm:$0xff]
        %697 = vst [vmem:[%s240] sm:$0xff] %v665
        %698 = vst [vmem:[%s240 + $0x8] sm:$0xff] %v666
        %699 = vst [vmem:[%s240 + $0x10] sm:$0xff] %v667
        %700 = vst [vmem:[%s240 + $0x18] sm:$0xff] %v668
        %701 = vst [vmem:[%s240 + $0x20] sm:$0xff] %v669
        %702 = vst [vmem:[%s240 + $0x28] sm:$0xff] %v670
        %703 = vst [vmem:[%s240 + $0x30] sm:$0xff] %v671
        %704 = vst [vmem:[%s240 + $0x38] sm:$0xff] %v672
        %705 = vst [vmem:[%s240 + $0x40] sm:$0xff] %v673
        %706 = vst [vmem:[%s240 + $0x48] sm:$0xff] %v674
        %707 = vst [vmem:[%s240 + $0x50] sm:$0xff] %v675
        %708 = vst [vmem:[%s240 + $0x58] sm:$0xff] %v676
        %709 = vst [vmem:[%s240 + $0x60] sm:$0xff] %v677
        %710 = vst [vmem:[%s240 + $0x68] sm:$0xff] %v678
        %711 = vst [vmem:[%s240 + $0x70] sm:$0xff] %v679
        %712 = vst [vmem:[%s240 + $0x78] sm:$0xff] %v680
        %713 = vst [vmem:[%s240 + $0x80] sm:$0xff] %v681
        %714 = vst [vmem:[%s240 + $0x88] sm:$0xff] %v682
        %715 = vst [vmem:[%s240 + $0x90] sm:$0xff] %v683
        %716 = vst [vmem:[%s240 + $0x98] sm:$0xff] %v684
        %717 = vst [vmem:[%s240 + $0xa0] sm:$0xff] %v685
        %718 = vst [vmem:[%s240 + $0xa8] sm:$0xff] %v686
        %719 = vst [vmem:[%s240 + $0xb0] sm:$0xff] %v687
        %720 = vst [vmem:[%s240 + $0xb8] sm:$0xff] %v688
        %721 = vst [vmem:[%s240 + $0xc0] sm:$0xff] %v689
        %722 = vst [vmem:[%s240 + $0xc8] sm:$0xff] %v690
        %723 = vst [vmem:[%s240 + $0xd0] sm:$0xff] %v691
        %724 = vst [vmem:[%s240 + $0xd8] sm:$0xff] %v692
        %725 = vst [vmem:[%s240 + $0xe0] sm:$0xff] %v693
        %726 = vst [vmem:[%s240 + $0xe8] sm:$0xff] %v694
        %727 = vst [vmem:[%s240 + $0xf0] sm:$0xff] %v695
        %728 = vst [vmem:[%s240 + $0xf8] sm:$0xff] %v696
        %v729 = vld [vmem:[%s3] sm:$0x1]
        %v730 = vadd.f32 %v665, %v666
        %v731 = vadd.f32 %v730, %v667
        %v732 = vadd.f32 %v731, %v668
        %v733 = vadd.f32 %v732, %v669
        %v734 = vadd.f32 %v733, %v670
        %v735 = vadd.f32 %v734, %v671
        %v736 = vadd.f32 %v735, %v672
        %v737 = vadd.f32 %v736, %v673
        %v738 = vadd.f32 %v737, %v674
        %v739 = vadd.f32 %v738, %v675
        %v740 = vadd.f32 %v739, %v676
        %v741 = vadd.f32 %v740, %v677
        %v742 = vadd.f32 %v741, %v678
        %v743 = vadd.f32 %v742, %v679
        %v744 = vadd.f32 %v743, %v680
        %v745 = vadd.f32 %v744, %v681
        %v746 = vadd.f32 %v745, %v682
        %v747 = vadd.f32 %v746, %v683
        %v748 = vadd.f32 %v747, %v684
        %v749 = vadd.f32 %v748, %v685
        %v750 = vadd.f32 %v749, %v686
        %v751 = vadd.f32 %v750, %v687
        %v752 = vadd.f32 %v751, %v688
        %v753 = vadd.f32 %v752, %v689
        %v754 = vadd.f32 %v753, %v690
        %v755 = vadd.f32 %v754, %v691
        %v756 = vadd.f32 %v755, %v692
        %v757 = vadd.f32 %v756, %v693
        %v758 = vadd.f32 %v757, %v694
        %v759 = vadd.f32 %v758, %v695
        %v760 = vadd.f32 %v759, %v696
        %v761 = vrot.slane %v760, 4
        %v762 = vadd.f32 %v760, %v761
        %v763 = vrot.slane %v762, 2
        %v764 = vadd.f32 %v762, %v763
        %v765 = vrot.slane %v764, 1
        %v766 = vadd.f32 %v764, %v765
        %v767 = vadd.f32 %v729, %v766
        %768 = vst [vmem:[%s3] sm:$0x1] %v767
        %v769 = vld [vmem:[%s4] sm:$0x1]
        %v770 = vmul.f32 %v665, %v665
        %v771 = vmul.f32 %v666, %v666
        %v772 = vmul.f32 %v667, %v667
        %v773 = vmul.f32 %v668, %v668
        %v774 = vmul.f32 %v669, %v669
        %v775 = vmul.f32 %v670, %v670
        %v776 = vmul.f32 %v671, %v671
        %v777 = vmul.f32 %v672, %v672
        %v778 = vmul.f32 %v673, %v673
        %v779 = vmul.f32 %v674, %v674
        %v780 = vmul.f32 %v675, %v675
        %v781 = vmul.f32 %v676, %v676
        %v782 = vmul.f32 %v677, %v677
        %v783 = vmul.f32 %v678, %v678
        %v784 = vmul.f32 %v679, %v679
        %v785 = vmul.f32 %v680, %v680
        %v786 = vmul.f32 %v681, %v681
        %v787 = vmul.f32 %v682, %v682
        %v788 = vmul.f32 %v683, %v683
        %v789 = vmul.f32 %v684, %v684
        %v790 = vmul.f32 %v685, %v685
        %v791 = vmul.f32 %v686, %v686
        %v792 = vmul.f32 %v687, %v687
        %v793 = vmul.f32 %v688, %v688
        %v794 = vmul.f32 %v689, %v689
        %v795 = vmul.f32 %v690, %v690
        %v796 = vmul.f32 %v691, %v691
        %v797 = vmul.f32 %v692, %v692
        %v798 = vmul.f32 %v693, %v693
        %v799 = vmul.f32 %v694, %v694
        %v800 = vmul.f32 %v695, %v695
        %v801 = vmul.f32 %v696, %v696
        %v802 = vadd.f32 %v770, %v771
        %v803 = vadd.f32 %v802, %v772
        %v804 = vadd.f32 %v803, %v773
        %v805 = vadd.f32 %v804, %v774
        %v806 = vadd.f32 %v805, %v775
        %v807 = vadd.f32 %v806, %v776
        %v808 = vadd.f32 %v807, %v777
        %v809 = vadd.f32 %v808, %v778
        %v810 = vadd.f32 %v809, %v779
        %v811 = vadd.f32 %v810, %v780
        %v812 = vadd.f32 %v811, %v781
        %v813 = vadd.f32 %v812, %v782
        %v814 = vadd.f32 %v813, %v783
        %v815 = vadd.f32 %v814, %v784
        %v816 = vadd.f32 %v815, %v785
        %v817 = vadd.f32 %v816, %v786
        %v818 = vadd.f32 %v817, %v787
        %v819 = vadd.f32 %v818, %v788
        %v820 = vadd.f32 %v819, %v789
        %v821 = vadd.f32 %v820, %v790
        %v822 = vadd.f32 %v821, %v791
        %v823 = vadd.f32 %v822, %v792
        %v824 = vadd.f32 %v823, %v793
        %v825 = vadd.f32 %v824, %v794
        %v826 = vadd.f32 %v825, %v795
        %v827 = vadd.f32 %v826, %v796
        %v828 = vadd.f32 %v827, %v797
        %v829 = vadd.f32 %v828, %v798
        %v830 = vadd.f32 %v829, %v799
        %v831 = vadd.f32 %v830, %v800
        %v832 = vadd.f32 %v831, %v801
        %v833 = vrot.slane %v832, 4
        %v834 = vadd.f32 %v832, %v833
        %v835 = vrot.slane %v834, 2
        %v836 = vadd.f32 %v834, %v835
        %v837 = vrot.slane %v836, 1
        %v838 = vadd.f32 %v836, %v837
        %v839 = vadd.f32 %v769, %v838
        %840 = vst [vmem:[%s4] sm:$0x1] %v839
      $region40: #{bottleneck_psp.7} parent=27 // pred_fallthru
        _
      %s841 = smul.u32 32, %s20
      %p842 = scmp.lt.s32.totalorder %s841, 63
      %s843 = scalar_select %p842, %s841, 63
      %s844 = smul.addr %s843, 8
      %s845 = scalar_lea.vmem %s2, %s844
      // Predicated region
      $region41: #{bottleneck_psp.7} parent=27 // pred_check
        %p846 = pneg %p100
      $region42: #{bottleneck_psp.7} parent=27 // pred_check_branch
        %848 = sbr.rel (%p846) target = $region44
      $region43: #{bottleneck_psp.7} parent=27 // pred_region
        %s849 = smul.u32 32, %s20
      $region44: #{bottleneck_psp.7} parent=27 // pred_fallthru
        _
      // Predicated region
      $region45: #{bottleneck_psp.7} parent=27 // pred_check
        %p850 = pneg %p121
      $region46: #{bottleneck_psp.7} parent=27 // pred_check_branch
        %852 = sbr.rel (%p850) target = $region48
      $region47: #{bottleneck_psp.7} parent=27 // pred_region
        _
      $region48: #{bottleneck_psp.7} parent=27 // pred_fallthru
        _
      // Predicated region
      $region49: #{bottleneck_psp.7} parent=27 // pred_check
        %p853 = pneg %p142
      $region50: #{bottleneck_psp.7} parent=27 // pred_check_branch
        %855 = sbr.rel (%p853) target = $region52
      $region51: #{bottleneck_psp.7} parent=27 // pred_region
        _
      $region52: #{bottleneck_psp.7} parent=27 // pred_fallthru
        _
      // Predicated region
      $region53: #{bottleneck_psp.7} parent=27 // pred_check
        %p856 = pneg %p121
      $region54: #{bottleneck_psp.7} parent=27 // pred_check_branch
        %858 = sbr.rel (%p856) target = $region56
      $region55: #{bottleneck_psp.7} parent=27 // pred_region
        _
      $region56: #{bottleneck_psp.7} parent=27 // pred_fallthru
        _
      // Predicated region
      $region57: #{bottleneck_psp.7} parent=27 // pred_check
        %p859 = pneg %p142
      $region58: #{bottleneck_psp.7} parent=27 // pred_check_branch
        %861 = sbr.rel (%p859) target = $region60
      $region59: #{bottleneck_psp.7} parent=27 // pred_region
        _
      $region60: #{bottleneck_psp.7} parent=27 // pred_fallthru
        _
    $region28: #{bottleneck_psp.7} parent=5 // pred_fallthru
      _
    %p862 = scmp.le.s32.totalorder 2, %s11
    // Predicated region
    $region61: #{bottleneck_psp.7} parent=5 // pred_check
      %p863 = pneg %p862
    $region62: #{bottleneck_psp.7} parent=5 // pred_check_branch
      %865 = sbr.rel (%p863) target = $region64
    $region63: #{bottleneck_psp.7} parent=5 // pred_region
      %s866 = ssub.s32 %s11, 2
      // Predicated region
      $region65: #{bottleneck_psp.7} parent=63 // pred_check
        %p867 = pneg %p106
      $region66: #{bottleneck_psp.7} parent=63 // pred_check_branch
        %869 = sbr.rel (%p867) target = $region68
      $region67: #{bottleneck_psp.7} parent=63 // pred_region
        %s870 = smul.u32 32, %s22
        %p871 = scmp.lt.s32.totalorder %s870, 63
        %s872 = scalar_select %p871, %s870, 63
        %s873 = smul.addr %s872, 8
        %s874 = scalar_lea.vmem %s2, %s873
      $region68: #{bottleneck_psp.7} parent=63 // pred_fallthru
        _
    $region64: #{bottleneck_psp.7} parent=5 // pred_fallthru
      _
  $region6: #{bottleneck_psp.7} parent=0 // loop_footer
    %s15 = sadd.s32 1, %s11
  $region7: #{bottleneck_psp.7} parent=0 // loop_footer_branch
    %10 = sbr.rel target = $region3
  $region8: #{bottleneck_psp.7} parent=0 // loop_exit
    _

// kernel: bottleneck_psp.10
$region0: #{bottleneck_psp.10}
  #allocation0 [shape = 'u32[]', space=smem, size = 0x4, offset = 0x4, fixed_abs, tag = 'smem constant byte address 0x4 - core index']
  #allocation1 [shape = 'u32[72,128]{1,0:T(1,128)}', space=vmem, size = 0x9000, scoped, tag = 'internal scratch']
  %s0 = inlined_call_operand.vmem [shape: f32[128,128], index: 0, kind: input, shape index: {}]
  %s1 = inlined_call_operand.vmem [shape: f32[1,128], index: 1, kind: input, shape index: {}]
  %s2 = inlined_call_operand.vmem [shape: f32[1,128], index: 2, kind: input, shape index: {}]
  %s3 = inlined_call_operand.vmem [shape: bf16[128,128], index: 3, kind: output, shape index: {}]
  %s4 = sld [smem:[#allocation0]]
  $region22: #{bottleneck_psp.10} parent=0
    _
  %s6 = ssub.s32 1, %s4
  %s7 = scalar_select 0, %s6, %s4
  // Predicated region
  $region2: #{bottleneck_psp.10} parent=0 // pred_check
    _
  $region3: #{bottleneck_psp.10} parent=0 // pred_check_branch
    %9 = sbr.rel (0) target = $region5
  $region4: #{bottleneck_psp.10} parent=0 // pred_region
    _
  $region5: #{bottleneck_psp.10} parent=0 // pred_fallthru
    _
  // Predicated region
  $region6: #{bottleneck_psp.10} parent=0 // pred_check
    _
  $region7: #{bottleneck_psp.10} parent=0 // pred_check_branch
    %11 = sbr.rel (0) target = $region9
  $region8: #{bottleneck_psp.10} parent=0 // pred_region
    _
  $region9: #{bottleneck_psp.10} parent=0 // pred_fallthru
    _
  // Predicated region
  $region10: #{bottleneck_psp.10} parent=0 // pred_check
    _
  $region11: #{bottleneck_psp.10} parent=0 // pred_check_branch
    %13 = sbr.rel (0) target = $region13
  $region12: #{bottleneck_psp.10} parent=0 // pred_region
    _
  $region13: #{bottleneck_psp.10} parent=0 // pred_fallthru
    _
  %v14 = vld [vmem:[%s0] sm:$0xff]
  %v15 = vld [vmem:[%s0 + $0x8] sm:$0xff]
  %v16 = vld [vmem:[%s0 + $0x10] sm:$0xff]
  %v17 = vld [vmem:[%s0 + $0x18] sm:$0xff]
  %v18 = vld [vmem:[%s0 + $0x20] sm:$0xff]
  %v19 = vld [vmem:[%s0 + $0x28] sm:$0xff]
  %v20 = vld [vmem:[%s0 + $0x30] sm:$0xff]
  %v21 = vld [vmem:[%s0 + $0x38] sm:$0xff]
  %v22 = vld [vmem:[%s0 + $0x40] sm:$0xff]
  %v23 = vld [vmem:[%s0 + $0x48] sm:$0xff]
  %v24 = vld [vmem:[%s0 + $0x50] sm:$0xff]
  %v25 = vld [vmem:[%s0 + $0x58] sm:$0xff]
  %v26 = vld [vmem:[%s0 + $0x60] sm:$0xff]
  %v27 = vld [vmem:[%s0 + $0x68] sm:$0xff]
  %v28 = vld [vmem:[%s0 + $0x70] sm:$0xff]
  %v29 = vld [vmem:[%s0 + $0x78] sm:$0xff]
  %v30 = vld [vmem:[%s1] sm:$0x1]
  %v32 = vperm.slane %v30, 0
  %v34 = vmul.f32 %v14, %v32
  %v35 = vmul.f32 %v15, %v32
  %v36 = vmul.f32 %v16, %v32
  %v37 = vmul.f32 %v17, %v32
  %v38 = vmul.f32 %v18, %v32
  %v39 = vmul.f32 %v19, %v32
  %v40 = vmul.f32 %v20, %v32
  %v41 = vmul.f32 %v21, %v32
  %v42 = vmul.f32 %v22, %v32
  %v43 = vmul.f32 %v23, %v32
  %v44 = vmul.f32 %v24, %v32
  %v45 = vmul.f32 %v25, %v32
  %v46 = vmul.f32 %v26, %v32
  %v47 = vmul.f32 %v27, %v32
  %v48 = vmul.f32 %v28, %v32
  %v49 = vmul.f32 %v29, %v32
  %v50 = vld [vmem:[%s2] sm:$0x1]
  %v52 = vperm.slane %v50, 0
  %v54 = vadd.f32 %v34, %v52
  %v55 = vadd.f32 %v35, %v52
  %v56 = vadd.f32 %v36, %v52
  %v57 = vadd.f32 %v37, %v52
  %v58 = vadd.f32 %v38, %v52
  %v59 = vadd.f32 %v39, %v52
  %v60 = vadd.f32 %v40, %v52
  %v61 = vadd.f32 %v41, %v52
  %v62 = vadd.f32 %v42, %v52
  %v63 = vadd.f32 %v43, %v52
  %v64 = vadd.f32 %v44, %v52
  %v65 = vadd.f32 %v45, %v52
  %v66 = vadd.f32 %v46, %v52
  %v67 = vadd.f32 %v47, %v52
  %v68 = vadd.f32 %v48, %v52
  %v69 = vadd.f32 %v49, %v52
  %v70 = vmax.f32 %v54, 0.0
  %v71 = vmax.f32 %v55, 0.0
  %v72 = vmax.f32 %v56, 0.0
  %v73 = vmax.f32 %v57, 0.0
  %v74 = vmax.f32 %v58, 0.0
  %v75 = vmax.f32 %v59, 0.0
  %v76 = vmax.f32 %v60, 0.0
  %v77 = vmax.f32 %v61, 0.0
  %v78 = vmax.f32 %v62, 0.0
  %v79 = vmax.f32 %v63, 0.0
  %v80 = vmax.f32 %v64, 0.0
  %v81 = vmax.f32 %v65, 0.0
  %v82 = vmax.f32 %v66, 0.0
  %v83 = vmax.f32 %v67, 0.0
  %v84 = vmax.f32 %v68, 0.0
  %v85 = vmax.f32 %v69, 0.0
  %v86 = vpack.c.bf16 %v70, %v70
  %v87 = vpack.c.bf16 %v71, %v71
  %v88 = vpack.c.bf16 %v72, %v72
  %v89 = vpack.c.bf16 %v73, %v73
  %v90 = vpack.c.bf16 %v74, %v74
  %v91 = vpack.c.bf16 %v75, %v75
  %v92 = vpack.c.bf16 %v76, %v76
  %v93 = vpack.c.bf16 %v77, %v77
  %v94 = vpack.c.bf16 %v78, %v78
  %v95 = vpack.c.bf16 %v79, %v79
  %v96 = vpack.c.bf16 %v80, %v80
  %v97 = vpack.c.bf16 %v81, %v81
  %v98 = vpack.c.bf16 %v82, %v82
  %v99 = vpack.c.bf16 %v83, %v83
  %v100 = vpack.c.bf16 %v84, %v84
  %v101 = vpack.c.bf16 %v85, %v85
  %102 = vst [vmem:[%s3] sm:$0xf] %v86
  %103 = vst [vmem:[%s3 + $0x4] sm:$0xf] %v87
  %104 = vst [vmem:[%s3 + $0x8] sm:$0xf] %v88
  %105 = vst [vmem:[%s3 + $0xc] sm:$0xf] %v89
  %106 = vst [vmem:[%s3 + $0x10] sm:$0xf] %v90
  %107 = vst [vmem:[%s3 + $0x14] sm:$0xf] %v91
  %108 = vst [vmem:[%s3 + $0x18] sm:$0xf] %v92
  %109 = vst [vmem:[%s3 + $0x1c] sm:$0xf] %v93
  %110 = vst [vmem:[%s3 + $0x20] sm:$0xf] %v94
  %111 = vst [vmem:[%s3 + $0x24] sm:$0xf] %v95
  %112 = vst [vmem:[%s3 + $0x28] sm:$0xf] %v96
  %113 = vst [vmem:[%s3 + $0x2c] sm:$0xf] %v97
  %114 = vst [vmem:[%s3 + $0x30] sm:$0xf] %v98
  %115 = vst [vmem:[%s3 + $0x34] sm:$0xf] %v99
  %116 = vst [vmem:[%s3 + $0x38] sm:$0xf] %v100
  %117 = vst [vmem:[%s3 + $0x3c] sm:$0xf] %v101
  // Predicated region
  $region14: #{bottleneck_psp.10} parent=0 // pred_check
    _
  $region15: #{bottleneck_psp.10} parent=0 // pred_check_branch
    %119 = sbr.rel (0) target = $region17
  $region16: #{bottleneck_psp.10} parent=0 // pred_region
    _
  $region17: #{bottleneck_psp.10} parent=0 // pred_fallthru
    _
  // Predicated region
  $region18: #{bottleneck_psp.10} parent=0 // pred_check
    _
  $region19: #{bottleneck_psp.10} parent=0 // pred_check_branch
    %121 = sbr.rel (0) target = $region21
  $region20: #{bottleneck_psp.10} parent=0 // pred_region
    _
  $region21: #{bottleneck_psp.10} parent=0 // pred_fallthru
    _

// kernel: bottleneck_psp.9
$region0: #{bottleneck_psp.9}
  #allocation0 [shape = 'u32[]', space=smem, size = 0x4, offset = 0x4, fixed_abs, tag = 'smem constant byte address 0x4 - core index']
  #allocation1 [shape = 'u32[72,128]{1,0:T(1,128)}', space=vmem, size = 0x9000, scoped, tag = 'internal scratch']
  #allocation2 [shape = 'f32[128,128]{1,0:T(8,128)}', space=vmem, size = 0x10000, scoped, tag = 'scratch operand']
  %s0 = inlined_call_operand.vmem [shape: bf16[9,128,128], index: 0, kind: input, shape index: {}]
  %s1 = inlined_call_operand.vmem [shape: bf16[9,128,128], index: 1, kind: input, shape index: {}]
  %s2 = inlined_call_operand.vmem [shape: f32[128,128], index: 2, kind: output, shape index: {0}]
  %s3 = inlined_call_operand.vmem [shape: f32[1,128], index: 3, kind: output, shape index: {1}]
  %s4 = inlined_call_operand.vmem [shape: f32[1,128], index: 4, kind: output, shape index: {2}]
  %5 = xla_tuple %s2, %s3, %s4
  %s6 = sld [smem:[#allocation0]]
  $region69: #{bottleneck_psp.9} parent=0
    _
  %s8 = ssub.s32 1, %s6
  %s9 = scalar_select 0, %s8, %s6
  loop: start=0, step=1, limit=11
  $region2: #{bottleneck_psp.9} parent=0 // loop_pre_header
    _
  $region3: #{bottleneck_psp.9} parent=0 // loop_header
    %s11 = sphi 0, %s15
    %p12 = scmp.ge.s32.totalorder %s11, 11
    %s18 = sphi 0, %s30
    %s19 = sphi 0, %s26
    %s20 = sphi 0, %s18
    %s21 = sphi 0, %s19
    %s22 = sphi 0, %s20
    %s23 = sphi 0, %s21
    %s35 = sphi 0, %s37
    %s38 = sphi 0, %s35
    %s39 = sphi 0, %s38
    %s55 = sphi 0, %s39
    %s61 = sphi 0, %s63
    %s64 = sphi 0, %s61
    %s65 = sphi 0, %s64
    %s81 = sphi 0, %s65
    %s87 = sphi 0, %s89
    %s90 = sphi 0, %s87
    %s91 = sphi 0, %s90
    %s107 = sphi 0, %s91
    %s111 = sphi 0, %s111
    %s113 = sphi 0, %s111
    %s114 = sphi 0, %s113
    %s128 = sphi 0, %s114
    %s132 = sphi 0, %s132
    %s134 = sphi 0, %s132
    %s135 = sphi 0, %s134
    %s149 = sphi 0, %s135
  $region4: #{bottleneck_psp.9} parent=0 // loop_header_branch
    %14 = sbr.rel (%p12) target = $region8
  $region5: #{bottleneck_psp.9} parent=0 // loop_body
    %s16 = ssub.s32 %s11, 1
    %s17 = ssub.s32 %s11, 2
    %s24 = sadd.s32 1, %s19
    %p25 = scmp.ge.s32.totalorder %s24, 9
    %s26 = scalar_select %p25, 0, %s24
    %s27 = sadd.s32 1, %s18
    %s28 = scalar_select %p25, %s27, %s18
    %p29 = scmp.ge.s32.totalorder %s28, 1
    %s30 = scalar_select %p29, 0, %s28
    %s31 = ssub.s32 %s19, %s26
    %s32 = ssub.s32 %s18, %s30
    %s33 = sor.u32 %s31, %s32
    %p34 = scmp.eq.s32.totalorder %s33, 0
    %s36 = sadd.s32 %s35, 1
    %s37 = scalar_select %p34, %s35, %s36
    %p40 = pneg %p34
    %p41 = scmp.eq.s32.totalorder %s11, 8
    %p42 = por %p40, %p41
    %p43 = scmp.ne.s32.totalorder %s35, %s38
    %p44 = scmp.eq.s32.totalorder %s11, 0
    %p45 = por %p43, %p44
    %p46 = scmp.ne.s32.totalorder %s35, %s38
    %p47 = scmp.eq.s32.totalorder %s16, 8
    %p48 = por %p46, %p47
    %p49 = scmp.ne.s32.totalorder %s38, %s39
    %p50 = scmp.eq.s32.totalorder %s16, 0
    %p51 = por %p49, %p50
    %p52 = scmp.ne.s32.totalorder %s38, %s39
    %p53 = scmp.eq.s32.totalorder %s17, 8
    %p54 = por %p52, %p53
    %p56 = scmp.ne.s32.totalorder %s39, %s55
    %p57 = scmp.eq.s32.totalorder %s17, 0
    %p58 = por %p56, %p57
    %s59 = ssub.s32 %s19, %s26
    %p60 = scmp.eq.s32.totalorder %s59, 0
    %s62 = sadd.s32 %s61, 1
    %s63 = scalar_select %p60, %s61, %s62
    %p66 = pneg %p60
    %p67 = scmp.eq.s32.totalorder %s11, 8
    %p68 = por %p66, %p67
    %p69 = scmp.ne.s32.totalorder %s61, %s64
    %p70 = scmp.eq.s32.totalorder %s11, 0
    %p71 = por %p69, %p70
    %p72 = scmp.ne.s32.totalorder %s61, %s64
    %p73 = scmp.eq.s32.totalorder %s16, 8
    %p74 = por %p72, %p73
    %p75 = scmp.ne.s32.totalorder %s64, %s65
    %p76 = scmp.eq.s32.totalorder %s16, 0
    %p77 = por %p75, %p76
    %p78 = scmp.ne.s32.totalorder %s64, %s65
    %p79 = scmp.eq.s32.totalorder %s17, 8
    %p80 = por %p78, %p79
    %p82 = scmp.ne.s32.totalorder %s65, %s81
    %p83 = scmp.eq.s32.totalorder %s17, 0
    %p84 = por %p82, %p83
    %s85 = ssub.s32 %s18, %s30
    %p86 = scmp.eq.s32.totalorder %s85, 0
    %s88 = sadd.s32 %s87, 1
    %s89 = scalar_select %p86, %s87, %s88
    %p92 = pneg %p86
    %p93 = scmp.eq.s32.totalorder %s11, 8
    %p94 = por %p92, %p93
    %p95 = scmp.ne.s32.totalorder %s87, %s90
    %p96 = scmp.eq.s32.totalorder %s11, 0
    %p97 = por %p95, %p96
    %p98 = scmp.ne.s32.totalorder %s87, %s90
    %p99 = scmp.eq.s32.totalorder %s16, 8
    %p100 = por %p98, %p99
    %p101 = scmp.ne.s32.totalorder %s90, %s91
    %p102 = scmp.eq.s32.totalorder %s16, 0
    %p103 = por %p101, %p102
    %p104 = scmp.ne.s32.totalorder %s90, %s91
    %p105 = scmp.eq.s32.totalorder %s17, 8
    %p106 = por %p104, %p105
    %p108 = scmp.ne.s32.totalorder %s91, %s107
    %p109 = scmp.eq.s32.totalorder %s17, 0
    %p110 = por %p108, %p109
    %s112 = sadd.s32 %s111, 1
    %p115 = scmp.eq.s32.totalorder %s11, 8
    %p116 = scmp.ne.s32.totalorder %s111, %s113
    %p117 = scmp.eq.s32.totalorder %s11, 0
    %p118 = por %p116, %p117
    %p119 = scmp.ne.s32.totalorder %s111, %s113
    %p120 = scmp.eq.s32.totalorder %s16, 8
    %p121 = por %p119, %p120
    %p122 = scmp.ne.s32.totalorder %s113, %s114
    %p123 = scmp.eq.s32.totalorder %s16, 0
    %p124 = por %p122, %p123
    %p125 = scmp.ne.s32.totalorder %s113, %s114
    %p126 = scmp.eq.s32.totalorder %s17, 8
    %p127 = por %p125, %p126
    %p129 = scmp.ne.s32.totalorder %s114, %s128
    %p130 = scmp.eq.s32.totalorder %s17, 0
    %p131 = por %p129, %p130
    %s133 = sadd.s32 %s132, 1
    %p136 = scmp.eq.s32.totalorder %s11, 8
    %p137 = scmp.ne.s32.totalorder %s132, %s134
    %p138 = scmp.eq.s32.totalorder %s11, 0
    %p139 = por %p137, %p138
    %p140 = scmp.ne.s32.totalorder %s132, %s134
    %p141 = scmp.eq.s32.totalorder %s16, 8
    %p142 = por %p140, %p141
    %p143 = scmp.ne.s32.totalorder %s134, %s135
    %p144 = scmp.eq.s32.totalorder %s16, 0
    %p145 = por %p143, %p144
    %p146 = scmp.ne.s32.totalorder %s134, %s135
    %p147 = scmp.eq.s32.totalorder %s17, 8
    %p148 = por %p146, %p147
    %p150 = scmp.ne.s32.totalorder %s135, %s149
    %p151 = scmp.eq.s32.totalorder %s17, 0
    %p152 = por %p150, %p151
    %p153 = scmp.le.s32.totalorder 1, %s11
    %p154 = scmp.lt.s32.totalorder %s11, 10
    %p155 = pnand %p153, %p154
    %p156 = pneg %p155
    // Predicated region
    $region9: #{bottleneck_psp.9} parent=5 // pred_check
      _
    $region10: #{bottleneck_psp.9} parent=5 // pred_check_branch
      %158 = sbr.rel (%p155) target = $region12
    $region11: #{bottleneck_psp.9} parent=5 // pred_region
      %s159 = ssub.s32 %s11, 1
    $region12: #{bottleneck_psp.9} parent=5 // pred_fallthru
      _
    %p160 = scmp.lt.s32.totalorder %s11, 9
    // Predicated region
    $region13: #{bottleneck_psp.9} parent=5 // pred_check
      %p161 = pneg %p160
    $region14: #{bottleneck_psp.9} parent=5 // pred_check_branch
      %163 = sbr.rel (%p161) target = $region16
    $region15: #{bottleneck_psp.9} parent=5 // pred_region
      // Predicated region
      $region17: #{bottleneck_psp.9} parent=15 // pred_check
        %p164 = pneg %p45
      $region18: #{bottleneck_psp.9} parent=15 // pred_check_branch
        %166 = sbr.rel (%p164) target = $region20
      $region19: #{bottleneck_psp.9} parent=15 // pred_region
        %s167 = smul.u32 16, %s18
        %p168 = scmp.lt.s32.totalorder %s19, 8
        %s169 = scalar_select %p168, %s19, 8
        %p170 = scmp.lt.s32.totalorder %s167, 15
        %s171 = scalar_select %p170, %s167, 15
        %s172 = smul.addr %s169, 16
        %s173 = sadd.s32 %s171, %s172
        %s174 = smul.addr %s173, 4
        %s175 = scalar_lea.vmem %s0, %s174
        %s176 = smul.u32 16, %s18
      $region20: #{bottleneck_psp.9} parent=15 // pred_fallthru
        _
      // Predicated region
      $region21: #{bottleneck_psp.9} parent=15 // pred_check
        %p177 = pneg %p71
      $region22: #{bottleneck_psp.9} parent=15 // pred_check_branch
        %179 = sbr.rel (%p177) target = $region24
      $region23: #{bottleneck_psp.9} parent=15 // pred_region
        %p180 = scmp.lt.s32.totalorder %s19, 8
        %s181 = scalar_select %p180, %s19, 8
        %s182 = smul.addr %s181, 16
        %s183 = smul.addr %s182, 4
        %s184 = scalar_lea.vmem %s1, %s183
      $region24: #{bottleneck_psp.9} parent=15 // pred_fallthru
        _
    $region16: #{bottleneck_psp.9} parent=5 // pred_fallthru
      _
    %p185 = scmp.le.s32.totalorder 1, %s11
    %p186 = scmp.lt.s32.totalorder %s11, 10
    %p187 = pnand %p185, %p186
    %p188 = pneg %p187
    // Predicated region
    $region25: #{bottleneck_psp.9} parent=5 // pred_check
      _
    $region26: #{bottleneck_psp.9} parent=5 // pred_check_branch
      %190 = sbr.rel (%p187) target = $region28
    $region27: #{bottleneck_psp.9} parent=5 // pred_region
      %s191 = ssub.s32 %s11, 1
      %s192 = smul.u32 16, %s20
      %p193 = scmp.lt.s32.totalorder %s21, 8
      %s194 = scalar_select %p193, %s21, 8
      %p195 = scmp.lt.s32.totalorder %s192, 15
      %s196 = scalar_select %p195, %s192, 15
      %s197 = smul.addr %s194, 16
      %s198 = sadd.s32 %s196, %s197
      %s199 = smul.addr %s198, 4
      %s200 = scalar_lea.vmem %s0, %s199
      %p201 = pneg %p51
      %p202 = pneg %p48
      %p203 = scmp.lt.s32.totalorder %s21, 8
      %s204 = scalar_select %p203, %s21, 8
      %s205 = smul.addr %s204, 16
      %s206 = smul.addr %s205, 4
      %s207 = scalar_lea.vmem %s1, %s206
      %p208 = pneg %p77
      %p209 = pneg %p74
      %p210 = pneg %p103
      %p211 = pneg %p100
      %s212 = smul.u32 16, %s20
      %p213 = scmp.lt.s32.totalorder %s212, 15
      %s214 = scalar_select %p213, %s212, 15
      %s215 = smul.addr %s214, 8
      %s216 = scalar_lea.vmem %s2, %s215
      %p217 = pneg %p124
      %p218 = pneg %p121
      %p219 = pneg %p145
      %p220 = pneg %p142
      %s221 = smul.u32 16, %s20
      %p222 = scmp.lt.s32.totalorder %s21, 8
      %s223 = scalar_select %p222, %s21, 8
      %p224 = scmp.lt.s32.totalorder %s221, 15
      %s225 = scalar_select %p224, %s221, 15
      %s226 = smul.addr %s223, 16
      %s227 = sadd.s32 %s225, %s226
      %s228 = smul.addr %s227, 4
      %s229 = scalar_lea.vmem %s0, %s228
      %s230 = smul.u32 16, %s20
      %p231 = scmp.lt.s32.totalorder %s21, 8
      %s232 = scalar_select %p231, %s21, 8
      %s233 = smul.addr %s232, 16
      %s234 = smul.addr %s233, 4
      %s235 = scalar_lea.vmem %s1, %s234
      %s236 = smul.u32 16, %s20
      %p237 = scmp.lt.s32.totalorder %s236, 15
      %s238 = scalar_select %p237, %s236, 15
      %s239 = smul.addr %s238, 8
      %s240 = scalar_lea.vmem %s2, %s239
      %s241 = smul.u32 16, %s20
      %p242 = scmp.eq.s32.totalorder %s21, 0
      // Predicated region
      $region29: #{bottleneck_psp.9} parent=27 // pred_check
        %p243 = pneg %p242
      $region30: #{bottleneck_psp.9} parent=27 // pred_check_branch
        %245 = sbr.rel (%p243) target = $region32
      $region31: #{bottleneck_psp.9} parent=27 // pred_region
        %246 = vst [vmem:[#allocation2] sm:$0xff] 0.0
        %247 = vst [vmem:[#allocation2 + $0x8] sm:$0xff] 0.0
        %248 = vst [vmem:[#allocation2 + $0x10] sm:$0xff] 0.0
        %249 = vst [vmem:[#allocation2 + $0x18] sm:$0xff] 0.0
        %250 = vst [vmem:[#allocation2 + $0x20] sm:$0xff] 0.0
        %251 = vst [vmem:[#allocation2 + $0x28] sm:$0xff] 0.0
        %252 = vst [vmem:[#allocation2 + $0x30] sm:$0xff] 0.0
        %253 = vst [vmem:[#allocation2 + $0x38] sm:$0xff] 0.0
        %254 = vst [vmem:[#allocation2 + $0x40] sm:$0xff] 0.0
        %255 = vst [vmem:[#allocation2 + $0x48] sm:$0xff] 0.0
        %256 = vst [vmem:[#allocation2 + $0x50] sm:$0xff] 0.0
        %257 = vst [vmem:[#allocation2 + $0x58] sm:$0xff] 0.0
        %258 = vst [vmem:[#allocation2 + $0x60] sm:$0xff] 0.0
        %259 = vst [vmem:[#allocation2 + $0x68] sm:$0xff] 0.0
        %260 = vst [vmem:[#allocation2 + $0x70] sm:$0xff] 0.0
        %261 = vst [vmem:[#allocation2 + $0x78] sm:$0xff] 0.0
      $region32: #{bottleneck_psp.9} parent=27 // pred_fallthru
        _
      %p262 = scmp.eq.s32.totalorder %s20, 0
      %p263 = pnand %p262, %p242
      %p264 = pneg %p263
      // Predicated region
      $region33: #{bottleneck_psp.9} parent=27 // pred_check
        _
      $region34: #{bottleneck_psp.9} parent=27 // pred_check_branch
        %266 = sbr.rel (%p263) target = $region36
      $region35: #{bottleneck_psp.9} parent=27 // pred_region
        %267 = vst [vmem:[%s3] sm:$0x1] 0.0
        %268 = vst [vmem:[%s4] sm:$0x1] 0.0
      $region36: #{bottleneck_psp.9} parent=27 // pred_fallthru
        _
      %v269 = vld [vmem:[#allocation2] sm:$0xff]
      %v270 = vld [vmem:[#allocation2 + $0x8] sm:$0xff]
      %v271 = vld [vmem:[#allocation2 + $0x10] sm:$0xff]
      %v272 = vld [vmem:[#allocation2 + $0x18] sm:$0xff]
      %v273 = vld [vmem:[#allocation2 + $0x20] sm:$0xff]
      %v274 = vld [vmem:[#allocation2 + $0x28] sm:$0xff]
      %v275 = vld [vmem:[#allocation2 + $0x30] sm:$0xff]
      %v276 = vld [vmem:[#allocation2 + $0x38] sm:$0xff]
      %v277 = vld [vmem:[#allocation2 + $0x40] sm:$0xff]
      %v278 = vld [vmem:[#allocation2 + $0x48] sm:$0xff]
      %v279 = vld [vmem:[#allocation2 + $0x50] sm:$0xff]
      %v280 = vld [vmem:[#allocation2 + $0x58] sm:$0xff]
      %v281 = vld [vmem:[#allocation2 + $0x60] sm:$0xff]
      %v282 = vld [vmem:[#allocation2 + $0x68] sm:$0xff]
      %v283 = vld [vmem:[#allocation2 + $0x70] sm:$0xff]
      %v284 = vld [vmem:[#allocation2 + $0x78] sm:$0xff]
      %v285 = vld [vmem:[%s229] sm:$0xf]
      %v286 = vld [vmem:[%s229 + $0x4] sm:$0xf]
      %v287 = vld [vmem:[%s229 + $0x8] sm:$0xf]
      %v288 = vld [vmem:[%s229 + $0xc] sm:$0xf]
      %v289 = vld [vmem:[%s229 + $0x10] sm:$0xf]
      %v290 = vld [vmem:[%s229 + $0x14] sm:$0xf]
      %v291 = vld [vmem:[%s229 + $0x18] sm:$0xf]
      %v292 = vld [vmem:[%s229 + $0x1c] sm:$0xf]
      %v293 = vld [vmem:[%s229 + $0x20] sm:$0xf]
      %v294 = vld [vmem:[%s229 + $0x24] sm:$0xf]
      %v295 = vld [vmem:[%s229 + $0x28] sm:$0xf]
      %v296 = vld [vmem:[%s229 + $0x2c] sm:$0xf]
      %v297 = vld [vmem:[%s229 + $0x30] sm:$0xf]
      %v298 = vld [vmem:[%s229 + $0x34] sm:$0xf]
      %v299 = vld [vmem:[%s229 + $0x38] sm:$0xf]
      %v300 = vld [vmem:[%s229 + $0x3c] sm:$0xf]
      %v301 = vld [vmem:[%s235] sm:$0xf]
      %v302 = vld [vmem:[%s235 + $0x4] sm:$0xf]
      %v303 = vld [vmem:[%s235 + $0x8] sm:$0xf]
      %v304 = vld [vmem:[%s235 + $0xc] sm:$0xf]
      %v305 = vld [vmem:[%s235 + $0x10] sm:$0xf]
      %v306 = vld [vmem:[%s235 + $0x14] sm:$0xf]
      %v307 = vld [vmem:[%s235 + $0x18] sm:$0xf]
      %v308 = vld [vmem:[%s235 + $0x1c] sm:$0xf]
      %v309 = vld [vmem:[%s235 + $0x20] sm:$0xf]
      %v310 = vld [vmem:[%s235 + $0x24] sm:$0xf]
      %v311 = vld [vmem:[%s235 + $0x28] sm:$0xf]
      %v312 = vld [vmem:[%s235 + $0x2c] sm:$0xf]
      %v313 = vld [vmem:[%s235 + $0x30] sm:$0xf]
      %v314 = vld [vmem:[%s235 + $0x34] sm:$0xf]
      %v315 = vld [vmem:[%s235 + $0x38] sm:$0xf]
      %v316 = vld [vmem:[%s235 + $0x3c] sm:$0xf]
      %v333 = vunpack.c.l.b16 %v285
      %v334 = vunpack.c.l.b16 %v286
      %v335 = vunpack.c.l.b16 %v287
      %v336 = vunpack.c.l.b16 %v288
      %v337 = vunpack.c.l.b16 %v289
      %v338 = vunpack.c.l.b16 %v290
      %v339 = vunpack.c.l.b16 %v291
      %v340 = vunpack.c.l.b16 %v292
      %v341 = vunpack.c.l.b16 %v293
      %v342 = vunpack.c.l.b16 %v294
      %v343 = vunpack.c.l.b16 %v295
      %v344 = vunpack.c.l.b16 %v296
      %v345 = vunpack.c.l.b16 %v297
      %v346 = vunpack.c.l.b16 %v298
      %v347 = vunpack.c.l.b16 %v299
      %v348 = vunpack.c.l.b16 %v300
      %v349 = vpack.c.b16 %v334, %v333
      %v350 = vpack.c.b16 %v336, %v335
      %v351 = vpack.c.b16 %v338, %v337
      %v352 = vpack.c.b16 %v340, %v339
      %v353 = vpack.c.b16 %v342, %v341
      %v354 = vpack.c.b16 %v344, %v343
      %v355 = vpack.c.b16 %v346, %v345
      %v356 = vpack.c.b16 %v348, %v347
      %v381 = vunpack.c.l.b16 %v301
      %v382 = vunpack.c.l.b16 %v302
      %v383 = vunpack.c.l.b16 %v303
      %v384 = vunpack.c.l.b16 %v304
      %v385 = vunpack.c.l.b16 %v305
      %v386 = vunpack.c.l.b16 %v306
      %v387 = vunpack.c.l.b16 %v307
      %v388 = vunpack.c.l.b16 %v308
      %v389 = vunpack.c.l.b16 %v309
      %v390 = vunpack.c.l.b16 %v310
      %v391 = vunpack.c.l.b16 %v311
      %v392 = vunpack.c.l.b16 %v312
      %v393 = vunpack.c.l.b16 %v313
      %v394 = vunpack.c.l.b16 %v314
      %v395 = vunpack.c.l.b16 %v315
      %v396 = vunpack.c.l.b16 %v316
      %v397 = vpack.c.b16 %v382, %v381
      %v398 = vpack.c.b16 %v384, %v383
      %v399 = vpack.c.b16 %v386, %v385
      %v400 = vpack.c.b16 %v388, %v387
      %v401 = vpack.c.b16 %v390, %v389
      %v402 = vpack.c.b16 %v392, %v391
      %v403 = vpack.c.b16 %v394, %v393
      %v404 = vpack.c.b16 %v396, %v395
      %413 = vmatpush.bf16.msra.mxu0 %v404
      %414 = vmatpush.bf16.msra.mxu0 %v403
      %415 = vmatpush.bf16.msra.mxu0 %v402
      %416 = vmatpush.bf16.msra.mxu0 %v401
      %417 = vmatpush.bf16.msra.mxu0 %v400
      %418 = vmatpush.bf16.msra.mxu0 %v399
      %419 = vmatpush.bf16.msra.mxu0 %v398
      %420 = vmatpush.bf16.msra.mxu0 %v397
      %421 = vmatmul.bf16.gmra.mxu0 %v349
      %v422 = vpop.f32.mrf.mxu0
      %v423 = vadd.f32 0.0, %v422
      %v424 = vpop.f32.mrf.mxu0
      %v425 = vadd.f32 0.0, %v424
      %426 = vmatmul.bf16.gmra.mxu0 %v350
      %v427 = vpop.f32.mrf.mxu0
      %v428 = vadd.f32 0.0, %v427
      %v429 = vpop.f32.mrf.mxu0
      %v430 = vadd.f32 0.0, %v429
      %431 = vmatmul.bf16.gmra.mxu0 %v351
      %v432 = vpop.f32.mrf.mxu0
      %v433 = vadd.f32 0.0, %v432
      %v434 = vpop.f32.mrf.mxu0
      %v435 = vadd.f32 0.0, %v434
      %436 = vmatmul.bf16.gmra.mxu0 %v352
      %v437 = vpop.f32.mrf.mxu0
      %v438 = vadd.f32 0.0, %v437
      %v439 = vpop.f32.mrf.mxu0
      %v440 = vadd.f32 0.0, %v439
      %441 = vmatmul.bf16.gmra.mxu0 %v353
      %v442 = vpop.f32.mrf.mxu0
      %v443 = vadd.f32 0.0, %v442
      %v444 = vpop.f32.mrf.mxu0
      %v445 = vadd.f32 0.0, %v444
      %446 = vmatmul.bf16.gmra.mxu0 %v354
      %v447 = vpop.f32.mrf.mxu0
      %v448 = vadd.f32 0.0, %v447
      %v449 = vpop.f32.mrf.mxu0
      %v450 = vadd.f32 0.0, %v449
      %451 = vmatmul.bf16.gmra.mxu0 %v355
      %v452 = vpop.f32.mrf.mxu0
      %v453 = vadd.f32 0.0, %v452
      %v454 = vpop.f32.mrf.mxu0
      %v455 = vadd.f32 0.0, %v454
      %456 = vmatmul.bf16.gmra.mxu0 %v356
      %v457 = vpop.f32.mrf.mxu0
      %v458 = vadd.f32 0.0, %v457
      %v459 = vpop.f32.mrf.mxu0
      %v460 = vadd.f32 0.0, %v459
      %461 = vdwg.mxu0
      %v462 = vadd.f32 %v269, %v423
      %v463 = vadd.f32 %v270, %v425
      %v464 = vadd.f32 %v271, %v428
      %v465 = vadd.f32 %v272, %v430
      %v466 = vadd.f32 %v273, %v433
      %v467 = vadd.f32 %v274, %v435
      %v468 = vadd.f32 %v275, %v438
      %v469 = vadd.f32 %v276, %v440
      %v470 = vadd.f32 %v277, %v443
      %v471 = vadd.f32 %v278, %v445
      %v472 = vadd.f32 %v279, %v448
      %v473 = vadd.f32 %v280, %v450
      %v474 = vadd.f32 %v281, %v453
      %v475 = vadd.f32 %v282, %v455
      %v476 = vadd.f32 %v283, %v458
      %v477 = vadd.f32 %v284, %v460
      %478 = vst [vmem:[#allocation2] sm:$0xff] %v462
      %479 = vst [vmem:[#allocation2 + $0x8] sm:$0xff] %v463
      %480 = vst [vmem:[#allocation2 + $0x10] sm:$0xff] %v464
      %481 = vst [vmem:[#allocation2 + $0x18] sm:$0xff] %v465
      %482 = vst [vmem:[#allocation2 + $0x20] sm:$0xff] %v466
      %483 = vst [vmem:[#allocation2 + $0x28] sm:$0xff] %v467
      %484 = vst [vmem:[#allocation2 + $0x30] sm:$0xff] %v468
      %485 = vst [vmem:[#allocation2 + $0x38] sm:$0xff] %v469
      %486 = vst [vmem:[#allocation2 + $0x40] sm:$0xff] %v470
      %487 = vst [vmem:[#allocation2 + $0x48] sm:$0xff] %v471
      %488 = vst [vmem:[#allocation2 + $0x50] sm:$0xff] %v472
      %489 = vst [vmem:[#allocation2 + $0x58] sm:$0xff] %v473
      %490 = vst [vmem:[#allocation2 + $0x60] sm:$0xff] %v474
      %491 = vst [vmem:[#allocation2 + $0x68] sm:$0xff] %v475
      %492 = vst [vmem:[#allocation2 + $0x70] sm:$0xff] %v476
      %493 = vst [vmem:[#allocation2 + $0x78] sm:$0xff] %v477
      %p494 = scmp.eq.s32.totalorder %s21, 8
      // Predicated region
      $region37: #{bottleneck_psp.9} parent=27 // pred_check
        %p495 = pneg %p494
      $region38: #{bottleneck_psp.9} parent=27 // pred_check_branch
        %497 = sbr.rel (%p495) target = $region40
      $region39: #{bottleneck_psp.9} parent=27 // pred_region
        %v498 = vld [vmem:[#allocation2] sm:$0xff]
        %v499 = vld [vmem:[#allocation2 + $0x8] sm:$0xff]
        %v500 = vld [vmem:[#allocation2 + $0x10] sm:$0xff]
        %v501 = vld [vmem:[#allocation2 + $0x18] sm:$0xff]
        %v502 = vld [vmem:[#allocation2 + $0x20] sm:$0xff]
        %v503 = vld [vmem:[#allocation2 + $0x28] sm:$0xff]
        %v504 = vld [vmem:[#allocation2 + $0x30] sm:$0xff]
        %v505 = vld [vmem:[#allocation2 + $0x38] sm:$0xff]
        %v506 = vld [vmem:[#allocation2 + $0x40] sm:$0xff]
        %v507 = vld [vmem:[#allocation2 + $0x48] sm:$0xff]
        %v508 = vld [vmem:[#allocation2 + $0x50] sm:$0xff]
        %v509 = vld [vmem:[#allocation2 + $0x58] sm:$0xff]
        %v510 = vld [vmem:[#allocation2 + $0x60] sm:$0xff]
        %v511 = vld [vmem:[#allocation2 + $0x68] sm:$0xff]
        %v512 = vld [vmem:[#allocation2 + $0x70] sm:$0xff]
        %v513 = vld [vmem:[#allocation2 + $0x78] sm:$0xff]
        %514 = vst [vmem:[%s240] sm:$0xff] %v498
        %515 = vst [vmem:[%s240 + $0x8] sm:$0xff] %v499
        %516 = vst [vmem:[%s240 + $0x10] sm:$0xff] %v500
        %517 = vst [vmem:[%s240 + $0x18] sm:$0xff] %v501
        %518 = vst [vmem:[%s240 + $0x20] sm:$0xff] %v502
        %519 = vst [vmem:[%s240 + $0x28] sm:$0xff] %v503
        %520 = vst [vmem:[%s240 + $0x30] sm:$0xff] %v504
        %521 = vst [vmem:[%s240 + $0x38] sm:$0xff] %v505
        %522 = vst [vmem:[%s240 + $0x40] sm:$0xff] %v506
        %523 = vst [vmem:[%s240 + $0x48] sm:$0xff] %v507
        %524 = vst [vmem:[%s240 + $0x50] sm:$0xff] %v508
        %525 = vst [vmem:[%s240 + $0x58] sm:$0xff] %v509
        %526 = vst [vmem:[%s240 + $0x60] sm:$0xff] %v510
        %527 = vst [vmem:[%s240 + $0x68] sm:$0xff] %v511
        %528 = vst [vmem:[%s240 + $0x70] sm:$0xff] %v512
        %529 = vst [vmem:[%s240 + $0x78] sm:$0xff] %v513
        %v530 = vld [vmem:[%s3] sm:$0x1]
        %v531 = vadd.f32 %v498, %v499
        %v532 = vadd.f32 %v531, %v500
        %v533 = vadd.f32 %v532, %v501
        %v534 = vadd.f32 %v533, %v502
        %v535 = vadd.f32 %v534, %v503
        %v536 = vadd.f32 %v535, %v504
        %v537 = vadd.f32 %v536, %v505
        %v538 = vadd.f32 %v537, %v506
        %v539 = vadd.f32 %v538, %v507
        %v540 = vadd.f32 %v539, %v508
        %v541 = vadd.f32 %v540, %v509
        %v542 = vadd.f32 %v541, %v510
        %v543 = vadd.f32 %v542, %v511
        %v544 = vadd.f32 %v543, %v512
        %v545 = vadd.f32 %v544, %v513
        %v546 = vrot.slane %v545, 4
        %v547 = vadd.f32 %v545, %v546
        %v548 = vrot.slane %v547, 2
        %v549 = vadd.f32 %v547, %v548
        %v550 = vrot.slane %v549, 1
        %v551 = vadd.f32 %v549, %v550
        %v552 = vadd.f32 %v530, %v551
        %553 = vst [vmem:[%s3] sm:$0x1] %v552
        %v554 = vld [vmem:[%s4] sm:$0x1]
        %v555 = vmul.f32 %v498, %v498
        %v556 = vmul.f32 %v499, %v499
        %v557 = vmul.f32 %v500, %v500
        %v558 = vmul.f32 %v501, %v501
        %v559 = vmul.f32 %v502, %v502
        %v560 = vmul.f32 %v503, %v503
        %v561 = vmul.f32 %v504, %v504
        %v562 = vmul.f32 %v505, %v505
        %v563 = vmul.f32 %v506, %v506
        %v564 = vmul.f32 %v507, %v507
        %v565 = vmul.f32 %v508, %v508
        %v566 = vmul.f32 %v509, %v509
        %v567 = vmul.f32 %v510, %v510
        %v568 = vmul.f32 %v511, %v511
        %v569 = vmul.f32 %v512, %v512
        %v570 = vmul.f32 %v513, %v513
        %v571 = vadd.f32 %v555, %v556
        %v572 = vadd.f32 %v571, %v557
        %v573 = vadd.f32 %v572, %v558
        %v574 = vadd.f32 %v573, %v559
        %v575 = vadd.f32 %v574, %v560
        %v576 = vadd.f32 %v575, %v561
        %v577 = vadd.f32 %v576, %v562
        %v578 = vadd.f32 %v577, %v563
        %v579 = vadd.f32 %v578, %v564
        %v580 = vadd.f32 %v579, %v565
        %v581 = vadd.f32 %v580, %v566
        %v582 = vadd.f32 %v581, %v567
        %v583 = vadd.f32 %v582, %v568
        %v584 = vadd.f32 %v583, %v569
        %v585 = vadd.f32 %v584, %v570
        %v586 = vrot.slane %v585, 4
        %v587 = vadd.f32 %v585, %v586
        %v588 = vrot.slane %v587, 2
        %v589 = vadd.f32 %v587, %v588
        %v590 = vrot.slane %v589, 1
        %v591 = vadd.f32 %v589, %v590
        %v592 = vadd.f32 %v554, %v591
        %593 = vst [vmem:[%s4] sm:$0x1] %v592
      $region40: #{bottleneck_psp.9} parent=27 // pred_fallthru
        _
      %s594 = smul.u32 16, %s20
      %p595 = scmp.lt.s32.totalorder %s594, 15
      %s596 = scalar_select %p595, %s594, 15
      %s597 = smul.addr %s596, 8
      %s598 = scalar_lea.vmem %s2, %s597
      // Predicated region
      $region41: #{bottleneck_psp.9} parent=27 // pred_check
        %p599 = pneg %p100
      $region42: #{bottleneck_psp.9} parent=27 // pred_check_branch
        %601 = sbr.rel (%p599) target = $region44
      $region43: #{bottleneck_psp.9} parent=27 // pred_region
        %s602 = smul.u32 16, %s20
      $region44: #{bottleneck_psp.9} parent=27 // pred_fallthru
        _
      // Predicated region
      $region45: #{bottleneck_psp.9} parent=27 // pred_check
        %p603 = pneg %p121
      $region46: #{bottleneck_psp.9} parent=27 // pred_check_branch
        %605 = sbr.rel (%p603) target = $region48
      $region47: #{bottleneck_psp.9} parent=27 // pred_region
        _
      $region48: #{bottleneck_psp.9} parent=27 // pred_fallthru
        _
      // Predicated region
      $region49: #{bottleneck_psp.9} parent=27 // pred_check
        %p606 = pneg %p142
      $region50: #{bottleneck_psp.9} parent=27 // pred_check_branch
        %608 = sbr.rel (%p606) target = $region52
      $region51: #{bottleneck_psp.9} parent=27 // pred_region
        _
      $region52: #{bottleneck_psp.9} parent=27 // pred_fallthru
        _
      // Predicated region
      $region53: #{bottleneck_psp.9} parent=27 // pred_check
        %p609 = pneg %p100
      $region54: #{bottleneck_psp.9} parent=27 // pred_check_branch
        %611 = sbr.rel (%p609) target = $region56
      $region55: #{bottleneck_psp.9} parent=27 // pred_region
        %s612 = smul.u32 16, %s20
        %p613 = scmp.lt.s32.totalorder %s612, 15
        %s614 = scalar_select %p613, %s612, 15
        %s615 = smul.addr %s614, 8
        %s616 = scalar_lea.vmem %s2, %s615
      $region56: #{bottleneck_psp.9} parent=27 // pred_fallthru
        _
      // Predicated region
      $region57: #{bottleneck_psp.9} parent=27 // pred_check
        %p617 = pneg %p121
      $region58: #{bottleneck_psp.9} parent=27 // pred_check_branch
        %619 = sbr.rel (%p617) target = $region60
      $region59: #{bottleneck_psp.9} parent=27 // pred_region
        _
      $region60: #{bottleneck_psp.9} parent=27 // pred_fallthru
        _
      // Predicated region
      $region61: #{bottleneck_psp.9} parent=27 // pred_check
        %p620 = pneg %p142
      $region62: #{bottleneck_psp.9} parent=27 // pred_check_branch
        %622 = sbr.rel (%p620) target = $region64
      $region63: #{bottleneck_psp.9} parent=27 // pred_region
        _
      $region64: #{bottleneck_psp.9} parent=27 // pred_fallthru
        _
    $region28: #{bottleneck_psp.9} parent=5 // pred_fallthru
      _
    %p623 = scmp.le.s32.totalorder 2, %s11
    // Predicated region
    $region65: #{bottleneck_psp.9} parent=5 // pred_check
      %p624 = pneg %p623
    $region66: #{bottleneck_psp.9} parent=5 // pred_check_branch
      %626 = sbr.rel (%p624) target = $region68
    $region67: #{bottleneck_psp.9} parent=5 // pred_region
      %s627 = ssub.s32 %s11, 2
    $region68: #{bottleneck_psp.9} parent=5 // pred_fallthru
      _
  $region6: #{bottleneck_psp.9} parent=0 // loop_footer
    %s15 = sadd.s32 1, %s11
  $region7: #{bottleneck_psp.9} parent=0 // loop_footer_branch
    %10 = sbr.rel target = $region3
  $region8: #{bottleneck_psp.9} parent=0 // loop_exit
    _

// kernel: bottleneck_psp.11
$region0: #{bottleneck_psp.11}
  #allocation0 [shape = 'u32[]', space=smem, size = 0x4, offset = 0x4, fixed_abs, tag = 'smem constant byte address 0x4 - core index']
  #allocation1 [shape = 'u32[72,128]{1,0:T(1,128)}', space=vmem, size = 0x9000, scoped, tag = 'internal scratch']
  #allocation2 [shape = 'f32[128,256]{1,0:T(8,128)}', space=vmem, size = 0x20000, scoped, tag = 'scratch operand']
  %s0 = inlined_call_operand.vmem [shape: bf16[1,128,128], index: 0, kind: input, shape index: {}]
  %s1 = inlined_call_operand.vmem [shape: bf16[1,128,256], index: 1, kind: input, shape index: {}]
  %s2 = inlined_call_operand.vmem [shape: f32[128,256], index: 2, kind: output, shape index: {0}]
  %s3 = inlined_call_operand.vmem [shape: f32[1,256], index: 3, kind: output, shape index: {1}]
  %s4 = inlined_call_operand.vmem [shape: f32[1,256], index: 4, kind: output, shape index: {2}]
  %5 = xla_tuple %s2, %s3, %s4
  %s6 = sld [smem:[#allocation0]]
  $region46: #{bottleneck_psp.11} parent=0
    _
  %s8 = ssub.s32 1, %s6
  %s9 = scalar_select 0, %s8, %s6
  // Predicated region
  $region2: #{bottleneck_psp.11} parent=0 // pred_check
    _
  $region3: #{bottleneck_psp.11} parent=0 // pred_check_branch
    %11 = sbr.rel (0) target = $region5
  $region4: #{bottleneck_psp.11} parent=0 // pred_region
    _
  $region5: #{bottleneck_psp.11} parent=0 // pred_fallthru
    _
  // Predicated region
  $region6: #{bottleneck_psp.11} parent=0 // pred_check
    _
  $region7: #{bottleneck_psp.11} parent=0 // pred_check_branch
    %13 = sbr.rel (0) target = $region9
  $region8: #{bottleneck_psp.11} parent=0 // pred_region
    _
  $region9: #{bottleneck_psp.11} parent=0 // pred_fallthru
    _
  %p14 = scmp.eq.s32.totalorder 0, 0
  // Predicated region
  $region10: #{bottleneck_psp.11} parent=0 // pred_check
    %p15 = pneg %p14
  $region11: #{bottleneck_psp.11} parent=0 // pred_check_branch
    %17 = sbr.rel (%p15) target = $region13
  $region12: #{bottleneck_psp.11} parent=0 // pred_region
    %18 = vst [vmem:[#allocation2] sm:$0xff] 0.0
    %19 = vst [vmem:[#allocation2 + $0x8] sm:$0xff] 0.0
    %20 = vst [vmem:[#allocation2 + $0x10] sm:$0xff] 0.0
    %21 = vst [vmem:[#allocation2 + $0x18] sm:$0xff] 0.0
    %22 = vst [vmem:[#allocation2 + $0x20] sm:$0xff] 0.0
    %23 = vst [vmem:[#allocation2 + $0x28] sm:$0xff] 0.0
    %24 = vst [vmem:[#allocation2 + $0x30] sm:$0xff] 0.0
    %25 = vst [vmem:[#allocation2 + $0x38] sm:$0xff] 0.0
    %26 = vst [vmem:[#allocation2 + $0x40] sm:$0xff] 0.0
    %27 = vst [vmem:[#allocation2 + $0x48] sm:$0xff] 0.0
    %28 = vst [vmem:[#allocation2 + $0x50] sm:$0xff] 0.0
    %29 = vst [vmem:[#allocation2 + $0x58] sm:$0xff] 0.0
    %30 = vst [vmem:[#allocation2 + $0x60] sm:$0xff] 0.0
    %31 = vst [vmem:[#allocation2 + $0x68] sm:$0xff] 0.0
    %32 = vst [vmem:[#allocation2 + $0x70] sm:$0xff] 0.0
    %33 = vst [vmem:[#allocation2 + $0x78] sm:$0xff] 0.0
    %34 = vst [vmem:[#allocation2 + $0x80] sm:$0xff] 0.0
    %35 = vst [vmem:[#allocation2 + $0x88] sm:$0xff] 0.0
    %36 = vst [vmem:[#allocation2 + $0x90] sm:$0xff] 0.0
    %37 = vst [vmem:[#allocation2 + $0x98] sm:$0xff] 0.0
    %38 = vst [vmem:[#allocation2 + $0xa0] sm:$0xff] 0.0
    %39 = vst [vmem:[#allocation2 + $0xa8] sm:$0xff] 0.0
    %40 = vst [vmem:[#allocation2 + $0xb0] sm:$0xff] 0.0
    %41 = vst [vmem:[#allocation2 + $0xb8] sm:$0xff] 0.0
    %42 = vst [vmem:[#allocation2 + $0xc0] sm:$0xff] 0.0
    %43 = vst [vmem:[#allocation2 + $0xc8] sm:$0xff] 0.0
    %44 = vst [vmem:[#allocation2 + $0xd0] sm:$0xff] 0.0
    %45 = vst [vmem:[#allocation2 + $0xd8] sm:$0xff] 0.0
    %46 = vst [vmem:[#allocation2 + $0xe0] sm:$0xff] 0.0
    %47 = vst [vmem:[#allocation2 + $0xe8] sm:$0xff] 0.0
    %48 = vst [vmem:[#allocation2 + $0xf0] sm:$0xff] 0.0
    %49 = vst [vmem:[#allocation2 + $0xf8] sm:$0xff] 0.0
  $region13: #{bottleneck_psp.11} parent=0 // pred_fallthru
    _
  %p50 = scmp.eq.s32.totalorder 0, 0
  %p51 = pnand %p50, %p14
  %p52 = pneg %p51
  // Predicated region
  $region14: #{bottleneck_psp.11} parent=0 // pred_check
    _
  $region15: #{bottleneck_psp.11} parent=0 // pred_check_branch
    %54 = sbr.rel (%p51) target = $region17
  $region16: #{bottleneck_psp.11} parent=0 // pred_region
    %v55 = vlaneseq
    %vm56 = vcmp.ge.s32.totalorder %v55, 0
    %vm57 = vcmp.lt.s32.totalorder %v55, 256
    %vm58 = vmand %vm56, %vm57
    %59 = vst.msk [vmem:[%s3] sm:$0x3] %vm58, 0.0
    %60 = vst.msk [vmem:[%s4] sm:$0x3] %vm58, 0.0
  $region17: #{bottleneck_psp.11} parent=0 // pred_fallthru
    _
  %v61 = vld [vmem:[#allocation2] sm:$0xff]
  %v62 = vld [vmem:[#allocation2 + $0x8] sm:$0xff]
  %v63 = vld [vmem:[#allocation2 + $0x10] sm:$0xff]
  %v64 = vld [vmem:[#allocation2 + $0x18] sm:$0xff]
  %v65 = vld [vmem:[#allocation2 + $0x20] sm:$0xff]
  %v66 = vld [vmem:[#allocation2 + $0x28] sm:$0xff]
  %v67 = vld [vmem:[#allocation2 + $0x30] sm:$0xff]
  %v68 = vld [vmem:[#allocation2 + $0x38] sm:$0xff]
  %v69 = vld [vmem:[#allocation2 + $0x40] sm:$0xff]
  %v70 = vld [vmem:[#allocation2 + $0x48] sm:$0xff]
  %v71 = vld [vmem:[#allocation2 + $0x50] sm:$0xff]
  %v72 = vld [vmem:[#allocation2 + $0x58] sm:$0xff]
  %v73 = vld [vmem:[#allocation2 + $0x60] sm:$0xff]
  %v74 = vld [vmem:[#allocation2 + $0x68] sm:$0xff]
  %v75 = vld [vmem:[#allocation2 + $0x70] sm:$0xff]
  %v76 = vld [vmem:[#allocation2 + $0x78] sm:$0xff]
  %v77 = vld [vmem:[#allocation2 + $0x80] sm:$0xff]
  %v78 = vld [vmem:[#allocation2 + $0x88] sm:$0xff]
  %v79 = vld [vmem:[#allocation2 + $0x90] sm:$0xff]
  %v80 = vld [vmem:[#allocation2 + $0x98] sm:$0xff]
  %v81 = vld [vmem:[#allocation2 + $0xa0] sm:$0xff]
  %v82 = vld [vmem:[#allocation2 + $0xa8] sm:$0xff]
  %v83 = vld [vmem:[#allocation2 + $0xb0] sm:$0xff]
  %v84 = vld [vmem:[#allocation2 + $0xb8] sm:$0xff]
  %v85 = vld [vmem:[#allocation2 + $0xc0] sm:$0xff]
  %v86 = vld [vmem:[#allocation2 + $0xc8] sm:$0xff]
  %v87 = vld [vmem:[#allocation2 + $0xd0] sm:$0xff]
  %v88 = vld [vmem:[#allocation2 + $0xd8] sm:$0xff]
  %v89 = vld [vmem:[#allocation2 + $0xe0] sm:$0xff]
  %v90 = vld [vmem:[#allocation2 + $0xe8] sm:$0xff]
  %v91 = vld [vmem:[#allocation2 + $0xf0] sm:$0xff]
  %v92 = vld [vmem:[#allocation2 + $0xf8] sm:$0xff]
  %v93 = vld [vmem:[%s0] sm:$0xf]
  %v94 = vld [vmem:[%s0 + $0x4] sm:$0xf]
  %v95 = vld [vmem:[%s0 + $0x8] sm:$0xf]
  %v96 = vld [vmem:[%s0 + $0xc] sm:$0xf]
  %v97 = vld [vmem:[%s0 + $0x10] sm:$0xf]
  %v98 = vld [vmem:[%s0 + $0x14] sm:$0xf]
  %v99 = vld [vmem:[%s0 + $0x18] sm:$0xf]
  %v100 = vld [vmem:[%s0 + $0x1c] sm:$0xf]
  %v101 = vld [vmem:[%s0 + $0x20] sm:$0xf]
  %v102 = vld [vmem:[%s0 + $0x24] sm:$0xf]
  %v103 = vld [vmem:[%s0 + $0x28] sm:$0xf]
  %v104 = vld [vmem:[%s0 + $0x2c] sm:$0xf]
  %v105 = vld [vmem:[%s0 + $0x30] sm:$0xf]
  %v106 = vld [vmem:[%s0 + $0x34] sm:$0xf]
  %v107 = vld [vmem:[%s0 + $0x38] sm:$0xf]
  %v108 = vld [vmem:[%s0 + $0x3c] sm:$0xf]
  %v109 = vld [vmem:[%s1] sm:$0xff]
  %v110 = vld [vmem:[%s1 + $0x8] sm:$0xff]
  %v111 = vld [vmem:[%s1 + $0x10] sm:$0xff]
  %v112 = vld [vmem:[%s1 + $0x18] sm:$0xff]
  %v113 = vld [vmem:[%s1 + $0x20] sm:$0xff]
  %v114 = vld [vmem:[%s1 + $0x28] sm:$0xff]
  %v115 = vld [vmem:[%s1 + $0x30] sm:$0xff]
  %v116 = vld [vmem:[%s1 + $0x38] sm:$0xff]
  %v117 = vld [vmem:[%s1 + $0x40] sm:$0xff]
  %v118 = vld [vmem:[%s1 + $0x48] sm:$0xff]
  %v119 = vld [vmem:[%s1 + $0x50] sm:$0xff]
  %v120 = vld [vmem:[%s1 + $0x58] sm:$0xff]
  %v121 = vld [vmem:[%s1 + $0x60] sm:$0xff]
  %v122 = vld [vmem:[%s1 + $0x68] sm:$0xff]
  %v123 = vld [vmem:[%s1 + $0x70] sm:$0xff]
  %v124 = vld [vmem:[%s1 + $0x78] sm:$0xff]
  %v141 = vunpack.c.l.b16 %v93
  %v142 = vunpack.c.l.b16 %v94
  %v143 = vunpack.c.l.b16 %v95
  %v144 = vunpack.c.l.b16 %v96
  %v145 = vunpack.c.l.b16 %v97
  %v146 = vunpack.c.l.b16 %v98
  %v147 = vunpack.c.l.b16 %v99
  %v148 = vunpack.c.l.b16 %v100
  %v149 = vunpack.c.l.b16 %v101
  %v150 = vunpack.c.l.b16 %v102
  %v151 = vunpack.c.l.b16 %v103
  %v152 = vunpack.c.l.b16 %v104
  %v153 = vunpack.c.l.b16 %v105
  %v154 = vunpack.c.l.b16 %v106
  %v155 = vunpack.c.l.b16 %v107
  %v156 = vunpack.c.l.b16 %v108
  %v157 = vpack.c.b16 %v142, %v141
  %v158 = vpack.c.b16 %v144, %v143
  %v159 = vpack.c.b16 %v146, %v145
  %v160 = vpack.c.b16 %v148, %v147
  %v161 = vpack.c.b16 %v150, %v149
  %v162 = vpack.c.b16 %v152, %v151
  %v163 = vpack.c.b16 %v154, %v153
  %v164 = vpack.c.b16 %v156, %v155
  %v189 = vunpack.c.l.b16 %v109
  %v190 = vunpack.c.h.b16 %v109
  %v191 = vunpack.c.l.b16 %v110
  %v192 = vunpack.c.h.b16 %v110
  %v193 = vunpack.c.l.b16 %v111
  %v194 = vunpack.c.h.b16 %v111
  %v195 = vunpack.c.l.b16 %v112
  %v196 = vunpack.c.h.b16 %v112
  %v197 = vunpack.c.l.b16 %v113
  %v198 = vunpack.c.h.b16 %v113
  %v199 = vunpack.c.l.b16 %v114
  %v200 = vunpack.c.h.b16 %v114
  %v201 = vunpack.c.l.b16 %v115
  %v202 = vunpack.c.h.b16 %v115
  %v203 = vunpack.c.l.b16 %v116
  %v204 = vunpack.c.h.b16 %v116
  %v205 = vunpack.c.l.b16 %v117
  %v206 = vunpack.c.h.b16 %v117
  %v207 = vunpack.c.l.b16 %v118
  %v208 = vunpack.c.h.b16 %v118
  %v209 = vunpack.c.l.b16 %v119
  %v210 = vunpack.c.h.b16 %v119
  %v211 = vunpack.c.l.b16 %v120
  %v212 = vunpack.c.h.b16 %v120
  %v213 = vunpack.c.l.b16 %v121
  %v214 = vunpack.c.h.b16 %v121
  %v215 = vunpack.c.l.b16 %v122
  %v216 = vunpack.c.h.b16 %v122
  %v217 = vunpack.c.l.b16 %v123
  %v218 = vunpack.c.h.b16 %v123
  %v219 = vunpack.c.l.b16 %v124
  %v220 = vunpack.c.h.b16 %v124
  %v221 = vpack.c.b16 %v191, %v189
  %v222 = vpack.c.b16 %v192, %v190
  %v223 = vpack.c.b16 %v195, %v193
  %v224 = vpack.c.b16 %v196, %v194
  %v225 = vpack.c.b16 %v199, %v197
  %v226 = vpack.c.b16 %v200, %v198
  %v227 = vpack.c.b16 %v203, %v201
  %v228 = vpack.c.b16 %v204, %v202
  %v229 = vpack.c.b16 %v207, %v205
  %v230 = vpack.c.b16 %v208, %v206
  %v231 = vpack.c.b16 %v211, %v209
  %v232 = vpack.c.b16 %v212, %v210
  %v233 = vpack.c.b16 %v215, %v213
  %v234 = vpack.c.b16 %v216, %v214
  %v235 = vpack.c.b16 %v219, %v217
  %v236 = vpack.c.b16 %v220, %v218
  %253 = vmatpush.bf16.msra.mxu0 %v235
  %254 = vmatpush.bf16.msra.mxu0 %v233
  %255 = vmatpush.bf16.msra.mxu0 %v231
  %256 = vmatpush.bf16.msra.mxu0 %v229
  %257 = vmatpush.bf16.msra.mxu0 %v227
  %258 = vmatpush.bf16.msra.mxu0 %v225
  %259 = vmatpush.bf16.msra.mxu0 %v223
  %260 = vmatpush.bf16.msra.mxu0 %v221
  %261 = vmatmul.bf16.gmra.mxu0 %v157
  %v262 = vpop.f32.mrf.mxu0
  %v263 = vadd.f32 0.0, %v262
  %v264 = vpop.f32.mrf.mxu0
  %v265 = vadd.f32 0.0, %v264
  %266 = vmatmul.bf16.gmra.mxu0 %v158
  %v267 = vpop.f32.mrf.mxu0
  %v268 = vadd.f32 0.0, %v267
  %v269 = vpop.f32.mrf.mxu0
  %v270 = vadd.f32 0.0, %v269
  %271 = vmatmul.bf16.gmra.mxu0 %v159
  %v272 = vpop.f32.mrf.mxu0
  %v273 = vadd.f32 0.0, %v272
  %v274 = vpop.f32.mrf.mxu0
  %v275 = vadd.f32 0.0, %v274
  %276 = vmatmul.bf16.gmra.mxu0 %v160
  %v277 = vpop.f32.mrf.mxu0
  %v278 = vadd.f32 0.0, %v277
  %v279 = vpop.f32.mrf.mxu0
  %v280 = vadd.f32 0.0, %v279
  %281 = vmatmul.bf16.gmra.mxu0 %v161
  %v282 = vpop.f32.mrf.mxu0
  %v283 = vadd.f32 0.0, %v282
  %v284 = vpop.f32.mrf.mxu0
  %v285 = vadd.f32 0.0, %v284
  %286 = vmatmul.bf16.gmra.mxu0 %v162
  %v287 = vpop.f32.mrf.mxu0
  %v288 = vadd.f32 0.0, %v287
  %v289 = vpop.f32.mrf.mxu0
  %v290 = vadd.f32 0.0, %v289
  %291 = vmatmul.bf16.gmra.mxu0 %v163
  %v292 = vpop.f32.mrf.mxu0
  %v293 = vadd.f32 0.0, %v292
  %v294 = vpop.f32.mrf.mxu0
  %v295 = vadd.f32 0.0, %v294
  %296 = vmatmul.bf16.gmra.mxu0 %v164
  %v297 = vpop.f32.mrf.mxu0
  %v298 = vadd.f32 0.0, %v297
  %v299 = vpop.f32.mrf.mxu0
  %v300 = vadd.f32 0.0, %v299
  %301 = vdwg.mxu0
  %302 = vmatpush.bf16.msra.mxu0 %v236
  %303 = vmatpush.bf16.msra.mxu0 %v234
  %304 = vmatpush.bf16.msra.mxu0 %v232
  %305 = vmatpush.bf16.msra.mxu0 %v230
  %306 = vmatpush.bf16.msra.mxu0 %v228
  %307 = vmatpush.bf16.msra.mxu0 %v226
  %308 = vmatpush.bf16.msra.mxu0 %v224
  %309 = vmatpush.bf16.msra.mxu0 %v222
  %310 = vmatmul.bf16.gmra.mxu0 %v157
  %v311 = vpop.f32.mrf.mxu0
  %v312 = vadd.f32 0.0, %v311
  %v313 = vpop.f32.mrf.mxu0
  %v314 = vadd.f32 0.0, %v313
  %315 = vmatmul.bf16.gmra.mxu0 %v158
  %v316 = vpop.f32.mrf.mxu0
  %v317 = vadd.f32 0.0, %v316
  %v318 = vpop.f32.mrf.mxu0
  %v319 = vadd.f32 0.0, %v318
  %320 = vmatmul.bf16.gmra.mxu0 %v159
  %v321 = vpop.f32.mrf.mxu0
  %v322 = vadd.f32 0.0, %v321
  %v323 = vpop.f32.mrf.mxu0
  %v324 = vadd.f32 0.0, %v323
  %325 = vmatmul.bf16.gmra.mxu0 %v160
  %v326 = vpop.f32.mrf.mxu0
  %v327 = vadd.f32 0.0, %v326
  %v328 = vpop.f32.mrf.mxu0
  %v329 = vadd.f32 0.0, %v328
  %330 = vmatmul.bf16.gmra.mxu0 %v161
  %v331 = vpop.f32.mrf.mxu0
  %v332 = vadd.f32 0.0, %v331
  %v333 = vpop.f32.mrf.mxu0
  %v334 = vadd.f32 0.0, %v333
  %335 = vmatmul.bf16.gmra.mxu0 %v162
  %v336 = vpop.f32.mrf.mxu0
  %v337 = vadd.f32 0.0, %v336
  %v338 = vpop.f32.mrf.mxu0
  %v339 = vadd.f32 0.0, %v338
  %340 = vmatmul.bf16.gmra.mxu0 %v163
  %v341 = vpop.f32.mrf.mxu0
  %v342 = vadd.f32 0.0, %v341
  %v343 = vpop.f32.mrf.mxu0
  %v344 = vadd.f32 0.0, %v343
  %345 = vmatmul.bf16.gmra.mxu0 %v164
  %v346 = vpop.f32.mrf.mxu0
  %v347 = vadd.f32 0.0, %v346
  %v348 = vpop.f32.mrf.mxu0
  %v349 = vadd.f32 0.0, %v348
  %350 = vdwg.mxu0
  %v351 = vadd.f32 %v61, %v263
  %v352 = vadd.f32 %v62, %v312
  %v353 = vadd.f32 %v63, %v265
  %v354 = vadd.f32 %v64, %v314
  %v355 = vadd.f32 %v65, %v268
  %v356 = vadd.f32 %v66, %v317
  %v357 = vadd.f32 %v67, %v270
  %v358 = vadd.f32 %v68, %v319
  %v359 = vadd.f32 %v69, %v273
  %v360 = vadd.f32 %v70, %v322
  %v361 = vadd.f32 %v71, %v275
  %v362 = vadd.f32 %v72, %v324
  %v363 = vadd.f32 %v73, %v278
  %v364 = vadd.f32 %v74, %v327
  %v365 = vadd.f32 %v75, %v280
  %v366 = vadd.f32 %v76, %v329
  %v367 = vadd.f32 %v77, %v283
  %v368 = vadd.f32 %v78, %v332
  %v369 = vadd.f32 %v79, %v285
  %v370 = vadd.f32 %v80, %v334
  %v371 = vadd.f32 %v81, %v288
  %v372 = vadd.f32 %v82, %v337
  %v373 = vadd.f32 %v83, %v290
  %v374 = vadd.f32 %v84, %v339
  %v375 = vadd.f32 %v85, %v293
  %v376 = vadd.f32 %v86, %v342
  %v377 = vadd.f32 %v87, %v295
  %v378 = vadd.f32 %v88, %v344
  %v379 = vadd.f32 %v89, %v298
  %v380 = vadd.f32 %v90, %v347
  %v381 = vadd.f32 %v91, %v300
  %v382 = vadd.f32 %v92, %v349
  %383 = vst [vmem:[#allocation2] sm:$0xff] %v351
  %384 = vst [vmem:[#allocation2 + $0x8] sm:$0xff] %v352
  %385 = vst [vmem:[#allocation2 + $0x10] sm:$0xff] %v353
  %386 = vst [vmem:[#allocation2 + $0x18] sm:$0xff] %v354
  %387 = vst [vmem:[#allocation2 + $0x20] sm:$0xff] %v355
  %388 = vst [vmem:[#allocation2 + $0x28] sm:$0xff] %v356
  %389 = vst [vmem:[#allocation2 + $0x30] sm:$0xff] %v357
  %390 = vst [vmem:[#allocation2 + $0x38] sm:$0xff] %v358
  %391 = vst [vmem:[#allocation2 + $0x40] sm:$0xff] %v359
  %392 = vst [vmem:[#allocation2 + $0x48] sm:$0xff] %v360
  %393 = vst [vmem:[#allocation2 + $0x50] sm:$0xff] %v361
  %394 = vst [vmem:[#allocation2 + $0x58] sm:$0xff] %v362
  %395 = vst [vmem:[#allocation2 + $0x60] sm:$0xff] %v363
  %396 = vst [vmem:[#allocation2 + $0x68] sm:$0xff] %v364
  %397 = vst [vmem:[#allocation2 + $0x70] sm:$0xff] %v365
  %398 = vst [vmem:[#allocation2 + $0x78] sm:$0xff] %v366
  %399 = vst [vmem:[#allocation2 + $0x80] sm:$0xff] %v367
  %400 = vst [vmem:[#allocation2 + $0x88] sm:$0xff] %v368
  %401 = vst [vmem:[#allocation2 + $0x90] sm:$0xff] %v369
  %402 = vst [vmem:[#allocation2 + $0x98] sm:$0xff] %v370
  %403 = vst [vmem:[#allocation2 + $0xa0] sm:$0xff] %v371
  %404 = vst [vmem:[#allocation2 + $0xa8] sm:$0xff] %v372
  %405 = vst [vmem:[#allocation2 + $0xb0] sm:$0xff] %v373
  %406 = vst [vmem:[#allocation2 + $0xb8] sm:$0xff] %v374
  %407 = vst [vmem:[#allocation2 + $0xc0] sm:$0xff] %v375
  %408 = vst [vmem:[#allocation2 + $0xc8] sm:$0xff] %v376
  %409 = vst [vmem:[#allocation2 + $0xd0] sm:$0xff] %v377
  %410 = vst [vmem:[#allocation2 + $0xd8] sm:$0xff] %v378
  %411 = vst [vmem:[#allocation2 + $0xe0] sm:$0xff] %v379
  %412 = vst [vmem:[#allocation2 + $0xe8] sm:$0xff] %v380
  %413 = vst [vmem:[#allocation2 + $0xf0] sm:$0xff] %v381
  %414 = vst [vmem:[#allocation2 + $0xf8] sm:$0xff] %v382
  // Predicated region
  $region18: #{bottleneck_psp.11} parent=0 // pred_check
    %p415 = pneg %p14
  $region19: #{bottleneck_psp.11} parent=0 // pred_check_branch
    %417 = sbr.rel (%p415) target = $region21
  $region20: #{bottleneck_psp.11} parent=0 // pred_region
    %v418 = vld [vmem:[#allocation2] sm:$0xff]
    %v419 = vld [vmem:[#allocation2 + $0x8] sm:$0xff]
    %v420 = vld [vmem:[#allocation2 + $0x10] sm:$0xff]
    %v421 = vld [vmem:[#allocation2 + $0x18] sm:$0xff]
    %v422 = vld [vmem:[#allocation2 + $0x20] sm:$0xff]
    %v423 = vld [vmem:[#allocation2 + $0x28] sm:$0xff]
    %v424 = vld [vmem:[#allocation2 + $0x30] sm:$0xff]
    %v425 = vld [vmem:[#allocation2 + $0x38] sm:$0xff]
    %v426 = vld [vmem:[#allocation2 + $0x40] sm:$0xff]
    %v427 = vld [vmem:[#allocation2 + $0x48] sm:$0xff]
    %v428 = vld [vmem:[#allocation2 + $0x50] sm:$0xff]
    %v429 = vld [vmem:[#allocation2 + $0x58] sm:$0xff]
    %v430 = vld [vmem:[#allocation2 + $0x60] sm:$0xff]
    %v431 = vld [vmem:[#allocation2 + $0x68] sm:$0xff]
    %v432 = vld [vmem:[#allocation2 + $0x70] sm:$0xff]
    %v433 = vld [vmem:[#allocation2 + $0x78] sm:$0xff]
    %v434 = vld [vmem:[#allocation2 + $0x80] sm:$0xff]
    %v435 = vld [vmem:[#allocation2 + $0x88] sm:$0xff]
    %v436 = vld [vmem:[#allocation2 + $0x90] sm:$0xff]
    %v437 = vld [vmem:[#allocation2 + $0x98] sm:$0xff]
    %v438 = vld [vmem:[#allocation2 + $0xa0] sm:$0xff]
    %v439 = vld [vmem:[#allocation2 + $0xa8] sm:$0xff]
    %v440 = vld [vmem:[#allocation2 + $0xb0] sm:$0xff]
    %v441 = vld [vmem:[#allocation2 + $0xb8] sm:$0xff]
    %v442 = vld [vmem:[#allocation2 + $0xc0] sm:$0xff]
    %v443 = vld [vmem:[#allocation2 + $0xc8] sm:$0xff]
    %v444 = vld [vmem:[#allocation2 + $0xd0] sm:$0xff]
    %v445 = vld [vmem:[#allocation2 + $0xd8] sm:$0xff]
    %v446 = vld [vmem:[#allocation2 + $0xe0] sm:$0xff]
    %v447 = vld [vmem:[#allocation2 + $0xe8] sm:$0xff]
    %v448 = vld [vmem:[#allocation2 + $0xf0] sm:$0xff]
    %v449 = vld [vmem:[#allocation2 + $0xf8] sm:$0xff]
    %450 = vst [vmem:[%s2] sm:$0xff] %v418
    %451 = vst [vmem:[%s2 + $0x8] sm:$0xff] %v419
    %452 = vst [vmem:[%s2 + $0x10] sm:$0xff] %v420
    %453 = vst [vmem:[%s2 + $0x18] sm:$0xff] %v421
    %454 = vst [vmem:[%s2 + $0x20] sm:$0xff] %v422
    %455 = vst [vmem:[%s2 + $0x28] sm:$0xff] %v423
    %456 = vst [vmem:[%s2 + $0x30] sm:$0xff] %v424
    %457 = vst [vmem:[%s2 + $0x38] sm:$0xff] %v425
    %458 = vst [vmem:[%s2 + $0x40] sm:$0xff] %v426
    %459 = vst [vmem:[%s2 + $0x48] sm:$0xff] %v427
    %460 = vst [vmem:[%s2 + $0x50] sm:$0xff] %v428
    %461 = vst [vmem:[%s2 + $0x58] sm:$0xff] %v429
    %462 = vst [vmem:[%s2 + $0x60] sm:$0xff] %v430
    %463 = vst [vmem:[%s2 + $0x68] sm:$0xff] %v431
    %464 = vst [vmem:[%s2 + $0x70] sm:$0xff] %v432
    %465 = vst [vmem:[%s2 + $0x78] sm:$0xff] %v433
    %466 = vst [vmem:[%s2 + $0x80] sm:$0xff] %v434
    %467 = vst [vmem:[%s2 + $0x88] sm:$0xff] %v435
    %468 = vst [vmem:[%s2 + $0x90] sm:$0xff] %v436
    %469 = vst [vmem:[%s2 + $0x98] sm:$0xff] %v437
    %470 = vst [vmem:[%s2 + $0xa0] sm:$0xff] %v438
    %471 = vst [vmem:[%s2 + $0xa8] sm:$0xff] %v439
    %472 = vst [vmem:[%s2 + $0xb0] sm:$0xff] %v440
    %473 = vst [vmem:[%s2 + $0xb8] sm:$0xff] %v441
    %474 = vst [vmem:[%s2 + $0xc0] sm:$0xff] %v442
    %475 = vst [vmem:[%s2 + $0xc8] sm:$0xff] %v443
    %476 = vst [vmem:[%s2 + $0xd0] sm:$0xff] %v444
    %477 = vst [vmem:[%s2 + $0xd8] sm:$0xff] %v445
    %478 = vst [vmem:[%s2 + $0xe0] sm:$0xff] %v446
    %479 = vst [vmem:[%s2 + $0xe8] sm:$0xff] %v447
    %480 = vst [vmem:[%s2 + $0xf0] sm:$0xff] %v448
    %481 = vst [vmem:[%s2 + $0xf8] sm:$0xff] %v449
    %v482 = vld [vmem:[%s3] sm:$0x3]
    %v483 = vadd.f32 %v418, %v420
    %v484 = vadd.f32 %v483, %v422
    %v485 = vadd.f32 %v484, %v424
    %v486 = vadd.f32 %v485, %v426
    %v487 = vadd.f32 %v486, %v428
    %v488 = vadd.f32 %v487, %v430
    %v489 = vadd.f32 %v488, %v432
    %v490 = vadd.f32 %v489, %v434
    %v491 = vadd.f32 %v490, %v436
    %v492 = vadd.f32 %v491, %v438
    %v493 = vadd.f32 %v492, %v440
    %v494 = vadd.f32 %v493, %v442
    %v495 = vadd.f32 %v494, %v444
    %v496 = vadd.f32 %v495, %v446
    %v497 = vadd.f32 %v496, %v448
    %v498 = vrot.slane %v497, 4
    %v499 = vadd.f32 %v497, %v498
    %v500 = vrot.slane %v499, 2
    %v501 = vadd.f32 %v499, %v500
    %v502 = vrot.slane %v501, 1
    %v503 = vadd.f32 %v501, %v502
    %v504 = vadd.f32 %v419, %v421
    %v505 = vadd.f32 %v504, %v423
    %v506 = vadd.f32 %v505, %v425
    %v507 = vadd.f32 %v506, %v427
    %v508 = vadd.f32 %v507, %v429
    %v509 = vadd.f32 %v508, %v431
    %v510 = vadd.f32 %v509, %v433
    %v511 = vadd.f32 %v510, %v435
    %v512 = vadd.f32 %v511, %v437
    %v513 = vadd.f32 %v512, %v439
    %v514 = vadd.f32 %v513, %v441
    %v515 = vadd.f32 %v514, %v443
    %v516 = vadd.f32 %v515, %v445
    %v517 = vadd.f32 %v516, %v447
    %v518 = vadd.f32 %v517, %v449
    %v519 = vrot.slane %v518, 4
    %v520 = vadd.f32 %v518, %v519
    %v521 = vrot.slane %v520, 2
    %v522 = vadd.f32 %v520, %v521
    %v523 = vrot.slane %v522, 1
    %v524 = vadd.f32 %v522, %v523
    %v527 = vrot.slane %v524, 7
    %vm528 = vcmask 1040384
    %v529 = vsel %vm528, %v503, %v527
    %v531 = vadd.f32 %v482, %v529
    %v532 = vlaneseq
    %vm533 = vcmp.ge.s32.totalorder %v532, 0
    %vm534 = vcmp.lt.s32.totalorder %v532, 256
    %vm535 = vmand %vm533, %vm534
    %536 = vst.msk [vmem:[%s3] sm:$0x3] %vm535, %v531
    %v537 = vld [vmem:[%s4] sm:$0x3]
    %v538 = vmul.f32 %v418, %v418
    %v539 = vmul.f32 %v419, %v419
    %v540 = vmul.f32 %v420, %v420
    %v541 = vmul.f32 %v421, %v421
    %v542 = vmul.f32 %v422, %v422
    %v543 = vmul.f32 %v423, %v423
    %v544 = vmul.f32 %v424, %v424
    %v545 = vmul.f32 %v425, %v425
    %v546 = vmul.f32 %v426, %v426
    %v547 = vmul.f32 %v427, %v427
    %v548 = vmul.f32 %v428, %v428
    %v549 = vmul.f32 %v429, %v429
    %v550 = vmul.f32 %v430, %v430
    %v551 = vmul.f32 %v431, %v431
    %v552 = vmul.f32 %v432, %v432
    %v553 = vmul.f32 %v433, %v433
    %v554 = vmul.f32 %v434, %v434
    %v555 = vmul.f32 %v435, %v435
    %v556 = vmul.f32 %v436, %v436
    %v557 = vmul.f32 %v437, %v437
    %v558 = vmul.f32 %v438, %v438
    %v559 = vmul.f32 %v439, %v439
    %v560 = vmul.f32 %v440, %v440
    %v561 = vmul.f32 %v441, %v441
    %v562 = vmul.f32 %v442, %v442
    %v563 = vmul.f32 %v443, %v443
    %v564 = vmul.f32 %v444, %v444
    %v565 = vmul.f32 %v445, %v445
    %v566 = vmul.f32 %v446, %v446
    %v567 = vmul.f32 %v447, %v447
    %v568 = vmul.f32 %v448, %v448
    %v569 = vmul.f32 %v449, %v449
    %v570 = vadd.f32 %v538, %v540
    %v571 = vadd.f32 %v570, %v542
    %v572 = vadd.f32 %v571, %v544
    %v573 = vadd.f32 %v572, %v546
    %v574 = vadd.f32 %v573, %v548
    %v575 = vadd.f32 %v574, %v550
    %v576 = vadd.f32 %v575, %v552
    %v577 = vadd.f32 %v576, %v554
    %v578 = vadd.f32 %v577, %v556
    %v579 = vadd.f32 %v578, %v558
    %v580 = vadd.f32 %v579, %v560
    %v581 = vadd.f32 %v580, %v562
    %v582 = vadd.f32 %v581, %v564
    %v583 = vadd.f32 %v582, %v566
    %v584 = vadd.f32 %v583, %v568
    %v585 = vrot.slane %v584, 4
    %v586 = vadd.f32 %v584, %v585
    %v587 = vrot.slane %v586, 2
    %v588 = vadd.f32 %v586, %v587
    %v589 = vrot.slane %v588, 1
    %v590 = vadd.f32 %v588, %v589
    %v591 = vadd.f32 %v539, %v541
    %v592 = vadd.f32 %v591, %v543
    %v593 = vadd.f32 %v592, %v545
    %v594 = vadd.f32 %v593, %v547
    %v595 = vadd.f32 %v594, %v549
    %v596 = vadd.f32 %v595, %v551
    %v597 = vadd.f32 %v596, %v553
    %v598 = vadd.f32 %v597, %v555
    %v599 = vadd.f32 %v598, %v557
    %v600 = vadd.f32 %v599, %v559
    %v601 = vadd.f32 %v600, %v561
    %v602 = vadd.f32 %v601, %v563
    %v603 = vadd.f32 %v602, %v565
    %v604 = vadd.f32 %v603, %v567
    %v605 = vadd.f32 %v604, %v569
    %v606 = vrot.slane %v605, 4
    %v607 = vadd.f32 %v605, %v606
    %v608 = vrot.slane %v607, 2
    %v609 = vadd.f32 %v607, %v608
    %v610 = vrot.slane %v609, 1
    %v611 = vadd.f32 %v609, %v610
    %v614 = vrot.slane %v611, 7
    %v615 = vsel %vm528, %v590, %v614
    %v617 = vadd.f32 %v537, %v615
    %618 = vst.msk [vmem:[%s4] sm:$0x3] %vm535, %v617
  $region21: #{bottleneck_psp.11} parent=0 // pred_fallthru
    _
  // Predicated region
  $region22: #{bottleneck_psp.11} parent=0 // pred_check
    _
  $region23: #{bottleneck_psp.11} parent=0 // pred_check_branch
    %620 = sbr.rel (0) target = $region25
  $region24: #{bottleneck_psp.11} parent=0 // pred_region
    _
  $region25: #{bottleneck_psp.11} parent=0 // pred_fallthru
    _
  // Predicated region
  $region26: #{bottleneck_psp.11} parent=0 // pred_check
    _
  $region27: #{bottleneck_psp.11} parent=0 // pred_check_branch
    %622 = sbr.rel (0) target = $region29
  $region28: #{bottleneck_psp.11} parent=0 // pred_region
    _
  $region29: #{bottleneck_psp.11} parent=0 // pred_fallthru
    _
  // Predicated region
  $region30: #{bottleneck_psp.11} parent=0 // pred_check
    _
  $region31: #{bottleneck_psp.11} parent=0 // pred_check_branch
    %624 = sbr.rel (0) target = $region33
  $region32: #{bottleneck_psp.11} parent=0 // pred_region
    _
  $region33: #{bottleneck_psp.11} parent=0 // pred_fallthru
    _
  // Predicated region
  $region34: #{bottleneck_psp.11} parent=0 // pred_check
    _
  $region35: #{bottleneck_psp.11} parent=0 // pred_check_branch
    %626 = sbr.rel (0) target = $region37
  $region36: #{bottleneck_psp.11} parent=0 // pred_region
    _
  $region37: #{bottleneck_psp.11} parent=0 // pred_fallthru
    _
  // Predicated region
  $region38: #{bottleneck_psp.11} parent=0 // pred_check
    _
  $region39: #{bottleneck_psp.11} parent=0 // pred_check_branch
    %628 = sbr.rel (0) target = $region41
  $region40: #{bottleneck_psp.11} parent=0 // pred_region
    _
  $region41: #{bottleneck_psp.11} parent=0 // pred_fallthru
    _
  // Predicated region
  $region42: #{bottleneck_psp.11} parent=0 // pred_check
    _
  $region43: #{bottleneck_psp.11} parent=0 // pred_check_branch
    %630 = sbr.rel (0) target = $region45
  $region44: #{bottleneck_psp.11} parent=0 // pred_region
    _
  $region45: #{bottleneck_psp.11} parent=0 // pred_fallthru
    _

// kernel: bottleneck_psp.13
$region0: #{bottleneck_psp.13}
  #allocation0 [shape = 'u32[]', space=smem, size = 0x4, offset = 0x4, fixed_abs, tag = 'smem constant byte address 0x4 - core index']
  #allocation1 [shape = 'u32[72,128]{1,0:T(1,128)}', space=vmem, size = 0x9000, scoped, tag = 'internal scratch']
  %s0 = inlined_call_operand.vmem [shape: f32[128,256], index: 0, kind: input, shape index: {}]
  %s1 = inlined_call_operand.vmem [shape: f32[128,256], index: 1, kind: input, shape index: {}]
  %s2 = inlined_call_operand.vmem [shape: f32[1,256], index: 2, kind: input, shape index: {}]
  %s3 = inlined_call_operand.vmem [shape: f32[1,256], index: 3, kind: input, shape index: {}]
  %s4 = inlined_call_operand.vmem [shape: f32[1,256], index: 4, kind: input, shape index: {}]
  %s5 = inlined_call_operand.vmem [shape: f32[1,256], index: 5, kind: input, shape index: {}]
  %s6 = inlined_call_operand.hbm [shape: f32[128,256], index: 6, kind: output, shape index: {}]
  %s7 = sld [smem:[#allocation0]]
  $region34: #{bottleneck_psp.13} parent=0
    _
  %s9 = ssub.s32 1, %s7
  %s10 = scalar_select 0, %s9, %s7
  $region1: #{bottleneck_psp.13} parent=0
    #allocation2 [shape = 'u8[131072]{0}', space=vmem, size = 0x20000, scoped, tag = 'output window, operand 0, single buffered']
    #allocation3 [shape = 's32[1]{0}', space=sflag, size = 0x4, scoped, tag = 'scoped memory for bottleneck_psp.13']
    %11 = vsyncpa [#allocation3], 0
    // Predicated region
    $region2: #{bottleneck_psp.13} parent=1 // pred_check
      _
    $region3: #{bottleneck_psp.13} parent=1 // pred_check_branch
      %13 = sbr.rel (0) target = $region5
    $region4: #{bottleneck_psp.13} parent=1 // pred_region
      _
    $region5: #{bottleneck_psp.13} parent=1 // pred_fallthru
      _
    // Predicated region
    $region6: #{bottleneck_psp.13} parent=1 // pred_check
      _
    $region7: #{bottleneck_psp.13} parent=1 // pred_check_branch
      %15 = sbr.rel (0) target = $region9
    $region8: #{bottleneck_psp.13} parent=1 // pred_region
      _
    $region9: #{bottleneck_psp.13} parent=1 // pred_fallthru
      _
    // Predicated region
    $region10: #{bottleneck_psp.13} parent=1 // pred_check
      _
    $region11: #{bottleneck_psp.13} parent=1 // pred_check_branch
      %17 = sbr.rel (0) target = $region13
    $region12: #{bottleneck_psp.13} parent=1 // pred_region
      _
    $region13: #{bottleneck_psp.13} parent=1 // pred_fallthru
      _
    // Predicated region
    $region14: #{bottleneck_psp.13} parent=1 // pred_check
      _
    $region15: #{bottleneck_psp.13} parent=1 // pred_check_branch
      %19 = sbr.rel (0) target = $region17
    $region16: #{bottleneck_psp.13} parent=1 // pred_region
      _
    $region17: #{bottleneck_psp.13} parent=1 // pred_fallthru
      _
    // Predicated region
    $region18: #{bottleneck_psp.13} parent=1 // pred_check
      _
    $region19: #{bottleneck_psp.13} parent=1 // pred_check_branch
      %21 = sbr.rel (0) target = $region21
    $region20: #{bottleneck_psp.13} parent=1 // pred_region
      _
    $region21: #{bottleneck_psp.13} parent=1 // pred_fallthru
      _
    // Predicated region
    $region22: #{bottleneck_psp.13} parent=1 // pred_check
      _
    $region23: #{bottleneck_psp.13} parent=1 // pred_check_branch
      %23 = sbr.rel (0) target = $region25
    $region24: #{bottleneck_psp.13} parent=1 // pred_region
      _
    $region25: #{bottleneck_psp.13} parent=1 // pred_fallthru
      _
    %v24 = vld [vmem:[%s0] sm:$0xff]
    %v25 = vld [vmem:[%s0 + $0x8] sm:$0xff]
    %v26 = vld [vmem:[%s0 + $0x10] sm:$0xff]
    %v27 = vld [vmem:[%s0 + $0x18] sm:$0xff]
    %v28 = vld [vmem:[%s0 + $0x20] sm:$0xff]
    %v29 = vld [vmem:[%s0 + $0x28] sm:$0xff]
    %v30 = vld [vmem:[%s0 + $0x30] sm:$0xff]
    %v31 = vld [vmem:[%s0 + $0x38] sm:$0xff]
    %v32 = vld [vmem:[%s0 + $0x40] sm:$0xff]
    %v33 = vld [vmem:[%s0 + $0x48] sm:$0xff]
    %v34 = vld [vmem:[%s0 + $0x50] sm:$0xff]
    %v35 = vld [vmem:[%s0 + $0x58] sm:$0xff]
    %v36 = vld [vmem:[%s0 + $0x60] sm:$0xff]
    %v37 = vld [vmem:[%s0 + $0x68] sm:$0xff]
    %v38 = vld [vmem:[%s0 + $0x70] sm:$0xff]
    %v39 = vld [vmem:[%s0 + $0x78] sm:$0xff]
    %v40 = vld [vmem:[%s0 + $0x80] sm:$0xff]
    %v41 = vld [vmem:[%s0 + $0x88] sm:$0xff]
    %v42 = vld [vmem:[%s0 + $0x90] sm:$0xff]
    %v43 = vld [vmem:[%s0 + $0x98] sm:$0xff]
    %v44 = vld [vmem:[%s0 + $0xa0] sm:$0xff]
    %v45 = vld [vmem:[%s0 + $0xa8] sm:$0xff]
    %v46 = vld [vmem:[%s0 + $0xb0] sm:$0xff]
    %v47 = vld [vmem:[%s0 + $0xb8] sm:$0xff]
    %v48 = vld [vmem:[%s0 + $0xc0] sm:$0xff]
    %v49 = vld [vmem:[%s0 + $0xc8] sm:$0xff]
    %v50 = vld [vmem:[%s0 + $0xd0] sm:$0xff]
    %v51 = vld [vmem:[%s0 + $0xd8] sm:$0xff]
    %v52 = vld [vmem:[%s0 + $0xe0] sm:$0xff]
    %v53 = vld [vmem:[%s0 + $0xe8] sm:$0xff]
    %v54 = vld [vmem:[%s0 + $0xf0] sm:$0xff]
    %v55 = vld [vmem:[%s0 + $0xf8] sm:$0xff]
    %v56 = vld [vmem:[%s2] sm:$0x3]
    %v58 = vperm.slane %v56, 0
    %v59 = vperm.slane %v56, 1
    %v62 = vmul.f32 %v24, %v58
    %v63 = vmul.f32 %v25, %v59
    %v64 = vmul.f32 %v26, %v58
    %v65 = vmul.f32 %v27, %v59
    %v66 = vmul.f32 %v28, %v58
    %v67 = vmul.f32 %v29, %v59
    %v68 = vmul.f32 %v30, %v58
    %v69 = vmul.f32 %v31, %v59
    %v70 = vmul.f32 %v32, %v58
    %v71 = vmul.f32 %v33, %v59
    %v72 = vmul.f32 %v34, %v58
    %v73 = vmul.f32 %v35, %v59
    %v74 = vmul.f32 %v36, %v58
    %v75 = vmul.f32 %v37, %v59
    %v76 = vmul.f32 %v38, %v58
    %v77 = vmul.f32 %v39, %v59
    %v78 = vmul.f32 %v40, %v58
    %v79 = vmul.f32 %v41, %v59
    %v80 = vmul.f32 %v42, %v58
    %v81 = vmul.f32 %v43, %v59
    %v82 = vmul.f32 %v44, %v58
    %v83 = vmul.f32 %v45, %v59
    %v84 = vmul.f32 %v46, %v58
    %v85 = vmul.f32 %v47, %v59
    %v86 = vmul.f32 %v48, %v58
    %v87 = vmul.f32 %v49, %v59
    %v88 = vmul.f32 %v50, %v58
    %v89 = vmul.f32 %v51, %v59
    %v90 = vmul.f32 %v52, %v58
    %v91 = vmul.f32 %v53, %v59
    %v92 = vmul.f32 %v54, %v58
    %v93 = vmul.f32 %v55, %v59
    %v94 = vld [vmem:[%s3] sm:$0x3]
    %v96 = vperm.slane %v94, 0
    %v97 = vperm.slane %v94, 1
    %v100 = vadd.f32 %v62, %v96
    %v101 = vadd.f32 %v63, %v97
    %v102 = vadd.f32 %v64, %v96
    %v103 = vadd.f32 %v65, %v97
    %v104 = vadd.f32 %v66, %v96
    %v105 = vadd.f32 %v67, %v97
    %v106 = vadd.f32 %v68, %v96
    %v107 = vadd.f32 %v69, %v97
    %v108 = vadd.f32 %v70, %v96
    %v109 = vadd.f32 %v71, %v97
    %v110 = vadd.f32 %v72, %v96
    %v111 = vadd.f32 %v73, %v97
    %v112 = vadd.f32 %v74, %v96
    %v113 = vadd.f32 %v75, %v97
    %v114 = vadd.f32 %v76, %v96
    %v115 = vadd.f32 %v77, %v97
    %v116 = vadd.f32 %v78, %v96
    %v117 = vadd.f32 %v79, %v97
    %v118 = vadd.f32 %v80, %v96
    %v119 = vadd.f32 %v81, %v97
    %v120 = vadd.f32 %v82, %v96
    %v121 = vadd.f32 %v83, %v97
    %v122 = vadd.f32 %v84, %v96
    %v123 = vadd.f32 %v85, %v97
    %v124 = vadd.f32 %v86, %v96
    %v125 = vadd.f32 %v87, %v97
    %v126 = vadd.f32 %v88, %v96
    %v127 = vadd.f32 %v89, %v97
    %v128 = vadd.f32 %v90, %v96
    %v129 = vadd.f32 %v91, %v97
    %v130 = vadd.f32 %v92, %v96
    %v131 = vadd.f32 %v93, %v97
    %v132 = vld [vmem:[%s1] sm:$0xff]
    %v133 = vld [vmem:[%s1 + $0x8] sm:$0xff]
    %v134 = vld [vmem:[%s1 + $0x10] sm:$0xff]
    %v135 = vld [vmem:[%s1 + $0x18] sm:$0xff]
    %v136 = vld [vmem:[%s1 + $0x20] sm:$0xff]
    %v137 = vld [vmem:[%s1 + $0x28] sm:$0xff]
    %v138 = vld [vmem:[%s1 + $0x30] sm:$0xff]
    %v139 = vld [vmem:[%s1 + $0x38] sm:$0xff]
    %v140 = vld [vmem:[%s1 + $0x40] sm:$0xff]
    %v141 = vld [vmem:[%s1 + $0x48] sm:$0xff]
    %v142 = vld [vmem:[%s1 + $0x50] sm:$0xff]
    %v143 = vld [vmem:[%s1 + $0x58] sm:$0xff]
    %v144 = vld [vmem:[%s1 + $0x60] sm:$0xff]
    %v145 = vld [vmem:[%s1 + $0x68] sm:$0xff]
    %v146 = vld [vmem:[%s1 + $0x70] sm:$0xff]
    %v147 = vld [vmem:[%s1 + $0x78] sm:$0xff]
    %v148 = vld [vmem:[%s1 + $0x80] sm:$0xff]
    %v149 = vld [vmem:[%s1 + $0x88] sm:$0xff]
    %v150 = vld [vmem:[%s1 + $0x90] sm:$0xff]
    %v151 = vld [vmem:[%s1 + $0x98] sm:$0xff]
    %v152 = vld [vmem:[%s1 + $0xa0] sm:$0xff]
    %v153 = vld [vmem:[%s1 + $0xa8] sm:$0xff]
    %v154 = vld [vmem:[%s1 + $0xb0] sm:$0xff]
    %v155 = vld [vmem:[%s1 + $0xb8] sm:$0xff]
    %v156 = vld [vmem:[%s1 + $0xc0] sm:$0xff]
    %v157 = vld [vmem:[%s1 + $0xc8] sm:$0xff]
    %v158 = vld [vmem:[%s1 + $0xd0] sm:$0xff]
    %v159 = vld [vmem:[%s1 + $0xd8] sm:$0xff]
    %v160 = vld [vmem:[%s1 + $0xe0] sm:$0xff]
    %v161 = vld [vmem:[%s1 + $0xe8] sm:$0xff]
    %v162 = vld [vmem:[%s1 + $0xf0] sm:$0xff]
    %v163 = vld [vmem:[%s1 + $0xf8] sm:$0xff]
    %v164 = vld [vmem:[%s4] sm:$0x3]
    %v166 = vperm.slane %v164, 0
    %v167 = vperm.slane %v164, 1
    %v170 = vmul.f32 %v132, %v166
    %v171 = vmul.f32 %v133, %v167
    %v172 = vmul.f32 %v134, %v166
    %v173 = vmul.f32 %v135, %v167
    %v174 = vmul.f32 %v136, %v166
    %v175 = vmul.f32 %v137, %v167
    %v176 = vmul.f32 %v138, %v166
    %v177 = vmul.f32 %v139, %v167
    %v178 = vmul.f32 %v140, %v166
    %v179 = vmul.f32 %v141, %v167
    %v180 = vmul.f32 %v142, %v166
    %v181 = vmul.f32 %v143, %v167
    %v182 = vmul.f32 %v144, %v166
    %v183 = vmul.f32 %v145, %v167
    %v184 = vmul.f32 %v146, %v166
    %v185 = vmul.f32 %v147, %v167
    %v186 = vmul.f32 %v148, %v166
    %v187 = vmul.f32 %v149, %v167
    %v188 = vmul.f32 %v150, %v166
    %v189 = vmul.f32 %v151, %v167
    %v190 = vmul.f32 %v152, %v166
    %v191 = vmul.f32 %v153, %v167
    %v192 = vmul.f32 %v154, %v166
    %v193 = vmul.f32 %v155, %v167
    %v194 = vmul.f32 %v156, %v166
    %v195 = vmul.f32 %v157, %v167
    %v196 = vmul.f32 %v158, %v166
    %v197 = vmul.f32 %v159, %v167
    %v198 = vmul.f32 %v160, %v166
    %v199 = vmul.f32 %v161, %v167
    %v200 = vmul.f32 %v162, %v166
    %v201 = vmul.f32 %v163, %v167
    %v202 = vadd.f32 %v100, %v170
    %v203 = vadd.f32 %v101, %v171
    %v204 = vadd.f32 %v102, %v172
    %v205 = vadd.f32 %v103, %v173
    %v206 = vadd.f32 %v104, %v174
    %v207 = vadd.f32 %v105, %v175
    %v208 = vadd.f32 %v106, %v176
    %v209 = vadd.f32 %v107, %v177
    %v210 = vadd.f32 %v108, %v178
    %v211 = vadd.f32 %v109, %v179
    %v212 = vadd.f32 %v110, %v180
    %v213 = vadd.f32 %v111, %v181
    %v214 = vadd.f32 %v112, %v182
    %v215 = vadd.f32 %v113, %v183
    %v216 = vadd.f32 %v114, %v184
    %v217 = vadd.f32 %v115, %v185
    %v218 = vadd.f32 %v116, %v186
    %v219 = vadd.f32 %v117, %v187
    %v220 = vadd.f32 %v118, %v188
    %v221 = vadd.f32 %v119, %v189
    %v222 = vadd.f32 %v120, %v190
    %v223 = vadd.f32 %v121, %v191
    %v224 = vadd.f32 %v122, %v192
    %v225 = vadd.f32 %v123, %v193
    %v226 = vadd.f32 %v124, %v194
    %v227 = vadd.f32 %v125, %v195
    %v228 = vadd.f32 %v126, %v196
    %v229 = vadd.f32 %v127, %v197
    %v230 = vadd.f32 %v128, %v198
    %v231 = vadd.f32 %v129, %v199
    %v232 = vadd.f32 %v130, %v200
    %v233 = vadd.f32 %v131, %v201
    %v234 = vld [vmem:[%s5] sm:$0x3]
    %v236 = vperm.slane %v234, 0
    %v237 = vperm.slane %v234, 1
    %v240 = vadd.f32 %v202, %v236
    %v241 = vadd.f32 %v203, %v237
    %v242 = vadd.f32 %v204, %v236
    %v243 = vadd.f32 %v205, %v237
    %v244 = vadd.f32 %v206, %v236
    %v245 = vadd.f32 %v207, %v237
    %v246 = vadd.f32 %v208, %v236
    %v247 = vadd.f32 %v209, %v237
    %v248 = vadd.f32 %v210, %v236
    %v249 = vadd.f32 %v211, %v237
    %v250 = vadd.f32 %v212, %v236
    %v251 = vadd.f32 %v213, %v237
    %v252 = vadd.f32 %v214, %v236
    %v253 = vadd.f32 %v215, %v237
    %v254 = vadd.f32 %v216, %v236
    %v255 = vadd.f32 %v217, %v237
    %v256 = vadd.f32 %v218, %v236
    %v257 = vadd.f32 %v219, %v237
    %v258 = vadd.f32 %v220, %v236
    %v259 = vadd.f32 %v221, %v237
    %v260 = vadd.f32 %v222, %v236
    %v261 = vadd.f32 %v223, %v237
    %v262 = vadd.f32 %v224, %v236
    %v263 = vadd.f32 %v225, %v237
    %v264 = vadd.f32 %v226, %v236
    %v265 = vadd.f32 %v227, %v237
    %v266 = vadd.f32 %v228, %v236
    %v267 = vadd.f32 %v229, %v237
    %v268 = vadd.f32 %v230, %v236
    %v269 = vadd.f32 %v231, %v237
    %v270 = vadd.f32 %v232, %v236
    %v271 = vadd.f32 %v233, %v237
    %v272 = vmax.f32 %v240, 0.0
    %v273 = vmax.f32 %v241, 0.0
    %v274 = vmax.f32 %v242, 0.0
    %v275 = vmax.f32 %v243, 0.0
    %v276 = vmax.f32 %v244, 0.0
    %v277 = vmax.f32 %v245, 0.0
    %v278 = vmax.f32 %v246, 0.0
    %v279 = vmax.f32 %v247, 0.0
    %v280 = vmax.f32 %v248, 0.0
    %v281 = vmax.f32 %v249, 0.0
    %v282 = vmax.f32 %v250, 0.0
    %v283 = vmax.f32 %v251, 0.0
    %v284 = vmax.f32 %v252, 0.0
    %v285 = vmax.f32 %v253, 0.0
    %v286 = vmax.f32 %v254, 0.0
    %v287 = vmax.f32 %v255, 0.0
    %v288 = vmax.f32 %v256, 0.0
    %v289 = vmax.f32 %v257, 0.0
    %v290 = vmax.f32 %v258, 0.0
    %v291 = vmax.f32 %v259, 0.0
    %v292 = vmax.f32 %v260, 0.0
    %v293 = vmax.f32 %v261, 0.0
    %v294 = vmax.f32 %v262, 0.0
    %v295 = vmax.f32 %v263, 0.0
    %v296 = vmax.f32 %v264, 0.0
    %v297 = vmax.f32 %v265, 0.0
    %v298 = vmax.f32 %v266, 0.0
    %v299 = vmax.f32 %v267, 0.0
    %v300 = vmax.f32 %v268, 0.0
    %v301 = vmax.f32 %v269, 0.0
    %v302 = vmax.f32 %v270, 0.0
    %v303 = vmax.f32 %v271, 0.0
    %304 = vst [vmem:[#allocation2] sm:$0xff] %v272
    %305 = vst [vmem:[#allocation2 + $0x8] sm:$0xff] %v273
    %306 = vst [vmem:[#allocation2 + $0x10] sm:$0xff] %v274
    %307 = vst [vmem:[#allocation2 + $0x18] sm:$0xff] %v275
    %308 = vst [vmem:[#allocation2 + $0x20] sm:$0xff] %v276
    %309 = vst [vmem:[#allocation2 + $0x28] sm:$0xff] %v277
    %310 = vst [vmem:[#allocation2 + $0x30] sm:$0xff] %v278
    %311 = vst [vmem:[#allocation2 + $0x38] sm:$0xff] %v279
    %312 = vst [vmem:[#allocation2 + $0x40] sm:$0xff] %v280
    %313 = vst [vmem:[#allocation2 + $0x48] sm:$0xff] %v281
    %314 = vst [vmem:[#allocation2 + $0x50] sm:$0xff] %v282
    %315 = vst [vmem:[#allocation2 + $0x58] sm:$0xff] %v283
    %316 = vst [vmem:[#allocation2 + $0x60] sm:$0xff] %v284
    %317 = vst [vmem:[#allocation2 + $0x68] sm:$0xff] %v285
    %318 = vst [vmem:[#allocation2 + $0x70] sm:$0xff] %v286
    %319 = vst [vmem:[#allocation2 + $0x78] sm:$0xff] %v287
    %320 = vst [vmem:[#allocation2 + $0x80] sm:$0xff] %v288
    %321 = vst [vmem:[#allocation2 + $0x88] sm:$0xff] %v289
    %322 = vst [vmem:[#allocation2 + $0x90] sm:$0xff] %v290
    %323 = vst [vmem:[#allocation2 + $0x98] sm:$0xff] %v291
    %324 = vst [vmem:[#allocation2 + $0xa0] sm:$0xff] %v292
    %325 = vst [vmem:[#allocation2 + $0xa8] sm:$0xff] %v293
    %326 = vst [vmem:[#allocation2 + $0xb0] sm:$0xff] %v294
    %327 = vst [vmem:[#allocation2 + $0xb8] sm:$0xff] %v295
    %328 = vst [vmem:[#allocation2 + $0xc0] sm:$0xff] %v296
    %329 = vst [vmem:[#allocation2 + $0xc8] sm:$0xff] %v297
    %330 = vst [vmem:[#allocation2 + $0xd0] sm:$0xff] %v298
    %331 = vst [vmem:[#allocation2 + $0xd8] sm:$0xff] %v299
    %332 = vst [vmem:[#allocation2 + $0xe0] sm:$0xff] %v300
    %333 = vst [vmem:[#allocation2 + $0xe8] sm:$0xff] %v301
    %334 = vst [vmem:[#allocation2 + $0xf0] sm:$0xff] %v302
    %335 = vst [vmem:[#allocation2 + $0xf8] sm:$0xff] %v303
    // Predicated region
    $region26: #{bottleneck_psp.13} parent=1 // pred_check
      _
    $region27: #{bottleneck_psp.13} parent=1 // pred_check_branch
      %337 = sbr.rel (0) target = $region29
    $region28: #{bottleneck_psp.13} parent=1 // pred_region
      %339 = vsyncadd [#allocation3], 0
      %s340 = sshll.u32 [#allocation2], 4
      %s341 = int_to_ptr.vmem [resolvable:$true] %s340
      %s342 = sshll.u32 %s6, 4
      %s343 = int_to_ptr.hbm [resolvable:$true] %s342
      %348 = dma.vmem_to_hbm [thread:$0]  %s341, 4096, %s343, [#allocation3], 256, 256, 16
    $region29: #{bottleneck_psp.13} parent=1 // pred_fallthru
      _
    // Predicated region
    $region30: #{bottleneck_psp.13} parent=1 // pred_check
      _
    $region31: #{bottleneck_psp.13} parent=1 // pred_check_branch
      %350 = sbr.rel (0) target = $region33
    $region32: #{bottleneck_psp.13} parent=1 // pred_region
      %352 = dma.done [#allocation3], 4096
    $region33: #{bottleneck_psp.13} parent=1 // pred_fallthru
      _
    %353 = vsyncpa [#allocation3], 1

</llo_original>
